<compile_context>
chip_gen: v5e
topology: v5e:2x2
jax: 0.10.0
libtpu: 0.0.40
codegen_flags: <defaults>
</compile_context>

<pallas_src>
import functools

import jax
import jax.numpy as jnp
from jax.experimental import pallas as pl
from jax.experimental.pallas import tpu as pltpu

LEAKY_SLOPE = 0.01   # nn.LeakyReLU default
IN_EPS = 1e-5        # nn.InstanceNorm3d default


def _double_conv_kernel(x_hbm, mask_ref, w1_ref, w2_ref, o_ref,
                        xbig_ref, hbig_ref, slab_ref, in_sem,
                        *, H, W, pad, nn_real):
    """One batch element, both conv stages fused.

    x_hbm:    (Nb, Cin, NN)  bf16, zero-padded flat input, left in HBM (pl.ANY)
    mask_ref: (8, NN)        f32 rows: [h-1 ok, h+1 ok, w-1 ok, w+1 ok, lane valid, 0,0,0]
    w*_ref:   (Cout, 27*C)   bf16, contraction ordered (kd, kh, kw, cin)
    o_ref:    (1, Cout, NN)  f32
    xbig/hbig:(C, NN+2*pad)  bf16 scratch with zero halo (flat-shift trick)
    slab_ref: (27*Cmax, NN)  bf16 scratch, shared by both stages
    """
    NN = o_ref.shape[2]
    HW = H * W
    n = pl.program_id(0)

    # Land this batch element's input straight in the haloed scratch.
    cp = pltpu.make_async_copy(x_hbm.at[n], xbig_ref.at[:, pad:pad + NN], in_sem.at[0])
    cp.start()

    # Zero only the halos; centers are fully rewritten every grid step, so this is
    # safe under "parallel" grid semantics too.  Depth-axis out-of-range taps read
    # zeros from these halos (and from the zero-padded lane tail), so no d-axis masks.
    Cin = xbig_ref.shape[0]
    Cmid = hbig_ref.shape[0]
    hbig_ref[:, :pad] = jnp.zeros((Cmid, pad), hbig_ref.dtype)
    hbig_ref[:, pad + NN:] = jnp.zeros((Cmid, pad), hbig_ref.dtype)
    xbig_ref[:, :pad] = jnp.zeros((Cin, pad), xbig_ref.dtype)
    xbig_ref[:, pad + NN:] = jnp.zeros((Cin, pad), xbig_ref.dtype)

    hm1 = mask_ref[0:1, :]
    hp1 = mask_ref[1:2, :]
    wm1 = mask_ref[2:3, :]
    wp1 = mask_ref[3:4, :]
    valid = mask_ref[4:5, :]          # 1.0 on real voxels, 0.0 on lane padding
    h_rows = (hm1, None, hp1)
    w_rows = (wm1, None, wp1)
    inv_nn = 1.0 / float(nn_real)

    def build_slab(big_ref, C):
        tap = 0
        for kd in range(3):
            for kh in range(3):
                for kw in range(3):
                    # flat-index shift of tap (kd,kh,kw); d-axis boundaries are handled
                    # by the zero halo, h/w boundaries by the mask rows.
                    s = (kd - 1) * HW + (kh - 1) * W + (kw - 1)
                    piece = big_ref[:, pad + s:pad + s + NN]          # (C, NN) bf16
                    m = h_rows[kh]
                    if w_rows[kw] is not None:
                        m = w_rows[kw] if m is None else m * w_rows[kw]
                    if m is None:
                        slab_ref[tap * C:(tap + 1) * C, :] = piece    # no-mask taps
                    else:
                        slab_ref[tap * C:(tap + 1) * C, :] = (
                            piece * m).astype(slab_ref.dtype)         # cast-on-store
                    tap += 1

    def conv_in_lrelu(big_ref, w_ref, C):
        build_slab(big_ref, C)
        # single K = 27*C matmul on the MXU, bf16 inputs, f32 accumulation.
        acc = jnp.dot(w_ref[...], slab_ref[0:27 * C, :],
                      preferred_element_type=jnp.float32)             # (Cout, NN) f32
        # conv bias omitted: a per-channel constant is exactly removed by the
        # following InstanceNorm3d (no affine).
        # Shifted one-pass statistics (pivot = lane 0), padded lanes masked out.
        pivot = acc[:, 0:1]
        dlt = (acc - pivot) * valid
        s1 = jnp.sum(dlt, axis=1, keepdims=True) * inv_nn
        s2 = jnp.sum(dlt * dlt, axis=1, keepdims=True) * inv_nn
        mean = pivot + s1
        var = s2 - s1 * s1
        y = (acc - mean) * jax.lax.rsqrt(var + IN_EPS)
        return jnp.where(y > 0, y, LEAKY_SLOPE * y)                   # LeakyReLU

    cp.wait()

    # ---- stage 1 ----
    h1 = conv_in_lrelu(xbig_ref, w1_ref, Cin)
    # Intermediate stays in VMEM; zero the padded lanes so stage-2 depth taps that
    # run past the real volume read zeros.
    hbig_ref[:, pad:pad + NN] = (h1 * valid).astype(hbig_ref.dtype)

    # ---- stage 2 ----
    y = conv_in_lrelu(hbig_ref, w2_ref, Cmid)
    o_ref[0] = y.astype(o_ref.dtype)


def _vmem_limit_bytes():
    try:
        cap = int(pltpu.get_tpu_info().vmem_capacity_bytes)
    except Exception:
        cap = 64 * 1024 * 1024          # conservative fallback (v7x per-TC size)
    # ~80% of physical, capped at 100 MiB: ~51 MiB on v7x, 100 MiB on v5e/v6e.
    return min(int(cap * 0.8), 100 * 1024 * 1024)


def double_conv(x, w1, b1, w2, b2):
    """DoubleConv forward.
    x:  (N, Cin, D, H, W) f32 (NCDHW, PyTorch layout)
    w*: (Cout, Cin/Cout, 3, 3, 3) f32 (PyTorch Conv3d weight layout), b*: (Cout,)
    returns (N, Cout, D, H, W) f32.

    Note: b1/b2 are accepted for API parity but are not used by the kernel — a
    per-channel constant bias is exactly cancelled by InstanceNorm3d (affine=False).
    """
    del b1, b2
    Nb, Cin, D, H, W = x.shape
    Cout = w1.shape[0]
    Cmax = max(Cin, Cout)
    NN_real = D * H * W
    NN = ((NN_real + 127) // 128) * 128            # lane-dense flat spatial axis
    M = H * W + W + 1                              # max |flat shift| of a 3x3x3 tap
    PAD = ((M + 127) // 128) * 128                 # lane-aligned zero halo

    # Conv weights -> (Cout, 27*C), contraction ordered (kd, kh, kw, cin); bf16 for MXU.
    def prep_w(w):
        co, ci = w.shape[0], w.shape[1]
        return jnp.transpose(w, (0, 2, 3, 4, 1)).reshape(co, 27 * ci).astype(jnp.bfloat16)

    w1m, w2m = prep_w(w1), prep_w(w2)

    # h/w boundary masks + valid-lane row (f32, 8 rows for clean sublane layout).
    ii = jnp.arange(NN, dtype=jnp.int32)
    hh = (ii // W) % H
    ww = ii % W
    zero = jnp.zeros((NN,), jnp.bool_)
    masks = jnp.stack([hh >= 1, hh <= H - 2, ww >= 1, ww <= W - 2,
                       ii < NN_real, zero, zero, zero]).astype(jnp.float32)   # (8, NN)

    # Flat, lane-padded, bf16 input (DMA'd straight into the haloed scratch).
    x_flat = x.reshape(Nb, Cin, NN_real)
    if NN != NN_real:
        x_flat = jnp.pad(x_flat, ((0, 0), (0, 0), (0, NN - NN_real)))
    x_flat = x_flat.astype(jnp.bfloat16)

    kernel = functools.partial(_double_conv_kernel, H=H, W=W, pad=PAD, nn_real=NN_real)
    out = pl.pallas_call(
        kernel,
        out_shape=jax.ShapeDtypeStruct((Nb, Cout, NN), jnp.float32),
        grid=(Nb,),
        in_specs=[
            pl.BlockSpec(memory_space=pl.ANY),                       # x stays in HBM
            pl.BlockSpec((8, NN), lambda n: (0, 0)),                 # mask rows
            pl.BlockSpec((Cout, 27 * Cin), lambda n: (0, 0)),        # conv1 weights
            pl.BlockSpec((Cout, 27 * Cout), lambda n: (0, 0)),       # conv2 weights
        ],
        out_specs=pl.BlockSpec((1, Cout, NN), lambda n: (n, 0, 0)),
        scratch_shapes=[
            pltpu.VMEM((Cin, NN + 2 * PAD), jnp.bfloat16),   # zero-haloed flat input
            pltpu.VMEM((Cout, NN + 2 * PAD), jnp.bfloat16),  # zero-haloed intermediate
            pltpu.VMEM((27 * Cmax, NN), jnp.bfloat16),       # shared im2col slab
            pltpu.SemaphoreType.DMA((1,)),                   # input DMA semaphore
        ],
        compiler_params=pltpu.CompilerParams(
            dimension_semantics=("parallel",),
            vmem_limit_bytes=_vmem_limit_bytes()),
    )(x_flat, masks, w1m, w2m)
    return out[:, :, :NN_real].reshape(Nb, Cout, D, H, W)


# ----- pure-JAX references for verification (NCDHW) -----
def _ref_stage(x, w, b, matmul_dtype):
    y = jax.lax.conv_general_dilated(
        x.astype(matmul_dtype), w.astype(matmul_dtype),
        window_strides=(1, 1, 1), padding="SAME",
        dimension_numbers=("NCDHW", "OIDHW", "NCDHW"),
        preferred_element_type=jnp.float32)
    y = y + b.reshape(1, -1, 1, 1, 1)
    mean = y.mean(axis=(2, 3, 4), keepdims=True)
    var = ((y - mean) ** 2).mean(axis=(2, 3, 4), keepdims=True)
    y = (y - mean) * jax.lax.rsqrt(var + IN_EPS)
    return jnp.where(y > 0, y, LEAKY_SLOPE * y)


def _ref_double_conv(x, w1, b1, w2, b2, matmul_dtype=jnp.float32):
    return _ref_stage(_ref_stage(x, w1, b1, matmul_dtype), w2, b2, matmul_dtype)


def _check(x, w1, b1, w2, b2):
    out = jax.block_until_ready(double_conv(x, w1, b1, w2, b2))
    assert out.shape == x.shape[:1] + (w1.shape[0],) + x.shape[2:]
    ref_bf16 = jax.block_until_ready(_ref_double_conv(x, w1, b1, w2, b2, jnp.bfloat16))
    ref_f32 = jax.block_until_ready(_ref_double_conv(x, w1, b1, w2, b2, jnp.float32))
    assert jnp.allclose(out, ref_bf16, atol=5e-3, rtol=5e-3), "mismatch vs bf16 reference"
    assert jnp.allclose(out, ref_f32, atol=5e-2, rtol=5e-2), "mismatch vs f32 reference"


if __name__ == "__main__":
    key = jax.random.PRNGKey(0)
    k_x, k_w1, k_b1, k_w2, k_b2, k_x2 = jax.random.split(key, 6)

    Nb, in_ch, out_ch = 2, 4, 8
    D = H = W = 8

    # Deterministic synthetic inputs / parameters (PyTorch NCDHW + Conv3d weight shapes).
    x = jax.random.normal(k_x, (Nb, in_ch, D, H, W), jnp.float32)
    w1 = 0.1 * jax.random.normal(k_w1, (out_ch, in_ch, 3, 3, 3), jnp.float32)
    b1 = 0.1 * jax.random.normal(k_b1, (out_ch,), jnp.float32)
    w2 = 0.1 * jax.random.normal(k_w2, (out_ch, out_ch, 3, 3, 3), jnp.float32)
    b2 = 0.1 * jax.random.normal(k_b2, (out_ch,), jnp.float32)
    _check(x, w1, b1, w2, b2)

    # Second (tiny, non-lane-aligned) shape to exercise the NN-padding path.
    x2 = jax.random.normal(k_x2, (1, in_ch, 4, 6, 7), jnp.float32)
    _check(x2, w1, b1, w2, b2)

    print("KERNEL_OK")
</pallas_src>

<mosaic_0001>
module attributes {stable_mosaic.version = 11 : i64} {
  func.func @_double_conv_kernel(%arg0: i32, %arg1: memref<2x4x512xbf16, #tpu.memory_space<any>>, %arg2: memref<8x512xf32, #tpu.memory_space<vmem>>, %arg3: memref<8x108xbf16, #tpu.memory_space<vmem>>, %arg4: memref<8x216xbf16, #tpu.memory_space<vmem>>, %arg5: memref<1x8x512xf32, #tpu.memory_space<vmem>>, %arg6: memref<4x768xbf16, #tpu.memory_space<vmem>>, %arg7: memref<8x768xbf16, #tpu.memory_space<vmem>>, %arg8: memref<216x512xbf16, #tpu.memory_space<vmem>>, %arg9: memref<1x!tpu.dma_semaphore, #tpu.memory_space<semaphore_mem>>) attributes {dimension_semantics = [#tpu.dimension_semantics<parallel>], iteration_bounds = array<i64: 2>, scalar_prefetch = 0 : i64, scratch_operands = 4 : i64, tpu.core_type = #tpu.core_type<tc>, window_params = [{}, {pipeline_mode = #tpu.pipeline_mode<synchronous>, transform_indices = @transform_1, window_bounds = array<i64: 8, 512>}, {pipeline_mode = #tpu.pipeline_mode<synchronous>, transform_indices = @transform_2, window_bounds = array<i64: 8, 108>}, {pipeline_mode = #tpu.pipeline_mode<synchronous>, transform_indices = @transform_3, window_bounds = array<i64: 8, 216>}, {transform_indices = @transform_4, window_bounds = array<i64: 1, 8, 512>}]} {
    %c0_i32 = arith.constant 0 : i32
    %c0_i32_0 = arith.constant 0 : i32
    %c0_i32_1 = arith.constant 0 : i32
    %0 = tpu.memref_slice %arg1[%arg0, %c0_i32_0, %c0_i32_1] : memref<2x4x512xbf16, #tpu.memory_space<any>> -> memref<1x4x512xbf16, #tpu.memory_space<any>>
    %1 = tpu.memref_squeeze %0 : memref<1x4x512xbf16, #tpu.memory_space<any>> -> memref<4x512xbf16, #tpu.memory_space<any>>
    %c0_i32_2 = arith.constant 0 : i32
    %c128_i32 = arith.constant 128 : i32
    %2 = tpu.memref_slice %arg6[%c0_i32_2, %c128_i32] : memref<4x768xbf16, #tpu.memory_space<vmem>> -> memref<4x512xbf16, #tpu.memory_space<vmem>>
    %3 = tpu.memref_slice %arg9[%c0_i32] : memref<1x!tpu.dma_semaphore, #tpu.memory_space<semaphore_mem>> -> memref<1x!tpu.dma_semaphore, #tpu.memory_space<semaphore_mem>>
    %4 = tpu.memref_squeeze %3 : memref<1x!tpu.dma_semaphore, #tpu.memory_space<semaphore_mem>> -> memref<!tpu.dma_semaphore, #tpu.memory_space<semaphore_mem>>
    tpu.enqueue_dma source(%1 : memref<4x512xbf16, #tpu.memory_space<any>>) target(%2 : memref<4x512xbf16, #tpu.memory_space<vmem>>) target_semaphore(%4 : memref<!tpu.dma_semaphore, #tpu.memory_space<semaphore_mem>>)
    %cst = arith.constant 0.000000e+00 : bf16
    %5 = vector.broadcast %cst : bf16 to vector<8x128xbf16>
    %c0 = arith.constant 0 : index
    %c0_3 = arith.constant 0 : index
    %6 = vector.load %arg7[%c0, %c0_3] : memref<8x768xbf16, #tpu.memory_space<vmem>>, vector<8x128xbf16>
    tpu.vector_store %arg7[%c0, %c0_3], %5 {strides = array<i32>} : memref<8x768xbf16, #tpu.memory_space<vmem>>, vector<8x128xbf16>,
    %cst_4 = arith.constant 0.000000e+00 : bf16
    %7 = vector.broadcast %cst_4 : bf16 to vector<8x128xbf16>
    %c0_5 = arith.constant 0 : index
    %c640 = arith.constant 640 : index
    %8 = vector.load %arg7[%c0_5, %c640] : memref<8x768xbf16, #tpu.memory_space<vmem>>, vector<8x128xbf16>
    tpu.vector_store %arg7[%c0_5, %c640], %7 {strides = array<i32>} : memref<8x768xbf16, #tpu.memory_space<vmem>>, vector<8x128xbf16>,
    %cst_6 = arith.constant 0.000000e+00 : bf16
    %9 = vector.broadcast %cst_6 : bf16 to vector<4x128xbf16>
    %c0_7 = arith.constant 0 : index
    %c0_8 = arith.constant 0 : index
    %10 = vector.load %arg6[%c0_7, %c0_8] : memref<4x768xbf16, #tpu.memory_space<vmem>>, vector<4x128xbf16>
    tpu.vector_store %arg6[%c0_7, %c0_8], %9 {strides = array<i32>} : memref<4x768xbf16, #tpu.memory_space<vmem>>, vector<4x128xbf16>,
    %cst_9 = arith.constant 0.000000e+00 : bf16
    %11 = vector.broadcast %cst_9 : bf16 to vector<4x128xbf16>
    %c0_10 = arith.constant 0 : index
    %c640_11 = arith.constant 640 : index
    %12 = vector.load %arg6[%c0_10, %c640_11] : memref<4x768xbf16, #tpu.memory_space<vmem>>, vector<4x128xbf16>
    tpu.vector_store %arg6[%c0_10, %c640_11], %11 {strides = array<i32>} : memref<4x768xbf16, #tpu.memory_space<vmem>>, vector<4x128xbf16>,
    %c0_12 = arith.constant 0 : index
    %c0_13 = arith.constant 0 : index
    %13 = vector.load %arg2[%c0_12, %c0_13] : memref<8x512xf32, #tpu.memory_space<vmem>>, vector<1x512xf32>
    %c1 = arith.constant 1 : index
    %c0_14 = arith.constant 0 : index
    %14 = vector.load %arg2[%c1, %c0_14] : memref<8x512xf32, #tpu.memory_space<vmem>>, vector<1x512xf32>
    %c2 = arith.constant 2 : index
    %c0_15 = arith.constant 0 : index
    %15 = vector.load %arg2[%c2, %c0_15] : memref<8x512xf32, #tpu.memory_space<vmem>>, vector<1x512xf32>
    %c3 = arith.constant 3 : index
    %c0_16 = arith.constant 0 : index
    %16 = vector.load %arg2[%c3, %c0_16] : memref<8x512xf32, #tpu.memory_space<vmem>>, vector<1x512xf32>
    %c4 = arith.constant 4 : index
    %c0_17 = arith.constant 0 : index
    %17 = vector.load %arg2[%c4, %c0_17] : memref<8x512xf32, #tpu.memory_space<vmem>>, vector<1x512xf32>
    %c0_i32_18 = arith.constant 0 : i32
    %c0_i32_19 = arith.constant 0 : i32
    %c0_i32_20 = arith.constant 0 : i32
    %18 = tpu.memref_slice %arg1[%arg0, %c0_i32_19, %c0_i32_20] : memref<2x4x512xbf16, #tpu.memory_space<any>> -> memref<1x4x512xbf16, #tpu.memory_space<any>>
    %19 = tpu.memref_squeeze %18 : memref<1x4x512xbf16, #tpu.memory_space<any>> -> memref<4x512xbf16, #tpu.memory_space<any>>
    %c0_i32_21 = arith.constant 0 : i32
    %c128_i32_22 = arith.constant 128 : i32
    %20 = tpu.memref_slice %arg6[%c0_i32_21, %c128_i32_22] : memref<4x768xbf16, #tpu.memory_space<vmem>> -> memref<4x512xbf16, #tpu.memory_space<vmem>>
    %21 = tpu.memref_slice %arg9[%c0_i32_18] : memref<1x!tpu.dma_semaphore, #tpu.memory_space<semaphore_mem>> -> memref<1x!tpu.dma_semaphore, #tpu.memory_space<semaphore_mem>>
    %22 = tpu.memref_squeeze %21 : memref<1x!tpu.dma_semaphore, #tpu.memory_space<semaphore_mem>> -> memref<!tpu.dma_semaphore, #tpu.memory_space<semaphore_mem>>
    tpu.wait_dma2 semaphore(%22 : memref<!tpu.dma_semaphore, #tpu.memory_space<semaphore_mem>>) src(%19 : memref<4x512xbf16, #tpu.memory_space<any>>) dst(%20 : memref<4x512xbf16, #tpu.memory_space<vmem>>)
    %c0_23 = arith.constant 0 : index
    %c55 = arith.constant 55 : index
    %23 = vector.load %arg6[%c0_23, %c55] : memref<4x768xbf16, #tpu.memory_space<vmem>>, vector<4x512xbf16>
    %24 = arith.mulf %13, %15 : vector<1x512xf32>
    %25 = arith.extf %23 : vector<4x512xbf16> to vector<4x512xf32>
    %26 = vector.broadcast %24 : vector<1x512xf32> to vector<4x512xf32>
    %27 = arith.mulf %25, %26 : vector<4x512xf32>
    %28 = arith.truncf %27 : vector<4x512xf32> to vector<4x512xbf16>
    %c0_24 = arith.constant 0 : index
    %c0_25 = arith.constant 0 : index
    %29 = vector.load %arg8[%c0_24, %c0_25] : memref<216x512xbf16, #tpu.memory_space<vmem>>, vector<4x512xbf16>
    tpu.vector_store %arg8[%c0_24, %c0_25], %28 {strides = array<i32>} : memref<216x512xbf16, #tpu.memory_space<vmem>>, vector<4x512xbf16>,
    %c0_26 = arith.constant 0 : index
    %c56 = arith.constant 56 : index
    %30 = vector.load %arg6[%c0_26, %c56] : memref<4x768xbf16, #tpu.memory_space<vmem>>, vector<4x512xbf16>
    %31 = arith.extf %30 : vector<4x512xbf16> to vector<4x512xf32>
    %32 = vector.broadcast %13 : vector<1x512xf32> to vector<4x512xf32>
    %33 = arith.mulf %31, %32 : vector<4x512xf32>
    %34 = arith.truncf %33 : vector<4x512xf32> to vector<4x512xbf16>
    %c4_27 = arith.constant 4 : index
    %c0_28 = arith.constant 0 : index
    %35 = vector.load %arg8[%c4_27, %c0_28] : memref<216x512xbf16, #tpu.memory_space<vmem>>, vector<4x512xbf16>
    tpu.vector_store %arg8[%c4_27, %c0_28], %34 {strides = array<i32>} : memref<216x512xbf16, #tpu.memory_space<vmem>>, vector<4x512xbf16>,
    %c0_29 = arith.constant 0 : index
    %c57 = arith.constant 57 : index
    %36 = vector.load %arg6[%c0_29, %c57] : memref<4x768xbf16, #tpu.memory_space<vmem>>, vector<4x512xbf16>
    %37 = arith.mulf %13, %16 : vector<1x512xf32>
    %38 = arith.extf %36 : vector<4x512xbf16> to vector<4x512xf32>
    %39 = vector.broadcast %37 : vector<1x512xf32> to vector<4x512xf32>
    %40 = arith.mulf %38, %39 : vector<4x512xf32>
    %41 = arith.truncf %40 : vector<4x512xf32> to vector<4x512xbf16>
    %c8 = arith.constant 8 : index
    %c0_30 = arith.constant 0 : index
    %42 = vector.load %arg8[%c8, %c0_30] : memref<216x512xbf16, #tpu.memory_space<vmem>>, vector<4x512xbf16>
    tpu.vector_store %arg8[%c8, %c0_30], %41 {strides = array<i32>} : memref<216x512xbf16, #tpu.memory_space<vmem>>, vector<4x512xbf16>,
    %c0_31 = arith.constant 0 : index
    %c63 = arith.constant 63 : index
    %43 = vector.load %arg6[%c0_31, %c63] : memref<4x768xbf16, #tpu.memory_space<vmem>>, vector<4x512xbf16>
    %44 = arith.extf %43 : vector<4x512xbf16> to vector<4x512xf32>
    %45 = vector.broadcast %15 : vector<1x512xf32> to vector<4x512xf32>
    %46 = arith.mulf %44, %45 : vector<4x512xf32>
    %47 = arith.truncf %46 : vector<4x512xf32> to vector<4x512xbf16>
    %c12 = arith.constant 12 : index
    %c0_32 = arith.constant 0 : index
    %48 = vector.load %arg8[%c12, %c0_32] : memref<216x512xbf16, #tpu.memory_space<vmem>>, vector<4x512xbf16>
    tpu.vector_store %arg8[%c12, %c0_32], %47 {strides = array<i32>} : memref<216x512xbf16, #tpu.memory_space<vmem>>, vector<4x512xbf16>,
    %c0_33 = arith.constant 0 : index
    %c64 = arith.constant 64 : index
    %49 = vector.load %arg6[%c0_33, %c64] : memref<4x768xbf16, #tpu.memory_space<vmem>>, vector<4x512xbf16>
    %c16 = arith.constant 16 : index
    %c0_34 = arith.constant 0 : index
    %50 = vector.load %arg8[%c16, %c0_34] : memref<216x512xbf16, #tpu.memory_space<vmem>>, vector<4x512xbf16>
    tpu.vector_store %arg8[%c16, %c0_34], %49 {strides = array<i32>} : memref<216x512xbf16, #tpu.memory_space<vmem>>, vector<4x512xbf16>,
    %c0_35 = arith.constant 0 : index
    %c65 = arith.constant 65 : index
    %51 = vector.load %arg6[%c0_35, %c65] : memref<4x768xbf16, #tpu.memory_space<vmem>>, vector<4x512xbf16>
    %52 = arith.extf %51 : vector<4x512xbf16> to vector<4x512xf32>
    %53 = vector.broadcast %16 : vector<1x512xf32> to vector<4x512xf32>
    %54 = arith.mulf %52, %53 : vector<4x512xf32>
    %55 = arith.truncf %54 : vector<4x512xf32> to vector<4x512xbf16>
    %c20 = arith.constant 20 : index
    %c0_36 = arith.constant 0 : index
    %56 = vector.load %arg8[%c20, %c0_36] : memref<216x512xbf16, #tpu.memory_space<vmem>>, vector<4x512xbf16>
    tpu.vector_store %arg8[%c20, %c0_36], %55 {strides = array<i32>} : memref<216x512xbf16, #tpu.memory_space<vmem>>, vector<4x512xbf16>,
    %c0_37 = arith.constant 0 : index
    %c71 = arith.constant 71 : index
    %57 = vector.load %arg6[%c0_37, %c71] : memref<4x768xbf16, #tpu.memory_space<vmem>>, vector<4x512xbf16>
    %58 = arith.mulf %14, %15 : vector<1x512xf32>
    %59 = arith.extf %57 : vector<4x512xbf16> to vector<4x512xf32>
    %60 = vector.broadcast %58 : vector<1x512xf32> to vector<4x512xf32>
    %61 = arith.mulf %59, %60 : vector<4x512xf32>
    %62 = arith.truncf %61 : vector<4x512xf32> to vector<4x512xbf16>
    %c24 = arith.constant 24 : index
    %c0_38 = arith.constant 0 : index
    %63 = vector.load %arg8[%c24, %c0_38] : memref<216x512xbf16, #tpu.memory_space<vmem>>, vector<4x512xbf16>
    tpu.vector_store %arg8[%c24, %c0_38], %62 {strides = array<i32>} : memref<216x512xbf16, #tpu.memory_space<vmem>>, vector<4x512xbf16>,
    %c0_39 = arith.constant 0 : index
    %c72 = arith.constant 72 : index
    %64 = vector.load %arg6[%c0_39, %c72] : memref<4x768xbf16, #tpu.memory_space<vmem>>, vector<4x512xbf16>
    %65 = arith.extf %64 : vector<4x512xbf16> to vector<4x512xf32>
    %66 = vector.broadcast %14 : vector<1x512xf32> to vector<4x512xf32>
    %67 = arith.mulf %65, %66 : vector<4x512xf32>
    %68 = arith.truncf %67 : vector<4x512xf32> to vector<4x512xbf16>
    %c28 = arith.constant 28 : index
    %c0_40 = arith.constant 0 : index
    %69 = vector.load %arg8[%c28, %c0_40] : memref<216x512xbf16, #tpu.memory_space<vmem>>, vector<4x512xbf16>
    tpu.vector_store %arg8[%c28, %c0_40], %68 {strides = array<i32>} : memref<216x512xbf16, #tpu.memory_space<vmem>>, vector<4x512xbf16>,
    %c0_41 = arith.constant 0 : index
    %c73 = arith.constant 73 : index
    %70 = vector.load %arg6[%c0_41, %c73] : memref<4x768xbf16, #tpu.memory_space<vmem>>, vector<4x512xbf16>
    %71 = arith.mulf %14, %16 : vector<1x512xf32>
    %72 = arith.extf %70 : vector<4x512xbf16> to vector<4x512xf32>
    %73 = vector.broadcast %71 : vector<1x512xf32> to vector<4x512xf32>
    %74 = arith.mulf %72, %73 : vector<4x512xf32>
    %75 = arith.truncf %74 : vector<4x512xf32> to vector<4x512xbf16>
    %c32 = arith.constant 32 : index
    %c0_42 = arith.constant 0 : index
    %76 = vector.load %arg8[%c32, %c0_42] : memref<216x512xbf16, #tpu.memory_space<vmem>>, vector<4x512xbf16>
    tpu.vector_store %arg8[%c32, %c0_42], %75 {strides = array<i32>} : memref<216x512xbf16, #tpu.memory_space<vmem>>, vector<4x512xbf16>,
    %c0_43 = arith.constant 0 : index
    %c119 = arith.constant 119 : index
    %77 = vector.load %arg6[%c0_43, %c119] : memref<4x768xbf16, #tpu.memory_space<vmem>>, vector<4x512xbf16>
    %78 = arith.mulf %13, %15 : vector<1x512xf32>
    %79 = arith.extf %77 : vector<4x512xbf16> to vector<4x512xf32>
    %80 = vector.broadcast %78 : vector<1x512xf32> to vector<4x512xf32>
    %81 = arith.mulf %79, %80 : vector<4x512xf32>
    %82 = arith.truncf %81 : vector<4x512xf32> to vector<4x512xbf16>
    %c36 = arith.constant 36 : index
    %c0_44 = arith.constant 0 : index
    %83 = vector.load %arg8[%c36, %c0_44] : memref<216x512xbf16, #tpu.memory_space<vmem>>, vector<4x512xbf16>
    tpu.vector_store %arg8[%c36, %c0_44], %82 {strides = array<i32>} : memref<216x512xbf16, #tpu.memory_space<vmem>>, vector<4x512xbf16>,
    %c0_45 = arith.constant 0 : index
    %c120 = arith.constant 120 : index
    %84 = vector.load %arg6[%c0_45, %c120] : memref<4x768xbf16, #tpu.memory_space<vmem>>, vector<4x512xbf16>
    %85 = arith.extf %84 : vector<4x512xbf16> to vector<4x512xf32>
    %86 = vector.broadcast %13 : vector<1x512xf32> to vector<4x512xf32>
    %87 = arith.mulf %85, %86 : vector<4x512xf32>
    %88 = arith.truncf %87 : vector<4x512xf32> to vector<4x512xbf16>
    %c40 = arith.constant 40 : index
    %c0_46 = arith.constant 0 : index
    %89 = vector.load %arg8[%c40, %c0_46] : memref<216x512xbf16, #tpu.memory_space<vmem>>, vector<4x512xbf16>
    tpu.vector_store %arg8[%c40, %c0_46], %88 {strides = array<i32>} : memref<216x512xbf16, #tpu.memory_space<vmem>>, vector<4x512xbf16>,
    %c0_47 = arith.constant 0 : index
    %c121 = arith.constant 121 : index
    %90 = vector.load %arg6[%c0_47, %c121] : memref<4x768xbf16, #tpu.memory_space<vmem>>, vector<4x512xbf16>
    %91 = arith.mulf %13, %16 : vector<1x512xf32>
    %92 = arith.extf %90 : vector<4x512xbf16> to vector<4x512xf32>
    %93 = vector.broadcast %91 : vector<1x512xf32> to vector<4x512xf32>
    %94 = arith.mulf %92, %93 : vector<4x512xf32>
    %95 = arith.truncf %94 : vector<4x512xf32> to vector<4x512xbf16>
    %c44 = arith.constant 44 : index
    %c0_48 = arith.constant 0 : index
    %96 = vector.load %arg8[%c44, %c0_48] : memref<216x512xbf16, #tpu.memory_space<vmem>>, vector<4x512xbf16>
    tpu.vector_store %arg8[%c44, %c0_48], %95 {strides = array<i32>} : memref<216x512xbf16, #tpu.memory_space<vmem>>, vector<4x512xbf16>,
    %c0_49 = arith.constant 0 : index
    %c127 = arith.constant 127 : index
    %97 = vector.load %arg6[%c0_49, %c127] : memref<4x768xbf16, #tpu.memory_space<vmem>>, vector<4x512xbf16>
    %98 = arith.extf %97 : vector<4x512xbf16> to vector<4x512xf32>
    %99 = vector.broadcast %15 : vector<1x512xf32> to vector<4x512xf32>
    %100 = arith.mulf %98, %99 : vector<4x512xf32>
    %101 = arith.truncf %100 : vector<4x512xf32> to vector<4x512xbf16>
    %c48 = arith.constant 48 : index
    %c0_50 = arith.constant 0 : index
    %102 = vector.load %arg8[%c48, %c0_50] : memref<216x512xbf16, #tpu.memory_space<vmem>>, vector<4x512xbf16>
    tpu.vector_store %arg8[%c48, %c0_50], %101 {strides = array<i32>} : memref<216x512xbf16, #tpu.memory_space<vmem>>, vector<4x512xbf16>,
    %c0_51 = arith.constant 0 : index
    %c128 = arith.constant 128 : index
    %103 = vector.load %arg6[%c0_51, %c128] : memref<4x768xbf16, #tpu.memory_space<vmem>>, vector<4x512xbf16>
    %c52 = arith.constant 52 : index
    %c0_52 = arith.constant 0 : index
    %104 = vector.load %arg8[%c52, %c0_52] : memref<216x512xbf16, #tpu.memory_space<vmem>>, vector<4x512xbf16>
    tpu.vector_store %arg8[%c52, %c0_52], %103 {strides = array<i32>} : memref<216x512xbf16, #tpu.memory_space<vmem>>, vector<4x512xbf16>,
    %c0_53 = arith.constant 0 : index
    %c129 = arith.constant 129 : index
    %105 = vector.load %arg6[%c0_53, %c129] : memref<4x768xbf16, #tpu.memory_space<vmem>>, vector<4x512xbf16>
    %106 = arith.extf %105 : vector<4x512xbf16> to vector<4x512xf32>
    %107 = vector.broadcast %16 : vector<1x512xf32> to vector<4x512xf32>
    %108 = arith.mulf %106, %107 : vector<4x512xf32>
    %109 = arith.truncf %108 : vector<4x512xf32> to vector<4x512xbf16>
    %c56_54 = arith.constant 56 : index
    %c0_55 = arith.constant 0 : index
    %110 = vector.load %arg8[%c56_54, %c0_55] : memref<216x512xbf16, #tpu.memory_space<vmem>>, vector<4x512xbf16>
    tpu.vector_store %arg8[%c56_54, %c0_55], %109 {strides = array<i32>} : memref<216x512xbf16, #tpu.memory_space<vmem>>, vector<4x512xbf16>,
    %c0_56 = arith.constant 0 : index
    %c135 = arith.constant 135 : index
    %111 = vector.load %arg6[%c0_56, %c135] : memref<4x768xbf16, #tpu.memory_space<vmem>>, vector<4x512xbf16>
    %112 = arith.mulf %14, %15 : vector<1x512xf32>
    %113 = arith.extf %111 : vector<4x512xbf16> to vector<4x512xf32>
    %114 = vector.broadcast %112 : vector<1x512xf32> to vector<4x512xf32>
    %115 = arith.mulf %113, %114 : vector<4x512xf32>
    %116 = arith.truncf %115 : vector<4x512xf32> to vector<4x512xbf16>
    %c60 = arith.constant 60 : index
    %c0_57 = arith.constant 0 : index
    %117 = vector.load %arg8[%c60, %c0_57] : memref<216x512xbf16, #tpu.memory_space<vmem>>, vector<4x512xbf16>
    tpu.vector_store %arg8[%c60, %c0_57], %116 {strides = array<i32>} : memref<216x512xbf16, #tpu.memory_space<vmem>>, vector<4x512xbf16>,
    %c0_58 = arith.constant 0 : index
    %c136 = arith.constant 136 : index
    %118 = vector.load %arg6[%c0_58, %c136] : memref<4x768xbf16, #tpu.memory_space<vmem>>, vector<4x512xbf16>
    %119 = arith.extf %118 : vector<4x512xbf16> to vector<4x512xf32>
    %120 = vector.broadcast %14 : vector<1x512xf32> to vector<4x512xf32>
    %121 = arith.mulf %119, %120 : vector<4x512xf32>
    %122 = arith.truncf %121 : vector<4x512xf32> to vector<4x512xbf16>
    %c64_59 = arith.constant 64 : index
    %c0_60 = arith.constant 0 : index
    %123 = vector.load %arg8[%c64_59, %c0_60] : memref<216x512xbf16, #tpu.memory_space<vmem>>, vector<4x512xbf16>
    tpu.vector_store %arg8[%c64_59, %c0_60], %122 {strides = array<i32>} : memref<216x512xbf16, #tpu.memory_space<vmem>>, vector<4x512xbf16>,
    %c0_61 = arith.constant 0 : index
    %c137 = arith.constant 137 : index
    %124 = vector.load %arg6[%c0_61, %c137] : memref<4x768xbf16, #tpu.memory_space<vmem>>, vector<4x512xbf16>
    %125 = arith.mulf %14, %16 : vector<1x512xf32>
    %126 = arith.extf %124 : vector<4x512xbf16> to vector<4x512xf32>
    %127 = vector.broadcast %125 : vector<1x512xf32> to vector<4x512xf32>
    %128 = arith.mulf %126, %127 : vector<4x512xf32>
    %129 = arith.truncf %128 : vector<4x512xf32> to vector<4x512xbf16>
    %c68 = arith.constant 68 : index
    %c0_62 = arith.constant 0 : index
    %130 = vector.load %arg8[%c68, %c0_62] : memref<216x512xbf16, #tpu.memory_space<vmem>>, vector<4x512xbf16>
    tpu.vector_store %arg8[%c68, %c0_62], %129 {strides = array<i32>} : memref<216x512xbf16, #tpu.memory_space<vmem>>, vector<4x512xbf16>,
    %c0_63 = arith.constant 0 : index
    %c183 = arith.constant 183 : index
    %131 = vector.load %arg6[%c0_63, %c183] : memref<4x768xbf16, #tpu.memory_space<vmem>>, vector<4x512xbf16>
    %132 = arith.mulf %13, %15 : vector<1x512xf32>
    %133 = arith.extf %131 : vector<4x512xbf16> to vector<4x512xf32>
    %134 = vector.broadcast %132 : vector<1x512xf32> to vector<4x512xf32>
    %135 = arith.mulf %133, %134 : vector<4x512xf32>
    %136 = arith.truncf %135 : vector<4x512xf32> to vector<4x512xbf16>
    %c72_64 = arith.constant 72 : index
    %c0_65 = arith.constant 0 : index
    %137 = vector.load %arg8[%c72_64, %c0_65] : memref<216x512xbf16, #tpu.memory_space<vmem>>, vector<4x512xbf16>
    tpu.vector_store %arg8[%c72_64, %c0_65], %136 {strides = array<i32>} : memref<216x512xbf16, #tpu.memory_space<vmem>>, vector<4x512xbf16>,
    %c0_66 = arith.constant 0 : index
    %c184 = arith.constant 184 : index
    %138 = vector.load %arg6[%c0_66, %c184] : memref<4x768xbf16, #tpu.memory_space<vmem>>, vector<4x512xbf16>
    %139 = arith.extf %138 : vector<4x512xbf16> to vector<4x512xf32>
    %140 = vector.broadcast %13 : vector<1x512xf32> to vector<4x512xf32>
    %141 = arith.mulf %139, %140 : vector<4x512xf32>
    %142 = arith.truncf %141 : vector<4x512xf32> to vector<4x512xbf16>
    %c76 = arith.constant 76 : index
    %c0_67 = arith.constant 0 : index
    %143 = vector.load %arg8[%c76, %c0_67] : memref<216x512xbf16, #tpu.memory_space<vmem>>, vector<4x512xbf16>
    tpu.vector_store %arg8[%c76, %c0_67], %142 {strides = array<i32>} : memref<216x512xbf16, #tpu.memory_space<vmem>>, vector<4x512xbf16>,
    %c0_68 = arith.constant 0 : index
    %c185 = arith.constant 185 : index
    %144 = vector.load %arg6[%c0_68, %c185] : memref<4x768xbf16, #tpu.memory_space<vmem>>, vector<4x512xbf16>
    %145 = arith.mulf %13, %16 : vector<1x512xf32>
    %146 = arith.extf %144 : vector<4x512xbf16> to vector<4x512xf32>
    %147 = vector.broadcast %145 : vector<1x512xf32> to vector<4x512xf32>
    %148 = arith.mulf %146, %147 : vector<4x512xf32>
    %149 = arith.truncf %148 : vector<4x512xf32> to vector<4x512xbf16>
    %c80 = arith.constant 80 : index
    %c0_69 = arith.constant 0 : index
    %150 = vector.load %arg8[%c80, %c0_69] : memref<216x512xbf16, #tpu.memory_space<vmem>>, vector<4x512xbf16>
    tpu.vector_store %arg8[%c80, %c0_69], %149 {strides = array<i32>} : memref<216x512xbf16, #tpu.memory_space<vmem>>, vector<4x512xbf16>,
    %c0_70 = arith.constant 0 : index
    %c191 = arith.constant 191 : index
    %151 = vector.load %arg6[%c0_70, %c191] : memref<4x768xbf16, #tpu.memory_space<vmem>>, vector<4x512xbf16>
    %152 = arith.extf %151 : vector<4x512xbf16> to vector<4x512xf32>
    %153 = vector.broadcast %15 : vector<1x512xf32> to vector<4x512xf32>
    %154 = arith.mulf %152, %153 : vector<4x512xf32>
    %155 = arith.truncf %154 : vector<4x512xf32> to vector<4x512xbf16>
    %c84 = arith.constant 84 : index
    %c0_71 = arith.constant 0 : index
    %156 = vector.load %arg8[%c84, %c0_71] : memref<216x512xbf16, #tpu.memory_space<vmem>>, vector<4x512xbf16>
    tpu.vector_store %arg8[%c84, %c0_71], %155 {strides = array<i32>} : memref<216x512xbf16, #tpu.memory_space<vmem>>, vector<4x512xbf16>,
    %c0_72 = arith.constant 0 : index
    %c192 = arith.constant 192 : index
    %157 = vector.load %arg6[%c0_72, %c192] : memref<4x768xbf16, #tpu.memory_space<vmem>>, vector<4x512xbf16>
    %c88 = arith.constant 88 : index
    %c0_73 = arith.constant 0 : index
    %158 = vector.load %arg8[%c88, %c0_73] : memref<216x512xbf16, #tpu.memory_space<vmem>>, vector<4x512xbf16>
    tpu.vector_store %arg8[%c88, %c0_73], %157 {strides = array<i32>} : memref<216x512xbf16, #tpu.memory_space<vmem>>, vector<4x512xbf16>,
    %c0_74 = arith.constant 0 : index
    %c193 = arith.constant 193 : index
    %159 = vector.load %arg6[%c0_74, %c193] : memref<4x768xbf16, #tpu.memory_space<vmem>>, vector<4x512xbf16>
    %160 = arith.extf %159 : vector<4x512xbf16> to vector<4x512xf32>
    %161 = vector.broadcast %16 : vector<1x512xf32> to vector<4x512xf32>
    %162 = arith.mulf %160, %161 : vector<4x512xf32>
    %163 = arith.truncf %162 : vector<4x512xf32> to vector<4x512xbf16>
    %c92 = arith.constant 92 : index
    %c0_75 = arith.constant 0 : index
    %164 = vector.load %arg8[%c92, %c0_75] : memref<216x512xbf16, #tpu.memory_space<vmem>>, vector<4x512xbf16>
    tpu.vector_store %arg8[%c92, %c0_75], %163 {strides = array<i32>} : memref<216x512xbf16, #tpu.memory_space<vmem>>, vector<4x512xbf16>,
    %c0_76 = arith.constant 0 : index
    %c199 = arith.constant 199 : index
    %165 = vector.load %arg6[%c0_76, %c199] : memref<4x768xbf16, #tpu.memory_space<vmem>>, vector<4x512xbf16>
    %166 = arith.mulf %14, %15 : vector<1x512xf32>
    %167 = arith.extf %165 : vector<4x512xbf16> to vector<4x512xf32>
    %168 = vector.broadcast %166 : vector<1x512xf32> to vector<4x512xf32>
    %169 = arith.mulf %167, %168 : vector<4x512xf32>
    %170 = arith.truncf %169 : vector<4x512xf32> to vector<4x512xbf16>
    %c96 = arith.constant 96 : index
    %c0_77 = arith.constant 0 : index
    %171 = vector.load %arg8[%c96, %c0_77] : memref<216x512xbf16, #tpu.memory_space<vmem>>, vector<4x512xbf16>
    tpu.vector_store %arg8[%c96, %c0_77], %170 {strides = array<i32>} : memref<216x512xbf16, #tpu.memory_space<vmem>>, vector<4x512xbf16>,
    %c0_78 = arith.constant 0 : index
    %c200 = arith.constant 200 : index
    %172 = vector.load %arg6[%c0_78, %c200] : memref<4x768xbf16, #tpu.memory_space<vmem>>, vector<4x512xbf16>
    %173 = arith.extf %172 : vector<4x512xbf16> to vector<4x512xf32>
    %174 = vector.broadcast %14 : vector<1x512xf32> to vector<4x512xf32>
    %175 = arith.mulf %173, %174 : vector<4x512xf32>
    %176 = arith.truncf %175 : vector<4x512xf32> to vector<4x512xbf16>
    %c100 = arith.constant 100 : index
    %c0_79 = arith.constant 0 : index
    %177 = vector.load %arg8[%c100, %c0_79] : memref<216x512xbf16, #tpu.memory_space<vmem>>, vector<4x512xbf16>
    tpu.vector_store %arg8[%c100, %c0_79], %176 {strides = array<i32>} : memref<216x512xbf16, #tpu.memory_space<vmem>>, vector<4x512xbf16>,
    %c0_80 = arith.constant 0 : index
    %c201 = arith.constant 201 : index
    %178 = vector.load %arg6[%c0_80, %c201] : memref<4x768xbf16, #tpu.memory_space<vmem>>, vector<4x512xbf16>
    %179 = arith.mulf %14, %16 : vector<1x512xf32>
    %180 = arith.extf %178 : vector<4x512xbf16> to vector<4x512xf32>
    %181 = vector.broadcast %179 : vector<1x512xf32> to vector<4x512xf32>
    %182 = arith.mulf %180, %181 : vector<4x512xf32>
    %183 = arith.truncf %182 : vector<4x512xf32> to vector<4x512xbf16>
    %c104 = arith.constant 104 : index
    %c0_81 = arith.constant 0 : index
    %184 = vector.load %arg8[%c104, %c0_81] : memref<216x512xbf16, #tpu.memory_space<vmem>>, vector<4x512xbf16>
    tpu.vector_store %arg8[%c104, %c0_81], %183 {strides = array<i32>} : memref<216x512xbf16, #tpu.memory_space<vmem>>, vector<4x512xbf16>,
    %c0_82 = arith.constant 0 : index
    %c0_83 = arith.constant 0 : index
    %185 = vector.load %arg3[%c0_82, %c0_83] : memref<8x108xbf16, #tpu.memory_space<vmem>>, vector<8x108xbf16>
    %c0_84 = arith.constant 0 : index
    %c0_85 = arith.constant 0 : index
    %186 = vector.load %arg8[%c0_84, %c0_85] : memref<216x512xbf16, #tpu.memory_space<vmem>>, vector<108x512xbf16>
    %cst_86 = arith.constant dense<0.000000e+00> : vector<8x512xf32>
    %187 = tpu.matmul %185, %186, %cst_86 {dimension_numbers = #tpu.dot_dimension_numbers<[1], [0], [0], [1], [0, 0, 1, 1], [], []>} : vector<8x108xbf16>, vector<108x512xbf16>, vector<8x512xf32> -> vector<8x512xf32>
    %188 = vector.extract_strided_slice %187 {offsets = [0, 0], sizes = [8, 1], strides = [1, 1]} : vector<8x512xf32> to vector<8x1xf32>
    %189 = vector.broadcast %188 : vector<8x1xf32> to vector<8x512xf32>
    %190 = arith.subf %187, %189 : vector<8x512xf32>
    %191 = vector.broadcast %17 : vector<1x512xf32> to vector<8x512xf32>
    %192 = arith.mulf %190, %191 : vector<8x512xf32>
    %cst_87 = arith.constant dense<0.000000e+00> : vector<8xf32>
    %193 = vector.multi_reduction <add>, %192, %cst_87 [1] : vector<8x512xf32> to vector<8xf32>
    %194 = vector.shape_cast %193 : vector<8xf32> to vector<8x1xf32>
    %cst_88 = arith.constant 0.001953125 : f32
    %195 = vector.broadcast %cst_88 : f32 to vector<8x1xf32>
    %196 = arith.mulf %194, %195 : vector<8x1xf32>
    %197 = arith.mulf %192, %192 : vector<8x512xf32>
    %cst_89 = arith.constant dense<0.000000e+00> : vector<8xf32>
    %198 = vector.multi_reduction <add>, %197, %cst_89 [1] : vector<8x512xf32> to vector<8xf32>
    %199 = vector.shape_cast %198 : vector<8xf32> to vector<8x1xf32>
    %cst_90 = arith.constant 0.001953125 : f32
    %200 = vector.broadcast %cst_90 : f32 to vector<8x1xf32>
    %201 = arith.mulf %199, %200 : vector<8x1xf32>
    %202 = arith.addf %188, %196 : vector<8x1xf32>
    %203 = arith.mulf %196, %196 : vector<8x1xf32>
    %204 = arith.subf %201, %203 : vector<8x1xf32>
    %205 = vector.broadcast %202 : vector<8x1xf32> to vector<8x512xf32>
    %206 = arith.subf %187, %205 : vector<8x512xf32>
    %cst_91 = arith.constant 9.99999974E-6 : f32
    %207 = vector.broadcast %cst_91 : f32 to vector<8x1xf32>
    %208 = arith.addf %204, %207 : vector<8x1xf32>
    %209 = math.rsqrt %208 : vector<8x1xf32>
    %210 = vector.broadcast %209 : vector<8x1xf32> to vector<8x512xf32>
    %211 = arith.mulf %206, %210 : vector<8x512xf32>
    %cst_92 = arith.constant 0.000000e+00 : f32
    %212 = vector.broadcast %cst_92 : f32 to vector<8x512xf32>
    %213 = arith.cmpf ogt, %211, %212 : vector<8x512xf32>
    %cst_93 = arith.constant 0.00999999977 : f32
    %214 = vector.broadcast %cst_93 : f32 to vector<8x512xf32>
    %215 = arith.mulf %214, %211 : vector<8x512xf32>
    %216 = arith.select %213, %211, %215 : vector<8x512xi1>, vector<8x512xf32>
    %217 = vector.broadcast %17 : vector<1x512xf32> to vector<8x512xf32>
    %218 = arith.mulf %216, %217 : vector<8x512xf32>
    %219 = arith.truncf %218 : vector<8x512xf32> to vector<8x512xbf16>
    %c0_94 = arith.constant 0 : index
    %c128_95 = arith.constant 128 : index
    %220 = vector.load %arg7[%c0_94, %c128_95] : memref<8x768xbf16, #tpu.memory_space<vmem>>, vector<8x512xbf16>
    tpu.vector_store %arg7[%c0_94, %c128_95], %219 {strides = array<i32>} : memref<8x768xbf16, #tpu.memory_space<vmem>>, vector<8x512xbf16>,
    %c0_96 = arith.constant 0 : index
    %c55_97 = arith.constant 55 : index
    %221 = vector.load %arg7[%c0_96, %c55_97] : memref<8x768xbf16, #tpu.memory_space<vmem>>, vector<8x512xbf16>
    %222 = arith.mulf %13, %15 : vector<1x512xf32>
    %223 = arith.extf %221 : vector<8x512xbf16> to vector<8x512xf32>
    %224 = vector.broadcast %222 : vector<1x512xf32> to vector<8x512xf32>
    %225 = arith.mulf %223, %224 : vector<8x512xf32>
    %226 = arith.truncf %225 : vector<8x512xf32> to vector<8x512xbf16>
    %c0_98 = arith.constant 0 : index
    %c0_99 = arith.constant 0 : index
    %227 = vector.load %arg8[%c0_98, %c0_99] : memref<216x512xbf16, #tpu.memory_space<vmem>>, vector<8x512xbf16>
    tpu.vector_store %arg8[%c0_98, %c0_99], %226 {strides = array<i32>} : memref<216x512xbf16, #tpu.memory_space<vmem>>, vector<8x512xbf16>,
    %c0_100 = arith.constant 0 : index
    %c56_101 = arith.constant 56 : index
    %228 = vector.load %arg7[%c0_100, %c56_101] : memref<8x768xbf16, #tpu.memory_space<vmem>>, vector<8x512xbf16>
    %229 = arith.extf %228 : vector<8x512xbf16> to vector<8x512xf32>
    %230 = vector.broadcast %13 : vector<1x512xf32> to vector<8x512xf32>
    %231 = arith.mulf %229, %230 : vector<8x512xf32>
    %232 = arith.truncf %231 : vector<8x512xf32> to vector<8x512xbf16>
    %c8_102 = arith.constant 8 : index
    %c0_103 = arith.constant 0 : index
    %233 = vector.load %arg8[%c8_102, %c0_103] : memref<216x512xbf16, #tpu.memory_space<vmem>>, vector<8x512xbf16>
    tpu.vector_store %arg8[%c8_102, %c0_103], %232 {strides = array<i32>} : memref<216x512xbf16, #tpu.memory_space<vmem>>, vector<8x512xbf16>,
    %c0_104 = arith.constant 0 : index
    %c57_105 = arith.constant 57 : index
    %234 = vector.load %arg7[%c0_104, %c57_105] : memref<8x768xbf16, #tpu.memory_space<vmem>>, vector<8x512xbf16>
    %235 = arith.mulf %13, %16 : vector<1x512xf32>
    %236 = arith.extf %234 : vector<8x512xbf16> to vector<8x512xf32>
    %237 = vector.broadcast %235 : vector<1x512xf32> to vector<8x512xf32>
    %238 = arith.mulf %236, %237 : vector<8x512xf32>
    %239 = arith.truncf %238 : vector<8x512xf32> to vector<8x512xbf16>
    %c16_106 = arith.constant 16 : index
    %c0_107 = arith.constant 0 : index
    %240 = vector.load %arg8[%c16_106, %c0_107] : memref<216x512xbf16, #tpu.memory_space<vmem>>, vector<8x512xbf16>
    tpu.vector_store %arg8[%c16_106, %c0_107], %239 {strides = array<i32>} : memref<216x512xbf16, #tpu.memory_space<vmem>>, vector<8x512xbf16>,
    %c0_108 = arith.constant 0 : index
    %c63_109 = arith.constant 63 : index
    %241 = vector.load %arg7[%c0_108, %c63_109] : memref<8x768xbf16, #tpu.memory_space<vmem>>, vector<8x512xbf16>
    %242 = arith.extf %241 : vector<8x512xbf16> to vector<8x512xf32>
    %243 = vector.broadcast %15 : vector<1x512xf32> to vector<8x512xf32>
    %244 = arith.mulf %242, %243 : vector<8x512xf32>
    %245 = arith.truncf %244 : vector<8x512xf32> to vector<8x512xbf16>
    %c24_110 = arith.constant 24 : index
    %c0_111 = arith.constant 0 : index
    %246 = vector.load %arg8[%c24_110, %c0_111] : memref<216x512xbf16, #tpu.memory_space<vmem>>, vector<8x512xbf16>
    tpu.vector_store %arg8[%c24_110, %c0_111], %245 {strides = array<i32>} : memref<216x512xbf16, #tpu.memory_space<vmem>>, vector<8x512xbf16>,
    %c0_112 = arith.constant 0 : index
    %c64_113 = arith.constant 64 : index
    %247 = vector.load %arg7[%c0_112, %c64_113] : memref<8x768xbf16, #tpu.memory_space<vmem>>, vector<8x512xbf16>
    %c32_114 = arith.constant 32 : index
    %c0_115 = arith.constant 0 : index
    %248 = vector.load %arg8[%c32_114, %c0_115] : memref<216x512xbf16, #tpu.memory_space<vmem>>, vector<8x512xbf16>
    tpu.vector_store %arg8[%c32_114, %c0_115], %247 {strides = array<i32>} : memref<216x512xbf16, #tpu.memory_space<vmem>>, vector<8x512xbf16>,
    %c0_116 = arith.constant 0 : index
    %c65_117 = arith.constant 65 : index
    %249 = vector.load %arg7[%c0_116, %c65_117] : memref<8x768xbf16, #tpu.memory_space<vmem>>, vector<8x512xbf16>
    %250 = arith.extf %249 : vector<8x512xbf16> to vector<8x512xf32>
    %251 = vector.broadcast %16 : vector<1x512xf32> to vector<8x512xf32>
    %252 = arith.mulf %250, %251 : vector<8x512xf32>
    %253 = arith.truncf %252 : vector<8x512xf32> to vector<8x512xbf16>
    %c40_118 = arith.constant 40 : index
    %c0_119 = arith.constant 0 : index
    %254 = vector.load %arg8[%c40_118, %c0_119] : memref<216x512xbf16, #tpu.memory_space<vmem>>, vector<8x512xbf16>
    tpu.vector_store %arg8[%c40_118, %c0_119], %253 {strides = array<i32>} : memref<216x512xbf16, #tpu.memory_space<vmem>>, vector<8x512xbf16>,
    %c0_120 = arith.constant 0 : index
    %c71_121 = arith.constant 71 : index
    %255 = vector.load %arg7[%c0_120, %c71_121] : memref<8x768xbf16, #tpu.memory_space<vmem>>, vector<8x512xbf16>
    %256 = arith.mulf %14, %15 : vector<1x512xf32>
    %257 = arith.extf %255 : vector<8x512xbf16> to vector<8x512xf32>
    %258 = vector.broadcast %256 : vector<1x512xf32> to vector<8x512xf32>
    %259 = arith.mulf %257, %258 : vector<8x512xf32>
    %260 = arith.truncf %259 : vector<8x512xf32> to vector<8x512xbf16>
    %c48_122 = arith.constant 48 : index
    %c0_123 = arith.constant 0 : index
    %261 = vector.load %arg8[%c48_122, %c0_123] : memref<216x512xbf16, #tpu.memory_space<vmem>>, vector<8x512xbf16>
    tpu.vector_store %arg8[%c48_122, %c0_123], %260 {strides = array<i32>} : memref<216x512xbf16, #tpu.memory_space<vmem>>, vector<8x512xbf16>,
    %c0_124 = arith.constant 0 : index
    %c72_125 = arith.constant 72 : index
    %262 = vector.load %arg7[%c0_124, %c72_125] : memref<8x768xbf16, #tpu.memory_space<vmem>>, vector<8x512xbf16>
    %263 = arith.extf %262 : vector<8x512xbf16> to vector<8x512xf32>
    %264 = vector.broadcast %14 : vector<1x512xf32> to vector<8x512xf32>
    %265 = arith.mulf %263, %264 : vector<8x512xf32>
    %266 = arith.truncf %265 : vector<8x512xf32> to vector<8x512xbf16>
    %c56_126 = arith.constant 56 : index
    %c0_127 = arith.constant 0 : index
    %267 = vector.load %arg8[%c56_126, %c0_127] : memref<216x512xbf16, #tpu.memory_space<vmem>>, vector<8x512xbf16>
    tpu.vector_store %arg8[%c56_126, %c0_127], %266 {strides = array<i32>} : memref<216x512xbf16, #tpu.memory_space<vmem>>, vector<8x512xbf16>,
    %c0_128 = arith.constant 0 : index
    %c73_129 = arith.constant 73 : index
    %268 = vector.load %arg7[%c0_128, %c73_129] : memref<8x768xbf16, #tpu.memory_space<vmem>>, vector<8x512xbf16>
    %269 = arith.mulf %14, %16 : vector<1x512xf32>
    %270 = arith.extf %268 : vector<8x512xbf16> to vector<8x512xf32>
    %271 = vector.broadcast %269 : vector<1x512xf32> to vector<8x512xf32>
    %272 = arith.mulf %270, %271 : vector<8x512xf32>
    %273 = arith.truncf %272 : vector<8x512xf32> to vector<8x512xbf16>
    %c64_130 = arith.constant 64 : index
    %c0_131 = arith.constant 0 : index
    %274 = vector.load %arg8[%c64_130, %c0_131] : memref<216x512xbf16, #tpu.memory_space<vmem>>, vector<8x512xbf16>
    tpu.vector_store %arg8[%c64_130, %c0_131], %273 {strides = array<i32>} : memref<216x512xbf16, #tpu.memory_space<vmem>>, vector<8x512xbf16>,
    %c0_132 = arith.constant 0 : index
    %c119_133 = arith.constant 119 : index
    %275 = vector.load %arg7[%c0_132, %c119_133] : memref<8x768xbf16, #tpu.memory_space<vmem>>, vector<8x512xbf16>
    %276 = arith.mulf %13, %15 : vector<1x512xf32>
    %277 = arith.extf %275 : vector<8x512xbf16> to vector<8x512xf32>
    %278 = vector.broadcast %276 : vector<1x512xf32> to vector<8x512xf32>
    %279 = arith.mulf %277, %278 : vector<8x512xf32>
    %280 = arith.truncf %279 : vector<8x512xf32> to vector<8x512xbf16>
    %c72_134 = arith.constant 72 : index
    %c0_135 = arith.constant 0 : index
    %281 = vector.load %arg8[%c72_134, %c0_135] : memref<216x512xbf16, #tpu.memory_space<vmem>>, vector<8x512xbf16>
    tpu.vector_store %arg8[%c72_134, %c0_135], %280 {strides = array<i32>} : memref<216x512xbf16, #tpu.memory_space<vmem>>, vector<8x512xbf16>,
    %c0_136 = arith.constant 0 : index
    %c120_137 = arith.constant 120 : index
    %282 = vector.load %arg7[%c0_136, %c120_137] : memref<8x768xbf16, #tpu.memory_space<vmem>>, vector<8x512xbf16>
    %283 = arith.extf %282 : vector<8x512xbf16> to vector<8x512xf32>
    %284 = vector.broadcast %13 : vector<1x512xf32> to vector<8x512xf32>
    %285 = arith.mulf %283, %284 : vector<8x512xf32>
    %286 = arith.truncf %285 : vector<8x512xf32> to vector<8x512xbf16>
    %c80_138 = arith.constant 80 : index
    %c0_139 = arith.constant 0 : index
    %287 = vector.load %arg8[%c80_138, %c0_139] : memref<216x512xbf16, #tpu.memory_space<vmem>>, vector<8x512xbf16>
    tpu.vector_store %arg8[%c80_138, %c0_139], %286 {strides = array<i32>} : memref<216x512xbf16, #tpu.memory_space<vmem>>, vector<8x512xbf16>,
    %c0_140 = arith.constant 0 : index
    %c121_141 = arith.constant 121 : index
    %288 = vector.load %arg7[%c0_140, %c121_141] : memref<8x768xbf16, #tpu.memory_space<vmem>>, vector<8x512xbf16>
    %289 = arith.mulf %13, %16 : vector<1x512xf32>
    %290 = arith.extf %288 : vector<8x512xbf16> to vector<8x512xf32>
    %291 = vector.broadcast %289 : vector<1x512xf32> to vector<8x512xf32>
    %292 = arith.mulf %290, %291 : vector<8x512xf32>
    %293 = arith.truncf %292 : vector<8x512xf32> to vector<8x512xbf16>
    %c88_142 = arith.constant 88 : index
    %c0_143 = arith.constant 0 : index
    %294 = vector.load %arg8[%c88_142, %c0_143] : memref<216x512xbf16, #tpu.memory_space<vmem>>, vector<8x512xbf16>
    tpu.vector_store %arg8[%c88_142, %c0_143], %293 {strides = array<i32>} : memref<216x512xbf16, #tpu.memory_space<vmem>>, vector<8x512xbf16>,
    %c0_144 = arith.constant 0 : index
    %c127_145 = arith.constant 127 : index
    %295 = vector.load %arg7[%c0_144, %c127_145] : memref<8x768xbf16, #tpu.memory_space<vmem>>, vector<8x512xbf16>
    %296 = arith.extf %295 : vector<8x512xbf16> to vector<8x512xf32>
    %297 = vector.broadcast %15 : vector<1x512xf32> to vector<8x512xf32>
    %298 = arith.mulf %296, %297 : vector<8x512xf32>
    %299 = arith.truncf %298 : vector<8x512xf32> to vector<8x512xbf16>
    %c96_146 = arith.constant 96 : index
    %c0_147 = arith.constant 0 : index
    %300 = vector.load %arg8[%c96_146, %c0_147] : memref<216x512xbf16, #tpu.memory_space<vmem>>, vector<8x512xbf16>
    tpu.vector_store %arg8[%c96_146, %c0_147], %299 {strides = array<i32>} : memref<216x512xbf16, #tpu.memory_space<vmem>>, vector<8x512xbf16>,
    %c0_148 = arith.constant 0 : index
    %c128_149 = arith.constant 128 : index
    %301 = vector.load %arg7[%c0_148, %c128_149] : memref<8x768xbf16, #tpu.memory_space<vmem>>, vector<8x512xbf16>
    %c104_150 = arith.constant 104 : index
    %c0_151 = arith.constant 0 : index
    %302 = vector.load %arg8[%c104_150, %c0_151] : memref<216x512xbf16, #tpu.memory_space<vmem>>, vector<8x512xbf16>
    tpu.vector_store %arg8[%c104_150, %c0_151], %301 {strides = array<i32>} : memref<216x512xbf16, #tpu.memory_space<vmem>>, vector<8x512xbf16>,
    %c0_152 = arith.constant 0 : index
    %c129_153 = arith.constant 129 : index
    %303 = vector.load %arg7[%c0_152, %c129_153] : memref<8x768xbf16, #tpu.memory_space<vmem>>, vector<8x512xbf16>
    %304 = arith.extf %303 : vector<8x512xbf16> to vector<8x512xf32>
    %305 = vector.broadcast %16 : vector<1x512xf32> to vector<8x512xf32>
    %306 = arith.mulf %304, %305 : vector<8x512xf32>
    %307 = arith.truncf %306 : vector<8x512xf32> to vector<8x512xbf16>
    %c112 = arith.constant 112 : index
    %c0_154 = arith.constant 0 : index
    %308 = vector.load %arg8[%c112, %c0_154] : memref<216x512xbf16, #tpu.memory_space<vmem>>, vector<8x512xbf16>
    tpu.vector_store %arg8[%c112, %c0_154], %307 {strides = array<i32>} : memref<216x512xbf16, #tpu.memory_space<vmem>>, vector<8x512xbf16>,
    %c0_155 = arith.constant 0 : index
    %c135_156 = arith.constant 135 : index
    %309 = vector.load %arg7[%c0_155, %c135_156] : memref<8x768xbf16, #tpu.memory_space<vmem>>, vector<8x512xbf16>
    %310 = arith.mulf %14, %15 : vector<1x512xf32>
    %311 = arith.extf %309 : vector<8x512xbf16> to vector<8x512xf32>
    %312 = vector.broadcast %310 : vector<1x512xf32> to vector<8x512xf32>
    %313 = arith.mulf %311, %312 : vector<8x512xf32>
    %314 = arith.truncf %313 : vector<8x512xf32> to vector<8x512xbf16>
    %c120_157 = arith.constant 120 : index
    %c0_158 = arith.constant 0 : index
    %315 = vector.load %arg8[%c120_157, %c0_158] : memref<216x512xbf16, #tpu.memory_space<vmem>>, vector<8x512xbf16>
    tpu.vector_store %arg8[%c120_157, %c0_158], %314 {strides = array<i32>} : memref<216x512xbf16, #tpu.memory_space<vmem>>, vector<8x512xbf16>,
    %c0_159 = arith.constant 0 : index
    %c136_160 = arith.constant 136 : index
    %316 = vector.load %arg7[%c0_159, %c136_160] : memref<8x768xbf16, #tpu.memory_space<vmem>>, vector<8x512xbf16>
    %317 = arith.extf %316 : vector<8x512xbf16> to vector<8x512xf32>
    %318 = vector.broadcast %14 : vector<1x512xf32> to vector<8x512xf32>
    %319 = arith.mulf %317, %318 : vector<8x512xf32>
    %320 = arith.truncf %319 : vector<8x512xf32> to vector<8x512xbf16>
    %c128_161 = arith.constant 128 : index
    %c0_162 = arith.constant 0 : index
    %321 = vector.load %arg8[%c128_161, %c0_162] : memref<216x512xbf16, #tpu.memory_space<vmem>>, vector<8x512xbf16>
    tpu.vector_store %arg8[%c128_161, %c0_162], %320 {strides = array<i32>} : memref<216x512xbf16, #tpu.memory_space<vmem>>, vector<8x512xbf16>,
    %c0_163 = arith.constant 0 : index
    %c137_164 = arith.constant 137 : index
    %322 = vector.load %arg7[%c0_163, %c137_164] : memref<8x768xbf16, #tpu.memory_space<vmem>>, vector<8x512xbf16>
    %323 = arith.mulf %14, %16 : vector<1x512xf32>
    %324 = arith.extf %322 : vector<8x512xbf16> to vector<8x512xf32>
    %325 = vector.broadcast %323 : vector<1x512xf32> to vector<8x512xf32>
    %326 = arith.mulf %324, %325 : vector<8x512xf32>
    %327 = arith.truncf %326 : vector<8x512xf32> to vector<8x512xbf16>
    %c136_165 = arith.constant 136 : index
    %c0_166 = arith.constant 0 : index
    %328 = vector.load %arg8[%c136_165, %c0_166] : memref<216x512xbf16, #tpu.memory_space<vmem>>, vector<8x512xbf16>
    tpu.vector_store %arg8[%c136_165, %c0_166], %327 {strides = array<i32>} : memref<216x512xbf16, #tpu.memory_space<vmem>>, vector<8x512xbf16>,
    %c0_167 = arith.constant 0 : index
    %c183_168 = arith.constant 183 : index
    %329 = vector.load %arg7[%c0_167, %c183_168] : memref<8x768xbf16, #tpu.memory_space<vmem>>, vector<8x512xbf16>
    %330 = arith.mulf %13, %15 : vector<1x512xf32>
    %331 = arith.extf %329 : vector<8x512xbf16> to vector<8x512xf32>
    %332 = vector.broadcast %330 : vector<1x512xf32> to vector<8x512xf32>
    %333 = arith.mulf %331, %332 : vector<8x512xf32>
    %334 = arith.truncf %333 : vector<8x512xf32> to vector<8x512xbf16>
    %c144 = arith.constant 144 : index
    %c0_169 = arith.constant 0 : index
    %335 = vector.load %arg8[%c144, %c0_169] : memref<216x512xbf16, #tpu.memory_space<vmem>>, vector<8x512xbf16>
    tpu.vector_store %arg8[%c144, %c0_169], %334 {strides = array<i32>} : memref<216x512xbf16, #tpu.memory_space<vmem>>, vector<8x512xbf16>,
    %c0_170 = arith.constant 0 : index
    %c184_171 = arith.constant 184 : index
    %336 = vector.load %arg7[%c0_170, %c184_171] : memref<8x768xbf16, #tpu.memory_space<vmem>>, vector<8x512xbf16>
    %337 = arith.extf %336 : vector<8x512xbf16> to vector<8x512xf32>
    %338 = vector.broadcast %13 : vector<1x512xf32> to vector<8x512xf32>
    %339 = arith.mulf %337, %338 : vector<8x512xf32>
    %340 = arith.truncf %339 : vector<8x512xf32> to vector<8x512xbf16>
    %c152 = arith.constant 152 : index
    %c0_172 = arith.constant 0 : index
    %341 = vector.load %arg8[%c152, %c0_172] : memref<216x512xbf16, #tpu.memory_space<vmem>>, vector<8x512xbf16>
    tpu.vector_store %arg8[%c152, %c0_172], %340 {strides = array<i32>} : memref<216x512xbf16, #tpu.memory_space<vmem>>, vector<8x512xbf16>,
    %c0_173 = arith.constant 0 : index
    %c185_174 = arith.constant 185 : index
    %342 = vector.load %arg7[%c0_173, %c185_174] : memref<8x768xbf16, #tpu.memory_space<vmem>>, vector<8x512xbf16>
    %343 = arith.mulf %13, %16 : vector<1x512xf32>
    %344 = arith.extf %342 : vector<8x512xbf16> to vector<8x512xf32>
    %345 = vector.broadcast %343 : vector<1x512xf32> to vector<8x512xf32>
    %346 = arith.mulf %344, %345 : vector<8x512xf32>
    %347 = arith.truncf %346 : vector<8x512xf32> to vector<8x512xbf16>
    %c160 = arith.constant 160 : index
    %c0_175 = arith.constant 0 : index
    %348 = vector.load %arg8[%c160, %c0_175] : memref<216x512xbf16, #tpu.memory_space<vmem>>, vector<8x512xbf16>
    tpu.vector_store %arg8[%c160, %c0_175], %347 {strides = array<i32>} : memref<216x512xbf16, #tpu.memory_space<vmem>>, vector<8x512xbf16>,
    %c0_176 = arith.constant 0 : index
    %c191_177 = arith.constant 191 : index
    %349 = vector.load %arg7[%c0_176, %c191_177] : memref<8x768xbf16, #tpu.memory_space<vmem>>, vector<8x512xbf16>
    %350 = arith.extf %349 : vector<8x512xbf16> to vector<8x512xf32>
    %351 = vector.broadcast %15 : vector<1x512xf32> to vector<8x512xf32>
    %352 = arith.mulf %350, %351 : vector<8x512xf32>
    %353 = arith.truncf %352 : vector<8x512xf32> to vector<8x512xbf16>
    %c168 = arith.constant 168 : index
    %c0_178 = arith.constant 0 : index
    %354 = vector.load %arg8[%c168, %c0_178] : memref<216x512xbf16, #tpu.memory_space<vmem>>, vector<8x512xbf16>
    tpu.vector_store %arg8[%c168, %c0_178], %353 {strides = array<i32>} : memref<216x512xbf16, #tpu.memory_space<vmem>>, vector<8x512xbf16>,
    %c0_179 = arith.constant 0 : index
    %c192_180 = arith.constant 192 : index
    %355 = vector.load %arg7[%c0_179, %c192_180] : memref<8x768xbf16, #tpu.memory_space<vmem>>, vector<8x512xbf16>
    %c176 = arith.constant 176 : index
    %c0_181 = arith.constant 0 : index
    %356 = vector.load %arg8[%c176, %c0_181] : memref<216x512xbf16, #tpu.memory_space<vmem>>, vector<8x512xbf16>
    tpu.vector_store %arg8[%c176, %c0_181], %355 {strides = array<i32>} : memref<216x512xbf16, #tpu.memory_space<vmem>>, vector<8x512xbf16>,
    %c0_182 = arith.constant 0 : index
    %c193_183 = arith.constant 193 : index
    %357 = vector.load %arg7[%c0_182, %c193_183] : memref<8x768xbf16, #tpu.memory_space<vmem>>, vector<8x512xbf16>
    %358 = arith.extf %357 : vector<8x512xbf16> to vector<8x512xf32>
    %359 = vector.broadcast %16 : vector<1x512xf32> to vector<8x512xf32>
    %360 = arith.mulf %358, %359 : vector<8x512xf32>
    %361 = arith.truncf %360 : vector<8x512xf32> to vector<8x512xbf16>
    %c184_184 = arith.constant 184 : index
    %c0_185 = arith.constant 0 : index
    %362 = vector.load %arg8[%c184_184, %c0_185] : memref<216x512xbf16, #tpu.memory_space<vmem>>, vector<8x512xbf16>
    tpu.vector_store %arg8[%c184_184, %c0_185], %361 {strides = array<i32>} : memref<216x512xbf16, #tpu.memory_space<vmem>>, vector<8x512xbf16>,
    %c0_186 = arith.constant 0 : index
    %c199_187 = arith.constant 199 : index
    %363 = vector.load %arg7[%c0_186, %c199_187] : memref<8x768xbf16, #tpu.memory_space<vmem>>, vector<8x512xbf16>
    %364 = arith.mulf %14, %15 : vector<1x512xf32>
    %365 = arith.extf %363 : vector<8x512xbf16> to vector<8x512xf32>
    %366 = vector.broadcast %364 : vector<1x512xf32> to vector<8x512xf32>
    %367 = arith.mulf %365, %366 : vector<8x512xf32>
    %368 = arith.truncf %367 : vector<8x512xf32> to vector<8x512xbf16>
    %c192_188 = arith.constant 192 : index
    %c0_189 = arith.constant 0 : index
    %369 = vector.load %arg8[%c192_188, %c0_189] : memref<216x512xbf16, #tpu.memory_space<vmem>>, vector<8x512xbf16>
    tpu.vector_store %arg8[%c192_188, %c0_189], %368 {strides = array<i32>} : memref<216x512xbf16, #tpu.memory_space<vmem>>, vector<8x512xbf16>,
    %c0_190 = arith.constant 0 : index
    %c200_191 = arith.constant 200 : index
    %370 = vector.load %arg7[%c0_190, %c200_191] : memref<8x768xbf16, #tpu.memory_space<vmem>>, vector<8x512xbf16>
    %371 = arith.extf %370 : vector<8x512xbf16> to vector<8x512xf32>
    %372 = vector.broadcast %14 : vector<1x512xf32> to vector<8x512xf32>
    %373 = arith.mulf %371, %372 : vector<8x512xf32>
    %374 = arith.truncf %373 : vector<8x512xf32> to vector<8x512xbf16>
    %c200_192 = arith.constant 200 : index
    %c0_193 = arith.constant 0 : index
    %375 = vector.load %arg8[%c200_192, %c0_193] : memref<216x512xbf16, #tpu.memory_space<vmem>>, vector<8x512xbf16>
    tpu.vector_store %arg8[%c200_192, %c0_193], %374 {strides = array<i32>} : memref<216x512xbf16, #tpu.memory_space<vmem>>, vector<8x512xbf16>,
    %c0_194 = arith.constant 0 : index
    %c201_195 = arith.constant 201 : index
    %376 = vector.load %arg7[%c0_194, %c201_195] : memref<8x768xbf16, #tpu.memory_space<vmem>>, vector<8x512xbf16>
    %377 = arith.mulf %14, %16 : vector<1x512xf32>
    %378 = arith.extf %376 : vector<8x512xbf16> to vector<8x512xf32>
    %379 = vector.broadcast %377 : vector<1x512xf32> to vector<8x512xf32>
    %380 = arith.mulf %378, %379 : vector<8x512xf32>
    %381 = arith.truncf %380 : vector<8x512xf32> to vector<8x512xbf16>
    %c208 = arith.constant 208 : index
    %c0_196 = arith.constant 0 : index
    %382 = vector.load %arg8[%c208, %c0_196] : memref<216x512xbf16, #tpu.memory_space<vmem>>, vector<8x512xbf16>
    tpu.vector_store %arg8[%c208, %c0_196], %381 {strides = array<i32>} : memref<216x512xbf16, #tpu.memory_space<vmem>>, vector<8x512xbf16>,
    %c0_197 = arith.constant 0 : index
    %c0_198 = arith.constant 0 : index
    %383 = vector.load %arg4[%c0_197, %c0_198] : memref<8x216xbf16, #tpu.memory_space<vmem>>, vector<8x216xbf16>
    %c0_199 = arith.constant 0 : index
    %c0_200 = arith.constant 0 : index
    %384 = vector.load %arg8[%c0_199, %c0_200] : memref<216x512xbf16, #tpu.memory_space<vmem>>, vector<216x512xbf16>
    %cst_201 = arith.constant dense<0.000000e+00> : vector<8x512xf32>
    %385 = tpu.matmul %383, %384, %cst_201 {dimension_numbers = #tpu.dot_dimension_numbers<[1], [0], [0], [1], [0, 0, 1, 1], [], []>} : vector<8x216xbf16>, vector<216x512xbf16>, vector<8x512xf32> -> vector<8x512xf32>
    %386 = vector.extract_strided_slice %385 {offsets = [0, 0], sizes = [8, 1], strides = [1, 1]} : vector<8x512xf32> to vector<8x1xf32>
    %387 = vector.broadcast %386 : vector<8x1xf32> to vector<8x512xf32>
    %388 = arith.subf %385, %387 : vector<8x512xf32>
    %389 = vector.broadcast %17 : vector<1x512xf32> to vector<8x512xf32>
    %390 = arith.mulf %388, %389 : vector<8x512xf32>
    %cst_202 = arith.constant dense<0.000000e+00> : vector<8xf32>
    %391 = vector.multi_reduction <add>, %390, %cst_202 [1] : vector<8x512xf32> to vector<8xf32>
    %392 = vector.shape_cast %391 : vector<8xf32> to vector<8x1xf32>
    %cst_203 = arith.constant 0.001953125 : f32
    %393 = vector.broadcast %cst_203 : f32 to vector<8x1xf32>
    %394 = arith.mulf %392, %393 : vector<8x1xf32>
    %395 = arith.mulf %390, %390 : vector<8x512xf32>
    %cst_204 = arith.constant dense<0.000000e+00> : vector<8xf32>
    %396 = vector.multi_reduction <add>, %395, %cst_204 [1] : vector<8x512xf32> to vector<8xf32>
    %397 = vector.shape_cast %396 : vector<8xf32> to vector<8x1xf32>
    %cst_205 = arith.constant 0.001953125 : f32
    %398 = vector.broadcast %cst_205 : f32 to vector<8x1xf32>
    %399 = arith.mulf %397, %398 : vector<8x1xf32>
    %400 = arith.addf %386, %394 : vector<8x1xf32>
    %401 = arith.mulf %394, %394 : vector<8x1xf32>
    %402 = arith.subf %399, %401 : vector<8x1xf32>
    %403 = vector.broadcast %400 : vector<8x1xf32> to vector<8x512xf32>
    %404 = arith.subf %385, %403 : vector<8x512xf32>
    %cst_206 = arith.constant 9.99999974E-6 : f32
    %405 = vector.broadcast %cst_206 : f32 to vector<8x1xf32>
    %406 = arith.addf %402, %405 : vector<8x1xf32>
    %407 = math.rsqrt %406 : vector<8x1xf32>
    %408 = vector.broadcast %407 : vector<8x1xf32> to vector<8x512xf32>
    %409 = arith.mulf %404, %408 : vector<8x512xf32>
    %cst_207 = arith.constant 0.000000e+00 : f32
    %410 = vector.broadcast %cst_207 : f32 to vector<8x512xf32>
    %411 = arith.cmpf ogt, %409, %410 : vector<8x512xf32>
    %cst_208 = arith.constant 0.00999999977 : f32
    %412 = vector.broadcast %cst_208 : f32 to vector<8x512xf32>
    %413 = arith.mulf %412, %409 : vector<8x512xf32>
    %414 = arith.select %411, %409, %413 : vector<8x512xi1>, vector<8x512xf32>
    %c0_209 = arith.constant 0 : index
    %c0_210 = arith.constant 0 : index
    %c0_211 = arith.constant 0 : index
    %415 = vector.load %arg5[%c0_209, %c0_210, %c0_211] : memref<1x8x512xf32, #tpu.memory_space<vmem>>, vector<1x8x512xf32>
    %416 = vector.shape_cast %415 : vector<1x8x512xf32> to vector<8x512xf32>
    %417 = vector.shape_cast %414 : vector<8x512xf32> to vector<1x8x512xf32>
    tpu.vector_store %arg5[%c0_209, %c0_210, %c0_211], %417 {strides = array<i32>} : memref<1x8x512xf32, #tpu.memory_space<vmem>>, vector<1x8x512xf32>,
    return
  }
  func.func @transform_1(%arg0: i32) -> (i32, i32) {
    %c0_i32 = arith.constant 0 : i32
    %c0_i32_0 = arith.constant 0 : i32
    %c0_i32_1 = arith.constant 0 : i32
    return %c0_i32, %c0_i32_0 : i32, i32
  }
  func.func @transform_2(%arg0: i32) -> (i32, i32) {
    %c0_i32 = arith.constant 0 : i32
    %c0_i32_0 = arith.constant 0 : i32
    %c0_i32_1 = arith.constant 0 : i32
    return %c0_i32, %c0_i32_0 : i32, i32
  }
  func.func @transform_3(%arg0: i32) -> (i32, i32) {
    %c0_i32 = arith.constant 0 : i32
    %c0_i32_0 = arith.constant 0 : i32
    %c0_i32_1 = arith.constant 0 : i32
    return %c0_i32, %c0_i32_0 : i32, i32
  }
  func.func @transform_4(%arg0: i32) -> (i32, i32, i32) {
    %c0_i32 = arith.constant 0 : i32
    %c0_i32_0 = arith.constant 0 : i32
    %c0_i32_1 = arith.constant 0 : i32
    return %arg0, %c0_i32, %c0_i32_0 : i32, i32, i32
  }
}

</mosaic_0001>

<llo_original>
// kernel: tpu_custom_call.1
$region0: #{tpu_custom_call.1}
  #allocation0 [shape = 'u32[]', space=smem, size = 0x4, offset = 0x4, fixed_abs, tag = 'smem constant byte address 0x4 - core index']
  #allocation1 [shape = 'u32[72,128]{1,0:T(1,128)}', space=vmem, size = 0x9000, scoped, tag = 'internal scratch']
  #allocation2 [shape = 'bf16[4,768]{1,0:T(4,128)(2,1)}', space=vmem, size = 0x1800, scoped, tag = 'scratch operand']
  #allocation3 [shape = 'bf16[8,768]{1,0:T(8,128)(2,1)}', space=vmem, size = 0x3000, scoped, tag = 'scratch operand']
  #allocation4 [shape = 'bf16[216,512]{1,0:T(8,128)(2,1)}', space=vmem, size = 0x36000, scoped, tag = 'scratch operand']
  #allocation5 [shape = 's32[1]{0}', space=sflag, size = 0x4, scoped, tag = 'scratch operand']
  #allocation13 [shape = 's32[]', space=sflag, size = 0x4, offset = 0, fixed_abs, tag = 'sflag constant byte address 0x0 - dummy sync flag']
  #allocation14 [shape = 's32[]', space=sflag, size = 0x4, offset = 0, fixed_abs, tag = 'sflag constant byte address 0x0 - dummy sync flag']
  #allocation15 [shape = 'u32[]', space=smem, size = 0x4, offset = 0x44, fixed_abs, tag = 'smem constant byte address 0x44 - assertion arg 0']
  #allocation16 [shape = 'u32[]', space=smem, size = 0x4, offset = 0x48, fixed_abs, tag = 'smem constant byte address 0x48 - assertion arg 1']
  %s0 = inlined_call_operand.hbm [shape: bf16[2,4,512], index: 0, kind: input, shape index: {}]
  %s1 = inlined_call_operand.hbm [shape: f32[8,512], index: 1, kind: input, shape index: {}]
  %s2 = inlined_call_operand.hbm [shape: bf16[8,108], index: 2, kind: input, shape index: {}]
  %s3 = inlined_call_operand.hbm [shape: bf16[8,216], index: 3, kind: input, shape index: {}]
  %s4 = inlined_call_operand.hbm [shape: f32[2,8,512], index: 4, kind: output, shape index: {}]
  %s5 = sld [smem:[#allocation0]]
  $region61: #{tpu_custom_call.1} parent=0
    _
  %s7 = ssub.s32 1, %s5
  %s8 = scalar_select 0, %s7, %s5
  $region1: #{tpu_custom_call.1} parent=0
    #allocation6 [shape = 'u8[16384]{0}', space=vmem, size = 0x4000, scoped, tag = 'input window, operand 1, single buffered']
    #allocation7 [shape = 's32[2]{0}', space=sflag, size = 0x8, scoped, tag = 'scoped memory for tpu_custom_call.1']
    #allocation8 [shape = 's32[2]{0}', space=sflag, size = 0x8, scoped, tag = 'scoped memory for tpu_custom_call.1']
    #allocation9 [shape = 'u8[2048]{0}', space=vmem, size = 0x800, scoped, tag = 'input window, operand 2, single buffered']
    #allocation10 [shape = 's32[1]{0}', space=sflag, size = 0x4, scoped, tag = 'scoped memory for tpu_custom_call.1']
    #allocation11 [shape = 'u8[4096]{0}', space=vmem, size = 0x1000, scoped, tag = 'input window, operand 3, single buffered']
    #allocation12 [shape = 'u8[32768]{0}', space=vmem, size = 0x8000, scoped, tag = 'output window, operand 0']
    %9 = vsyncpa [#allocation7], 0
    %10 = vsyncpa [#allocation10], 0
    %11 = vsyncpa [#allocation8], 0
    %s12 = scalar_lea.sflag [#allocation8], 1
    %13 = vsyncpa %s12, 0
    loop: start=0, step=1, limit=4
    $region2: #{tpu_custom_call.1} parent=1 // loop_pre_header
      _
    $region3: #{tpu_custom_call.1} parent=1 // loop_header
      %s15 = sphi 0, %s19
      %p16 = scmp.ge.s32.totalorder %s15, 4
      %s23 = sphi 0, %s23
      %s25 = sphi 0, %s23
      %s26 = sphi 0, %s25
      %s40 = sphi 0, %s26
      %s44 = sphi 0, %s44
      %s46 = sphi 0, %s44
      %s47 = sphi 0, %s46
      %s61 = sphi 0, %s47
      %s65 = sphi 0, %s65
      %s67 = sphi 0, %s65
      %s68 = sphi 0, %s67
      %s82 = sphi 0, %s68
      %s88 = sphi 0, %s90
      %s91 = sphi 0, %s88
      %s92 = sphi 0, %s91
      %s108 = sphi 0, %s92
    $region4: #{tpu_custom_call.1} parent=1 // loop_header_branch
      %18 = sbr.rel (%p16) target = $region8
    $region5: #{tpu_custom_call.1} parent=1 // loop_body
      %s20 = ssub.s32 %s15, 1
      %s21 = ssub.s32 %s15, 2
      %s22 = sadd.s32 %s15, 1
      %s24 = sadd.s32 %s23, 1
      %p27 = scmp.eq.s32.totalorder %s15, 1
      %p28 = scmp.ne.s32.totalorder %s23, %s25
      %p29 = scmp.eq.s32.totalorder %s15, 0
      %p30 = por %p28, %p29
      %p31 = scmp.ne.s32.totalorder %s23, %s25
      %p32 = scmp.eq.s32.totalorder %s20, 1
      %p33 = por %p31, %p32
      %p34 = scmp.ne.s32.totalorder %s25, %s26
      %p35 = scmp.eq.s32.totalorder %s20, 0
      %p36 = por %p34, %p35
      %p37 = scmp.ne.s32.totalorder %s25, %s26
      %p38 = scmp.eq.s32.totalorder %s21, 1
      %p39 = por %p37, %p38
      %p41 = scmp.ne.s32.totalorder %s26, %s40
      %p42 = scmp.eq.s32.totalorder %s21, 0
      %p43 = por %p41, %p42
      %s45 = sadd.s32 %s44, 1
      %p48 = scmp.eq.s32.totalorder %s15, 1
      %p49 = scmp.ne.s32.totalorder %s44, %s46
      %p50 = scmp.eq.s32.totalorder %s15, 0
      %p51 = por %p49, %p50
      %p52 = scmp.ne.s32.totalorder %s44, %s46
      %p53 = scmp.eq.s32.totalorder %s20, 1
      %p54 = por %p52, %p53
      %p55 = scmp.ne.s32.totalorder %s46, %s47
      %p56 = scmp.eq.s32.totalorder %s20, 0
      %p57 = por %p55, %p56
      %p58 = scmp.ne.s32.totalorder %s46, %s47
      %p59 = scmp.eq.s32.totalorder %s21, 1
      %p60 = por %p58, %p59
      %p62 = scmp.ne.s32.totalorder %s47, %s61
      %p63 = scmp.eq.s32.totalorder %s21, 0
      %p64 = por %p62, %p63
      %s66 = sadd.s32 %s65, 1
      %p69 = scmp.eq.s32.totalorder %s15, 1
      %p70 = scmp.ne.s32.totalorder %s65, %s67
      %p71 = scmp.eq.s32.totalorder %s15, 0
      %p72 = por %p70, %p71
      %p73 = scmp.ne.s32.totalorder %s65, %s67
      %p74 = scmp.eq.s32.totalorder %s20, 1
      %p75 = por %p73, %p74
      %p76 = scmp.ne.s32.totalorder %s67, %s68
      %p77 = scmp.eq.s32.totalorder %s20, 0
      %p78 = por %p76, %p77
      %p79 = scmp.ne.s32.totalorder %s67, %s68
      %p80 = scmp.eq.s32.totalorder %s21, 1
      %p81 = por %p79, %p80
      %p83 = scmp.ne.s32.totalorder %s68, %s82
      %p84 = scmp.eq.s32.totalorder %s21, 0
      %p85 = por %p83, %p84
      %s86 = ssub.s32 %s15, %s22
      %p87 = scmp.eq.s32.totalorder %s86, 0
      %s89 = sadd.s32 %s88, 1
      %s90 = scalar_select %p87, %s88, %s89
      %p93 = pneg %p87
      %p94 = scmp.eq.s32.totalorder %s15, 1
      %p95 = por %p93, %p94
      %p96 = scmp.ne.s32.totalorder %s88, %s91
      %p97 = scmp.eq.s32.totalorder %s15, 0
      %p98 = por %p96, %p97
      %p99 = scmp.ne.s32.totalorder %s88, %s91
      %p100 = scmp.eq.s32.totalorder %s20, 1
      %p101 = por %p99, %p100
      %p102 = scmp.ne.s32.totalorder %s91, %s92
      %p103 = scmp.eq.s32.totalorder %s20, 0
      %p104 = por %p102, %p103
      %p105 = scmp.ne.s32.totalorder %s91, %s92
      %p106 = scmp.eq.s32.totalorder %s21, 1
      %p107 = por %p105, %p106
      %p109 = scmp.ne.s32.totalorder %s92, %s108
      %p110 = scmp.eq.s32.totalorder %s21, 0
      %p111 = por %p109, %p110
      %p112 = scmp.le.s32.totalorder 1, %s15
      %p113 = scmp.lt.s32.totalorder %s15, 3
      %p114 = pnand %p112, %p113
      %p115 = pneg %p114
      // Predicated region
      $region9: #{tpu_custom_call.1} parent=5 // pred_check
        _
      $region10: #{tpu_custom_call.1} parent=5 // pred_check_branch
        %117 = sbr.rel (%p114) target = $region12
      $region11: #{tpu_custom_call.1} parent=5 // pred_region
        %s118 = ssub.s32 %s15, 1
        // Predicated region
        $region13: #{tpu_custom_call.1} parent=11 // pred_check
          %p119 = pneg %p36
        $region14: #{tpu_custom_call.1} parent=11 // pred_check_branch
          %121 = sbr.rel (%p119) target = $region16
        $region15: #{tpu_custom_call.1} parent=11 // pred_region
          %123 = vsyncadd [#allocation7], 0
          %s125 = sshll.u32 %s1, 4
          %s126 = int_to_ptr.hbm [resolvable:$true] %s125
          %s127 = sshll.u32 [#allocation6], 4
          %s128 = int_to_ptr.vmem [resolvable:$true] %s127
          %130 = dma.hbm_to_vmem [thread:$0]  %s126, 512, %s128, [#allocation7]
        $region16: #{tpu_custom_call.1} parent=11 // pred_fallthru
          _
        // Predicated region
        $region17: #{tpu_custom_call.1} parent=11 // pred_check
          %p131 = pneg %p57
        $region18: #{tpu_custom_call.1} parent=11 // pred_check_branch
          %133 = sbr.rel (%p131) target = $region20
        $region19: #{tpu_custom_call.1} parent=11 // pred_region
          %135 = vsyncadd [#allocation10], 0
          %s137 = sshll.u32 %s2, 4
          %s138 = int_to_ptr.hbm [resolvable:$true] %s137
          %s139 = sshll.u32 [#allocation9], 4
          %s140 = int_to_ptr.vmem [resolvable:$true] %s139
          %142 = dma.hbm_to_vmem [thread:$0]  %s138, 64, %s140, [#allocation10]
        $region20: #{tpu_custom_call.1} parent=11 // pred_fallthru
          _
        // Predicated region
        $region21: #{tpu_custom_call.1} parent=11 // pred_check
          %p143 = pneg %p78
        $region22: #{tpu_custom_call.1} parent=11 // pred_check_branch
          %145 = sbr.rel (%p143) target = $region24
        $region23: #{tpu_custom_call.1} parent=11 // pred_region
          %147 = vsyncadd [#allocation10], 0
          %s149 = sshll.u32 %s3, 4
          %s150 = int_to_ptr.hbm [resolvable:$true] %s149
          %s151 = sshll.u32 [#allocation11], 4
          %s152 = int_to_ptr.vmem [resolvable:$true] %s151
          %154 = dma.hbm_to_vmem [thread:$0]  %s150, 128, %s152, [#allocation10]
        $region24: #{tpu_custom_call.1} parent=11 // pred_fallthru
          _
      $region12: #{tpu_custom_call.1} parent=5 // pred_fallthru
        _
      %p155 = scmp.lt.s32.totalorder %s15, 2
      // Predicated region
      $region25: #{tpu_custom_call.1} parent=5 // pred_check
        %p156 = pneg %p155
      $region26: #{tpu_custom_call.1} parent=5 // pred_check_branch
        %158 = sbr.rel (%p156) target = $region28
      $region27: #{tpu_custom_call.1} parent=5 // pred_region
        _
      $region28: #{tpu_custom_call.1} parent=5 // pred_fallthru
        _
      %p159 = scmp.le.s32.totalorder 1, %s15
      %p160 = scmp.lt.s32.totalorder %s15, 3
      %p161 = pnand %p159, %p160
      %p162 = pneg %p161
      // Predicated region
      $region29: #{tpu_custom_call.1} parent=5 // pred_check
        _
      $region30: #{tpu_custom_call.1} parent=5 // pred_check_branch
        %164 = sbr.rel (%p161) target = $region32
      $region31: #{tpu_custom_call.1} parent=5 // pred_region
        %s165 = ssub.s32 %s15, 1
        // Predicated region
        $region33: #{tpu_custom_call.1} parent=31 // pred_check
          %p166 = pneg %p36
        $region34: #{tpu_custom_call.1} parent=31 // pred_check_branch
          %168 = sbr.rel (%p166) target = $region36
        $region35: #{tpu_custom_call.1} parent=31 // pred_region
          %170 = dma.done [#allocation7], 512
        $region36: #{tpu_custom_call.1} parent=31 // pred_fallthru
          _
        // Predicated region
        $region37: #{tpu_custom_call.1} parent=31 // pred_check
          %p171 = pneg %p57
        $region38: #{tpu_custom_call.1} parent=31 // pred_check_branch
          %173 = sbr.rel (%p171) target = $region40
        $region39: #{tpu_custom_call.1} parent=31 // pred_region
          %175 = dma.done [#allocation10], 64
        $region40: #{tpu_custom_call.1} parent=31 // pred_fallthru
          _
        // Predicated region
        $region41: #{tpu_custom_call.1} parent=31 // pred_check
          %p176 = pneg %p78
        $region42: #{tpu_custom_call.1} parent=31 // pred_check_branch
          %178 = sbr.rel (%p176) target = $region44
        $region43: #{tpu_custom_call.1} parent=31 // pred_region
          %180 = dma.done [#allocation10], 128
        $region44: #{tpu_custom_call.1} parent=31 // pred_fallthru
          _
        %p181 = pneg %p36
        %p182 = pneg %p33
        %p183 = pneg %p57
        %p184 = pneg %p54
        %p185 = pneg %p78
        %p186 = pneg %p75
        %p187 = pneg %p104
        %p188 = pneg %p101
        %s189 = sand.u32 %s91, 1
        %s190 = scalar_lea.sflag [#allocation8], %s189
        %s191 = sand.u32 %s91, 1
        %s192 = smul.addr %s191, 32
        %s193 = scalar_lea.vmem [#allocation12], %s192
        %s195 = smul.u32 %s20, 4
        %s196 = smul.addr %s195, 2
        %s197 = scalar_lea.hbm %s0, %s196
        %s198 = scalar_lea.vmem [#allocation2], 2
        // Predicated region
        $region45: #{tpu_custom_call.1} parent=31 // pred_check
          _
        $region46: #{tpu_custom_call.1} parent=31 // pred_check_branch
          %200 = sbr.rel target = $region48
        $region47: #{tpu_custom_call.1} parent=31 // pred_region
          %201 = sst [smem:[#allocation15]] [#allocation14]
          %202 = sst [smem:[#allocation16]] [#allocation13]
        $region48: #{tpu_custom_call.1} parent=31 // pred_fallthru
          _
        %204 = shalt.err (0)
        %s206 = sshll.u32 %s197, 4
        %s207 = int_to_ptr.hbm [resolvable:$true] %s206
        %s208 = sshll.u32 %s198, 4
        %s209 = int_to_ptr.vmem [resolvable:$true] %s208
        %211 = dma.hbm_to_vmem [thread:$0]  %s207, 128, %s209, [#allocation5]
        %212 = vst [vmem:[#allocation3] sm:$0xf] 0
        %213 = vst [vmem:[#allocation3 + $0x14] sm:$0xf] 0
        %214 = vst [vmem:[#allocation2] sm:$0x3] 0
        %215 = vst [vmem:[#allocation2 + $0xa] sm:$0x3] 0
        %v216 = vld [vmem:[#allocation6] ss:$8 sm:$0xf]
        %s217 = scalar_lea.vmem [#allocation6], 1
        %v218 = vld [vmem:[%s217] ss:$8 sm:$0xf]
        %s219 = scalar_lea.vmem [#allocation6], 2
        %v220 = vld [vmem:[%s219] ss:$8 sm:$0xf]
        %s221 = scalar_lea.vmem [#allocation6], 3
        %v222 = vld [vmem:[%s221] ss:$8 sm:$0xf]
        %s223 = scalar_lea.vmem [#allocation6], 4
        %v224 = vld [vmem:[%s223] ss:$8 sm:$0xf]
        %s225 = smul.u32 2, 1
        %s226 = smul.u32 %s225, 4
        %s227 = sshll.u32 %s226, 4
        %228 = dma.done [#allocation5], %s227
        %v229 = vld [vmem:[#allocation2] sm:$0xff]
        %v230 = vld [vmem:[#allocation2 + $0x8] sm:$0x3]
        %v231 = vmul.f32 %v216, %v220
        %v232 = vunpack.c.l.bf16 %v229
        %v233 = vunpack.c.h.bf16 %v229
        %v234 = vunpack.c.l.bf16 %v230
        %v236 = vperm.slane %v231, 0
        %v237 = vperm.slane %v231, 1
        %v238 = vperm.slane %v231, 2
        %v239 = vperm.slane %v231, 3
        %v240 = vrot.slane %v237, 4
        %v241 = vrot.slane %v239, 4
        %vm242 = vcmask 1043456
        %v243 = vsel %vm242, %v236, %v240
        %v244 = vsel %vm242, %v238, %v241
        %245 = vrot.lane.b32.xlu0 %v243, 55
        %v246 = vpop.permute.xlu0 %245
        %247 = vrot.lane.b32.xlu0 %v244, 55
        %v248 = vpop.permute.xlu0 %247
        %v249 = vrot.slane %v246, 4
        %v250 = vrot.slane %v248, 4
        %vm251 = vcmask 449536
        %v252 = vsel %vm251, %v249, %v246
        %v253 = vsel %vm242, %v249, %v250
        %v254 = vsel %vm251, %v253, %v248
        %v258 = vmul.f32 %v232, %v252
        %v259 = vmul.f32 %v233, %v254
        %v260 = vmul.f32 %v234, %v250
        %264 = vst [vmem:[#allocation1] ss:$2 sm:$0xff] %v258
        %s265 = scalar_lea.vmem [#allocation1], 16
        %266 = vst [vmem:[%s265] ss:$2 sm:$0xff] %v259
        %s267 = scalar_lea.vmem [#allocation1], 32
        %268 = vst [vmem:[%s267] ss:$2 sm:$0xff] %v260
        %v269 = vld.sshfl [vmem:[#allocation1] sm:$0xff pattern:$0x75316420]
        %v270 = vld.sshfl [vmem:[#allocation1 + $0x8] sm:$0xff pattern:$0x75316420]
        %v271 = vld.sshfl [vmem:[#allocation1 + $0x10] sm:$0xff pattern:$0x75316420]
        %v272 = vld.sshfl [vmem:[#allocation1 + $0x18] sm:$0xff pattern:$0x75316420]
        %v273 = vld.sshfl [vmem:[#allocation1 + $0x20] sm:$0xff pattern:$0x75316420]
        %v279 = vpack.c.bf16 %v270, %v269
        %v280 = vpack.c.bf16 %v272, %v271
        %v281 = vpack.c.bf16 %v273, %v273
        %285 = vrot.lane.b32.xlu0 %v279, 73
        %v286 = vpop.permute.xlu0 %285
        %287 = vrot.lane.b32.xlu0 %v280, 73
        %v288 = vpop.permute.xlu0 %287
        %289 = vrot.lane.b32.xlu0 %v281, 73
        %v290 = vpop.permute.xlu0 %289
        %v291 = vrot.slane %v286, 4
        %v292 = vrot.slane %v288, 4
        %v293 = vrot.slane %v290, 4
        %vm294 = vcmask 1043456
        %v295 = vsel %vm294, %v291, %v292
        %vm296 = vcmask 596992
        %v297 = vsel %vm296, %v286, %v295
        %v298 = vsel %vm294, %v292, %v293
        %v299 = vsel %vm296, %v288, %v298
        %302 = vst [vmem:[#allocation4] sm:$0x33] %v297
        %303 = vst [vmem:[#allocation4 + $0x8] sm:$0x33] %v299
        %v304 = vld [vmem:[#allocation2] sm:$0xff]
        %v305 = vld [vmem:[#allocation2 + $0x8] sm:$0x3]
        %v306 = vunpack.c.l.bf16 %v304
        %v307 = vunpack.c.h.bf16 %v304
        %v308 = vunpack.c.l.bf16 %v305
        %v310 = vperm.slane %v216, 0
        %v311 = vperm.slane %v216, 1
        %v312 = vperm.slane %v216, 2
        %v313 = vperm.slane %v216, 3
        %v314 = vrot.slane %v311, 4
        %v315 = vrot.slane %v313, 4
        %v316 = vsel %vm242, %v310, %v314
        %v317 = vsel %vm242, %v312, %v315
        %318 = vrot.lane.b32.xlu0 %v316, 56
        %v319 = vpop.permute.xlu0 %318
        %320 = vrot.lane.b32.xlu0 %v317, 56
        %v321 = vpop.permute.xlu0 %320
        %v322 = vrot.slane %v319, 4
        %v323 = vrot.slane %v321, 4
        %vm324 = vcmask 457728
        %v325 = vsel %vm324, %v322, %v319
        %v326 = vsel %vm242, %v322, %v323
        %v327 = vsel %vm324, %v326, %v321
        %v331 = vmul.f32 %v306, %v325
        %v332 = vmul.f32 %v307, %v327
        %v333 = vmul.f32 %v308, %v323
        %337 = vst [vmem:[#allocation1] ss:$2 sm:$0xff] %v331
        %s338 = scalar_lea.vmem [#allocation1], 16
        %339 = vst [vmem:[%s338] ss:$2 sm:$0xff] %v332
        %s340 = scalar_lea.vmem [#allocation1], 32
        %341 = vst [vmem:[%s340] ss:$2 sm:$0xff] %v333
        %v342 = vld.sshfl [vmem:[#allocation1] sm:$0xff pattern:$0x75316420]
        %v343 = vld.sshfl [vmem:[#allocation1 + $0x8] sm:$0xff pattern:$0x75316420]
        %v344 = vld.sshfl [vmem:[#allocation1 + $0x10] sm:$0xff pattern:$0x75316420]
        %v345 = vld.sshfl [vmem:[#allocation1 + $0x18] sm:$0xff pattern:$0x75316420]
        %v346 = vld.sshfl [vmem:[#allocation1 + $0x20] sm:$0xff pattern:$0x75316420]
        %v352 = vpack.c.bf16 %v343, %v342
        %v353 = vpack.c.bf16 %v345, %v344
        %v354 = vpack.c.bf16 %v346, %v346
        %v358 = vrot.slane %v352, 6
        %v359 = vrot.slane %v353, 6
        %v360 = vrot.slane %v354, 6
        %361 = vrot.lane.b32.xlu0 %v358, 72
        %v362 = vpop.permute.xlu0 %361
        %363 = vrot.lane.b32.xlu0 %v359, 72
        %v364 = vpop.permute.xlu0 %363
        %365 = vrot.lane.b32.xlu0 %v360, 72
        %v366 = vpop.permute.xlu0 %365
        %v367 = vrot.slane %v362, 4
        %v368 = vrot.slane %v364, 4
        %v369 = vrot.slane %v366, 4
        %v370 = vsel %vm294, %v367, %v368
        %vm371 = vcmask 588800
        %v372 = vsel %vm371, %v362, %v370
        %v373 = vsel %vm294, %v368, %v369
        %v374 = vsel %vm371, %v364, %v373
        %377 = vst [vmem:[#allocation4] sm:$0xcc] %v372
        %378 = vst [vmem:[#allocation4 + $0x8] sm:$0xcc] %v374
        %v379 = vld [vmem:[#allocation2] sm:$0xff]
        %v380 = vld [vmem:[#allocation2 + $0x8] sm:$0x3]
        %v381 = vmul.f32 %v216, %v222
        %v382 = vunpack.c.l.bf16 %v379
        %v383 = vunpack.c.h.bf16 %v379
        %v384 = vunpack.c.l.bf16 %v380
        %v386 = vperm.slane %v381, 0
        %v387 = vperm.slane %v381, 1
        %v388 = vperm.slane %v381, 2
        %v389 = vperm.slane %v381, 3
        %v390 = vrot.slane %v387, 4
        %v391 = vrot.slane %v389, 4
        %v392 = vsel %vm242, %v386, %v390
        %v393 = vsel %vm242, %v388, %v391
        %394 = vrot.lane.b32.xlu0 %v392, 57
        %v395 = vpop.permute.xlu0 %394
        %396 = vrot.lane.b32.xlu0 %v393, 57
        %v397 = vpop.permute.xlu0 %396
        %v398 = vrot.slane %v395, 4
        %v399 = vrot.slane %v397, 4
        %vm400 = vcmask 465920
        %v401 = vsel %vm400, %v398, %v395
        %v402 = vsel %vm242, %v398, %v399
        %v403 = vsel %vm400, %v402, %v397
        %v407 = vmul.f32 %v382, %v401
        %v408 = vmul.f32 %v383, %v403
        %v409 = vmul.f32 %v384, %v399
        %413 = vst [vmem:[#allocation1] ss:$2 sm:$0xff] %v407
        %s414 = scalar_lea.vmem [#allocation1], 16
        %415 = vst [vmem:[%s414] ss:$2 sm:$0xff] %v408
        %s416 = scalar_lea.vmem [#allocation1], 32
        %417 = vst [vmem:[%s416] ss:$2 sm:$0xff] %v409
        %v418 = vld.sshfl [vmem:[#allocation1] sm:$0xff pattern:$0x75316420]
        %v419 = vld.sshfl [vmem:[#allocation1 + $0x8] sm:$0xff pattern:$0x75316420]
        %v420 = vld.sshfl [vmem:[#allocation1 + $0x10] sm:$0xff pattern:$0x75316420]
        %v421 = vld.sshfl [vmem:[#allocation1 + $0x18] sm:$0xff pattern:$0x75316420]
        %v422 = vld.sshfl [vmem:[#allocation1 + $0x20] sm:$0xff pattern:$0x75316420]
        %v428 = vpack.c.bf16 %v419, %v418
        %v429 = vpack.c.bf16 %v421, %v420
        %v430 = vpack.c.bf16 %v422, %v422
        %434 = vrot.lane.b32.xlu0 %v428, 71
        %v435 = vpop.permute.xlu0 %434
        %436 = vrot.lane.b32.xlu0 %v429, 71
        %v437 = vpop.permute.xlu0 %436
        %438 = vrot.lane.b32.xlu0 %v430, 71
        %v439 = vpop.permute.xlu0 %438
        %v440 = vrot.slane %v435, 4
        %v441 = vrot.slane %v437, 4
        %v442 = vrot.slane %v439, 4
        %v443 = vsel %vm294, %v440, %v441
        %vm444 = vcmask 580608
        %v445 = vsel %vm444, %v435, %v443
        %v446 = vsel %vm294, %v441, %v442
        %v447 = vsel %vm444, %v437, %v446
        %450 = vst [vmem:[#allocation4 + $0x10] sm:$0x33] %v445
        %451 = vst [vmem:[#allocation4 + $0x18] sm:$0x33] %v447
        %v452 = vld [vmem:[#allocation2] sm:$0xff]
        %v453 = vld [vmem:[#allocation2 + $0x8] sm:$0x3]
        %v454 = vunpack.c.l.bf16 %v452
        %v455 = vunpack.c.h.bf16 %v452
        %v456 = vunpack.c.l.bf16 %v453
        %v458 = vperm.slane %v220, 0
        %v459 = vperm.slane %v220, 1
        %v460 = vperm.slane %v220, 2
        %v461 = vperm.slane %v220, 3
        %v462 = vrot.slane %v459, 4
        %v463 = vrot.slane %v461, 4
        %v464 = vsel %vm242, %v458, %v462
        %v465 = vsel %vm242, %v460, %v463
        %466 = vrot.lane.b32.xlu0 %v464, 63
        %v467 = vpop.permute.xlu0 %466
        %468 = vrot.lane.b32.xlu0 %v465, 63
        %v469 = vpop.permute.xlu0 %468
        %v470 = vrot.slane %v467, 4
        %v471 = vrot.slane %v469, 4
        %vm472 = vcmask 515072
        %v473 = vsel %vm472, %v470, %v467
        %v474 = vsel %vm242, %v470, %v471
        %v475 = vsel %vm472, %v474, %v469
        %v479 = vmul.f32 %v454, %v473
        %v480 = vmul.f32 %v455, %v475
        %v481 = vmul.f32 %v456, %v471
        %485 = vst [vmem:[#allocation1] ss:$2 sm:$0xff] %v479
        %s486 = scalar_lea.vmem [#allocation1], 16
        %487 = vst [vmem:[%s486] ss:$2 sm:$0xff] %v480
        %s488 = scalar_lea.vmem [#allocation1], 32
        %489 = vst [vmem:[%s488] ss:$2 sm:$0xff] %v481
        %v490 = vld.sshfl [vmem:[#allocation1] sm:$0xff pattern:$0x75316420]
        %v491 = vld.sshfl [vmem:[#allocation1 + $0x8] sm:$0xff pattern:$0x75316420]
        %v492 = vld.sshfl [vmem:[#allocation1 + $0x10] sm:$0xff pattern:$0x75316420]
        %v493 = vld.sshfl [vmem:[#allocation1 + $0x18] sm:$0xff pattern:$0x75316420]
        %v494 = vld.sshfl [vmem:[#allocation1 + $0x20] sm:$0xff pattern:$0x75316420]
        %v500 = vpack.c.bf16 %v491, %v490
        %v501 = vpack.c.bf16 %v493, %v492
        %v502 = vpack.c.bf16 %v494, %v494
        %v506 = vrot.slane %v500, 6
        %v507 = vrot.slane %v501, 6
        %v508 = vrot.slane %v502, 6
        %509 = vrot.lane.b32.xlu0 %v506, 65
        %v510 = vpop.permute.xlu0 %509
        %511 = vrot.lane.b32.xlu0 %v507, 65
        %v512 = vpop.permute.xlu0 %511
        %513 = vrot.lane.b32.xlu0 %v508, 65
        %v514 = vpop.permute.xlu0 %513
        %v515 = vrot.slane %v510, 4
        %v516 = vrot.slane %v512, 4
        %v517 = vrot.slane %v514, 4
        %v518 = vsel %vm294, %v515, %v516
        %vm519 = vcmask 531456
        %v520 = vsel %vm519, %v510, %v518
        %v521 = vsel %vm294, %v516, %v517
        %v522 = vsel %vm519, %v512, %v521
        %525 = vst [vmem:[#allocation4 + $0x10] sm:$0xcc] %v520
        %526 = vst [vmem:[#allocation4 + $0x18] sm:$0xcc] %v522
        %v527 = vld [vmem:[#allocation2] sm:$0xff]
        %v528 = vld [vmem:[#allocation2 + $0x8] sm:$0x3]
        %530 = vst [vmem:[#allocation1] ss:$2 sm:$0xff] %v527
        %s532 = scalar_lea.vmem [#allocation1], 16
        %533 = vst [vmem:[%s532] ss:$2 sm:$0xff] %v528
        %v534 = vld.sshfl [vmem:[#allocation1] sm:$0xff pattern:$0x75643120]
        %v536 = vld.sshfl [vmem:[#allocation1 + $0x8] sm:$0xff pattern:$0x75643120]
        %v538 = vld.sshfl [vmem:[#allocation1 + $0x10] sm:$0xff pattern:$0x75643120]
        %540 = vrot.lane.b32.xlu0 %v534, 64
        %v541 = vpop.permute.xlu0 %540
        %542 = vrot.lane.b32.xlu0 %v536, 64
        %v543 = vpop.permute.xlu0 %542
        %544 = vrot.lane.b32.xlu0 %v538, 64
        %v545 = vpop.permute.xlu0 %544
        %v546 = vrot.slane %v541, 4
        %v547 = vrot.slane %v543, 4
        %v548 = vrot.slane %v545, 4
        %v549 = vsel %vm294, %v546, %v547
        %vm550 = vcmask 523264
        %v551 = vsel %vm550, %v541, %v549
        %v552 = vsel %vm294, %v547, %v548
        %v553 = vsel %vm550, %v543, %v552
        %556 = vst [vmem:[#allocation4 + $0x20] sm:$0x33] %v551
        %557 = vst [vmem:[#allocation4 + $0x28] sm:$0x33] %v553
        %v558 = vld [vmem:[#allocation2] sm:$0xff]
        %v559 = vld [vmem:[#allocation2 + $0x8] sm:$0x3]
        %v560 = vunpack.c.l.bf16 %v558
        %v561 = vunpack.c.h.bf16 %v558
        %v562 = vunpack.c.l.bf16 %v559
        %v564 = vperm.slane %v222, 0
        %v565 = vperm.slane %v222, 1
        %v566 = vperm.slane %v222, 2
        %v567 = vperm.slane %v222, 3
        %v568 = vrot.slane %v565, 4
        %v569 = vrot.slane %v567, 4
        %v570 = vsel %vm242, %v564, %v568
        %v571 = vsel %vm242, %v566, %v569
        %572 = vrot.lane.b32.xlu0 %v570, 65
        %v573 = vpop.permute.xlu0 %572
        %574 = vrot.lane.b32.xlu0 %v571, 65
        %v575 = vpop.permute.xlu0 %574
        %v576 = vrot.slane %v573, 4
        %v577 = vrot.slane %v575, 4
        %vm578 = vcmask 531456
        %v579 = vsel %vm578, %v576, %v573
        %v580 = vsel %vm242, %v576, %v577
        %v581 = vsel %vm578, %v580, %v575
        %v585 = vmul.f32 %v560, %v579
        %v586 = vmul.f32 %v561, %v581
        %v587 = vmul.f32 %v562, %v577
        %591 = vst [vmem:[#allocation1] ss:$2 sm:$0xff] %v585
        %s592 = scalar_lea.vmem [#allocation1], 16
        %593 = vst [vmem:[%s592] ss:$2 sm:$0xff] %v586
        %s594 = scalar_lea.vmem [#allocation1], 32
        %595 = vst [vmem:[%s594] ss:$2 sm:$0xff] %v587
        %v596 = vld.sshfl [vmem:[#allocation1] sm:$0xff pattern:$0x75316420]
        %v597 = vld.sshfl [vmem:[#allocation1 + $0x8] sm:$0xff pattern:$0x75316420]
        %v598 = vld.sshfl [vmem:[#allocation1 + $0x10] sm:$0xff pattern:$0x75316420]
        %v599 = vld.sshfl [vmem:[#allocation1 + $0x18] sm:$0xff pattern:$0x75316420]
        %v600 = vld.sshfl [vmem:[#allocation1 + $0x20] sm:$0xff pattern:$0x75316420]
        %v606 = vpack.c.bf16 %v597, %v596
        %v607 = vpack.c.bf16 %v599, %v598
        %v608 = vpack.c.bf16 %v600, %v600
        %v612 = vrot.slane %v606, 6
        %v613 = vrot.slane %v607, 6
        %v614 = vrot.slane %v608, 6
        %615 = vrot.lane.b32.xlu0 %v612, 63
        %v616 = vpop.permute.xlu0 %615
        %617 = vrot.lane.b32.xlu0 %v613, 63
        %v618 = vpop.permute.xlu0 %617
        %619 = vrot.lane.b32.xlu0 %v614, 63
        %v620 = vpop.permute.xlu0 %619
        %v621 = vrot.slane %v616, 4
        %v622 = vrot.slane %v618, 4
        %v623 = vrot.slane %v620, 4
        %v624 = vsel %vm294, %v621, %v622
        %vm625 = vcmask 515072
        %v626 = vsel %vm625, %v616, %v624
        %v627 = vsel %vm294, %v622, %v623
        %v628 = vsel %vm625, %v618, %v627
        %631 = vst [vmem:[#allocation4 + $0x20] sm:$0xcc] %v626
        %632 = vst [vmem:[#allocation4 + $0x28] sm:$0xcc] %v628
        %v633 = vld [vmem:[#allocation2] sm:$0xff]
        %v634 = vld [vmem:[#allocation2 + $0x8] sm:$0x3]
        %v635 = vmul.f32 %v218, %v220
        %v636 = vunpack.c.l.bf16 %v633
        %v637 = vunpack.c.h.bf16 %v633
        %v638 = vunpack.c.l.bf16 %v634
        %v640 = vperm.slane %v635, 0
        %v641 = vperm.slane %v635, 1
        %v642 = vperm.slane %v635, 2
        %v643 = vperm.slane %v635, 3
        %v644 = vrot.slane %v641, 4
        %v645 = vrot.slane %v643, 4
        %v646 = vsel %vm242, %v640, %v644
        %v647 = vsel %vm242, %v642, %v645
        %648 = vrot.lane.b32.xlu0 %v646, 71
        %v649 = vpop.permute.xlu0 %648
        %650 = vrot.lane.b32.xlu0 %v647, 71
        %v651 = vpop.permute.xlu0 %650
        %v652 = vrot.slane %v649, 4
        %v653 = vrot.slane %v651, 4
        %vm654 = vcmask 580608
        %v655 = vsel %vm654, %v652, %v649
        %v656 = vsel %vm242, %v652, %v653
        %v657 = vsel %vm654, %v656, %v651
        %v661 = vmul.f32 %v636, %v655
        %v662 = vmul.f32 %v637, %v657
        %v663 = vmul.f32 %v638, %v653
        %667 = vst [vmem:[#allocation1] ss:$2 sm:$0xff] %v661
        %s668 = scalar_lea.vmem [#allocation1], 16
        %669 = vst [vmem:[%s668] ss:$2 sm:$0xff] %v662
        %s670 = scalar_lea.vmem [#allocation1], 32
        %671 = vst [vmem:[%s670] ss:$2 sm:$0xff] %v663
        %v672 = vld.sshfl [vmem:[#allocation1] sm:$0xff pattern:$0x75316420]
        %v673 = vld.sshfl [vmem:[#allocation1 + $0x8] sm:$0xff pattern:$0x75316420]
        %v674 = vld.sshfl [vmem:[#allocation1 + $0x10] sm:$0xff pattern:$0x75316420]
        %v675 = vld.sshfl [vmem:[#allocation1 + $0x18] sm:$0xff pattern:$0x75316420]
        %v676 = vld.sshfl [vmem:[#allocation1 + $0x20] sm:$0xff pattern:$0x75316420]
        %v682 = vpack.c.bf16 %v673, %v672
        %v683 = vpack.c.bf16 %v675, %v674
        %v684 = vpack.c.bf16 %v676, %v676
        %688 = vrot.lane.b32.xlu0 %v682, 57
        %v689 = vpop.permute.xlu0 %688
        %690 = vrot.lane.b32.xlu0 %v683, 57
        %v691 = vpop.permute.xlu0 %690
        %692 = vrot.lane.b32.xlu0 %v684, 57
        %v693 = vpop.permute.xlu0 %692
        %v694 = vrot.slane %v689, 4
        %v695 = vrot.slane %v691, 4
        %v696 = vrot.slane %v693, 4
        %v697 = vsel %vm294, %v694, %v695
        %vm698 = vcmask 465920
        %v699 = vsel %vm698, %v689, %v697
        %v700 = vsel %vm294, %v695, %v696
        %v701 = vsel %vm698, %v691, %v700
        %704 = vst [vmem:[#allocation4 + $0x30] sm:$0x33] %v699
        %705 = vst [vmem:[#allocation4 + $0x38] sm:$0x33] %v701
        %v706 = vld [vmem:[#allocation2] sm:$0xff]
        %v707 = vld [vmem:[#allocation2 + $0x8] sm:$0x3]
        %v708 = vunpack.c.l.bf16 %v706
        %v709 = vunpack.c.h.bf16 %v706
        %v710 = vunpack.c.l.bf16 %v707
        %v712 = vperm.slane %v218, 0
        %v713 = vperm.slane %v218, 1
        %v714 = vperm.slane %v218, 2
        %v715 = vperm.slane %v218, 3
        %v716 = vrot.slane %v713, 4
        %v717 = vrot.slane %v715, 4
        %v718 = vsel %vm242, %v712, %v716
        %v719 = vsel %vm242, %v714, %v717
        %720 = vrot.lane.b32.xlu0 %v718, 72
        %v721 = vpop.permute.xlu0 %720
        %722 = vrot.lane.b32.xlu0 %v719, 72
        %v723 = vpop.permute.xlu0 %722
        %v724 = vrot.slane %v721, 4
        %v725 = vrot.slane %v723, 4
        %vm726 = vcmask 588800
        %v727 = vsel %vm726, %v724, %v721
        %v728 = vsel %vm242, %v724, %v725
        %v729 = vsel %vm726, %v728, %v723
        %v733 = vmul.f32 %v708, %v727
        %v734 = vmul.f32 %v709, %v729
        %v735 = vmul.f32 %v710, %v725
        %739 = vst [vmem:[#allocation1] ss:$2 sm:$0xff] %v733
        %s740 = scalar_lea.vmem [#allocation1], 16
        %741 = vst [vmem:[%s740] ss:$2 sm:$0xff] %v734
        %s742 = scalar_lea.vmem [#allocation1], 32
        %743 = vst [vmem:[%s742] ss:$2 sm:$0xff] %v735
        %v744 = vld.sshfl [vmem:[#allocation1] sm:$0xff pattern:$0x75316420]
        %v745 = vld.sshfl [vmem:[#allocation1 + $0x8] sm:$0xff pattern:$0x75316420]
        %v746 = vld.sshfl [vmem:[#allocation1 + $0x10] sm:$0xff pattern:$0x75316420]
        %v747 = vld.sshfl [vmem:[#allocation1 + $0x18] sm:$0xff pattern:$0x75316420]
        %v748 = vld.sshfl [vmem:[#allocation1 + $0x20] sm:$0xff pattern:$0x75316420]
        %v754 = vpack.c.bf16 %v745, %v744
        %v755 = vpack.c.bf16 %v747, %v746
        %v756 = vpack.c.bf16 %v748, %v748
        %v760 = vrot.slane %v754, 6
        %v761 = vrot.slane %v755, 6
        %v762 = vrot.slane %v756, 6
        %763 = vrot.lane.b32.xlu0 %v760, 56
        %v764 = vpop.permute.xlu0 %763
        %765 = vrot.lane.b32.xlu0 %v761, 56
        %v766 = vpop.permute.xlu0 %765
        %767 = vrot.lane.b32.xlu0 %v762, 56
        %v768 = vpop.permute.xlu0 %767
        %v769 = vrot.slane %v764, 4
        %v770 = vrot.slane %v766, 4
        %v771 = vrot.slane %v768, 4
        %v772 = vsel %vm294, %v769, %v770
        %vm773 = vcmask 457728
        %v774 = vsel %vm773, %v764, %v772
        %v775 = vsel %vm294, %v770, %v771
        %v776 = vsel %vm773, %v766, %v775
        %779 = vst [vmem:[#allocation4 + $0x30] sm:$0xcc] %v774
        %780 = vst [vmem:[#allocation4 + $0x38] sm:$0xcc] %v776
        %v781 = vld [vmem:[#allocation2] sm:$0xff]
        %v782 = vld [vmem:[#allocation2 + $0x8] sm:$0x3]
        %v783 = vmul.f32 %v218, %v222
        %v784 = vunpack.c.l.bf16 %v781
        %v785 = vunpack.c.h.bf16 %v781
        %v786 = vunpack.c.l.bf16 %v782
        %v788 = vperm.slane %v783, 0
        %v789 = vperm.slane %v783, 1
        %v790 = vperm.slane %v783, 2
        %v791 = vperm.slane %v783, 3
        %v792 = vrot.slane %v789, 4
        %v793 = vrot.slane %v791, 4
        %v794 = vsel %vm242, %v788, %v792
        %v795 = vsel %vm242, %v790, %v793
        %796 = vrot.lane.b32.xlu0 %v794, 73
        %v797 = vpop.permute.xlu0 %796
        %798 = vrot.lane.b32.xlu0 %v795, 73
        %v799 = vpop.permute.xlu0 %798
        %v800 = vrot.slane %v797, 4
        %v801 = vrot.slane %v799, 4
        %vm802 = vcmask 596992
        %v803 = vsel %vm802, %v800, %v797
        %v804 = vsel %vm242, %v800, %v801
        %v805 = vsel %vm802, %v804, %v799
        %v809 = vmul.f32 %v784, %v803
        %v810 = vmul.f32 %v785, %v805
        %v811 = vmul.f32 %v786, %v801
        %815 = vst [vmem:[#allocation1] ss:$2 sm:$0xff] %v809
        %s816 = scalar_lea.vmem [#allocation1], 16
        %817 = vst [vmem:[%s816] ss:$2 sm:$0xff] %v810
        %s818 = scalar_lea.vmem [#allocation1], 32
        %819 = vst [vmem:[%s818] ss:$2 sm:$0xff] %v811
        %v820 = vld.sshfl [vmem:[#allocation1] sm:$0xff pattern:$0x75316420]
        %v821 = vld.sshfl [vmem:[#allocation1 + $0x8] sm:$0xff pattern:$0x75316420]
        %v822 = vld.sshfl [vmem:[#allocation1 + $0x10] sm:$0xff pattern:$0x75316420]
        %v823 = vld.sshfl [vmem:[#allocation1 + $0x18] sm:$0xff pattern:$0x75316420]
        %v824 = vld.sshfl [vmem:[#allocation1 + $0x20] sm:$0xff pattern:$0x75316420]
        %v830 = vpack.c.bf16 %v821, %v820
        %v831 = vpack.c.bf16 %v823, %v822
        %v832 = vpack.c.bf16 %v824, %v824
        %836 = vrot.lane.b32.xlu0 %v830, 55
        %v837 = vpop.permute.xlu0 %836
        %838 = vrot.lane.b32.xlu0 %v831, 55
        %v839 = vpop.permute.xlu0 %838
        %840 = vrot.lane.b32.xlu0 %v832, 55
        %v841 = vpop.permute.xlu0 %840
        %v842 = vrot.slane %v837, 4
        %v843 = vrot.slane %v839, 4
        %v844 = vrot.slane %v841, 4
        %v845 = vsel %vm294, %v842, %v843
        %vm846 = vcmask 449536
        %v847 = vsel %vm846, %v837, %v845
        %v848 = vsel %vm294, %v843, %v844
        %v849 = vsel %vm846, %v839, %v848
        %852 = vst [vmem:[#allocation4 + $0x40] sm:$0x33] %v847
        %853 = vst [vmem:[#allocation4 + $0x48] sm:$0x33] %v849
        %v854 = vld [vmem:[#allocation2] sm:$0xff]
        %v855 = vld [vmem:[#allocation2 + $0x8] sm:$0x3]
        %v856 = vunpack.c.l.bf16 %v854
        %v857 = vunpack.c.h.bf16 %v854
        %v858 = vunpack.c.l.bf16 %v855
        %859 = vrot.lane.b32.xlu0 %v243, 119
        %v860 = vpop.permute.xlu0 %859
        %861 = vrot.lane.b32.xlu0 %v244, 119
        %v862 = vpop.permute.xlu0 %861
        %v863 = vrot.slane %v860, 4
        %v864 = vrot.slane %v862, 4
        %vm865 = vcmask 973824
        %v866 = vsel %vm865, %v863, %v860
        %v867 = vsel %vm242, %v863, %v864
        %v868 = vsel %vm865, %v867, %v862
        %v872 = vmul.f32 %v856, %v866
        %v873 = vmul.f32 %v857, %v868
        %v874 = vmul.f32 %v858, %v864
        %878 = vst [vmem:[#allocation1] ss:$2 sm:$0xff] %v872
        %s879 = scalar_lea.vmem [#allocation1], 16
        %880 = vst [vmem:[%s879] ss:$2 sm:$0xff] %v873
        %s881 = scalar_lea.vmem [#allocation1], 32
        %882 = vst [vmem:[%s881] ss:$2 sm:$0xff] %v874
        %v883 = vld.sshfl [vmem:[#allocation1] sm:$0xff pattern:$0x75316420]
        %v884 = vld.sshfl [vmem:[#allocation1 + $0x8] sm:$0xff pattern:$0x75316420]
        %v885 = vld.sshfl [vmem:[#allocation1 + $0x10] sm:$0xff pattern:$0x75316420]
        %v886 = vld.sshfl [vmem:[#allocation1 + $0x18] sm:$0xff pattern:$0x75316420]
        %v887 = vld.sshfl [vmem:[#allocation1 + $0x20] sm:$0xff pattern:$0x75316420]
        %v893 = vpack.c.bf16 %v884, %v883
        %v894 = vpack.c.bf16 %v886, %v885
        %v895 = vpack.c.bf16 %v887, %v887
        %v899 = vrot.slane %v893, 6
        %v900 = vrot.slane %v894, 6
        %v901 = vrot.slane %v895, 6
        %902 = vrot.lane.b32.xlu0 %v899, 9
        %v903 = vpop.permute.xlu0 %902
        %904 = vrot.lane.b32.xlu0 %v900, 9
        %v905 = vpop.permute.xlu0 %904
        %906 = vrot.lane.b32.xlu0 %v901, 9
        %v907 = vpop.permute.xlu0 %906
        %v908 = vrot.slane %v903, 4
        %v909 = vrot.slane %v905, 4
        %v910 = vrot.slane %v907, 4
        %v911 = vsel %vm294, %v908, %v909
        %vm912 = vcmask 72704
        %v913 = vsel %vm912, %v903, %v911
        %v914 = vsel %vm294, %v909, %v910
        %v915 = vsel %vm912, %v905, %v914
        %918 = vst [vmem:[#allocation4 + $0x40] sm:$0xcc] %v913
        %919 = vst [vmem:[#allocation4 + $0x48] sm:$0xcc] %v915
        %v920 = vld [vmem:[#allocation2] sm:$0xff]
        %v921 = vld [vmem:[#allocation2 + $0x8] sm:$0x3]
        %v922 = vunpack.c.l.bf16 %v920
        %v923 = vunpack.c.h.bf16 %v920
        %v924 = vunpack.c.l.bf16 %v921
        %925 = vrot.lane.b32.xlu0 %v316, 120
        %v926 = vpop.permute.xlu0 %925
        %927 = vrot.lane.b32.xlu0 %v317, 120
        %v928 = vpop.permute.xlu0 %927
        %v929 = vrot.slane %v926, 4
        %v930 = vrot.slane %v928, 4
        %vm931 = vcmask 982016
        %v932 = vsel %vm931, %v929, %v926
        %v933 = vsel %vm242, %v929, %v930
        %v934 = vsel %vm931, %v933, %v928
        %v938 = vmul.f32 %v922, %v932
        %v939 = vmul.f32 %v923, %v934
        %v940 = vmul.f32 %v924, %v930
        %944 = vst [vmem:[#allocation1] ss:$2 sm:$0xff] %v938
        %s945 = scalar_lea.vmem [#allocation1], 16
        %946 = vst [vmem:[%s945] ss:$2 sm:$0xff] %v939
        %s947 = scalar_lea.vmem [#allocation1], 32
        %948 = vst [vmem:[%s947] ss:$2 sm:$0xff] %v940
        %v949 = vld.sshfl [vmem:[#allocation1] sm:$0xff pattern:$0x75316420]
        %v950 = vld.sshfl [vmem:[#allocation1 + $0x8] sm:$0xff pattern:$0x75316420]
        %v951 = vld.sshfl [vmem:[#allocation1 + $0x10] sm:$0xff pattern:$0x75316420]
        %v952 = vld.sshfl [vmem:[#allocation1 + $0x18] sm:$0xff pattern:$0x75316420]
        %v953 = vld.sshfl [vmem:[#allocation1 + $0x20] sm:$0xff pattern:$0x75316420]
        %v959 = vpack.c.bf16 %v950, %v949
        %v960 = vpack.c.bf16 %v952, %v951
        %v961 = vpack.c.bf16 %v953, %v953
        %965 = vrot.lane.b32.xlu0 %v959, 8
        %v966 = vpop.permute.xlu0 %965
        %967 = vrot.lane.b32.xlu0 %v960, 8
        %v968 = vpop.permute.xlu0 %967
        %969 = vrot.lane.b32.xlu0 %v961, 8
        %v970 = vpop.permute.xlu0 %969
        %v971 = vrot.slane %v966, 4
        %v972 = vrot.slane %v968, 4
        %v973 = vrot.slane %v970, 4
        %v974 = vsel %vm294, %v971, %v972
        %vm975 = vcmask 64512
        %v976 = vsel %vm975, %v966, %v974
        %v977 = vsel %vm294, %v972, %v973
        %v978 = vsel %vm975, %v968, %v977
        %981 = vst [vmem:[#allocation4 + $0x50] sm:$0x33] %v976
        %982 = vst [vmem:[#allocation4 + $0x58] sm:$0x33] %v978
        %v983 = vld [vmem:[#allocation2] sm:$0xff]
        %v984 = vld [vmem:[#allocation2 + $0x8] sm:$0x3]
        %v985 = vunpack.c.l.bf16 %v983
        %v986 = vunpack.c.h.bf16 %v983
        %v987 = vunpack.c.l.bf16 %v984
        %988 = vrot.lane.b32.xlu0 %v392, 121
        %v989 = vpop.permute.xlu0 %988
        %990 = vrot.lane.b32.xlu0 %v393, 121
        %v991 = vpop.permute.xlu0 %990
        %v992 = vrot.slane %v989, 4
        %v993 = vrot.slane %v991, 4
        %vm994 = vcmask 990208
        %v995 = vsel %vm994, %v992, %v989
        %v996 = vsel %vm242, %v992, %v993
        %v997 = vsel %vm994, %v996, %v991
        %v1001 = vmul.f32 %v985, %v995
        %v1002 = vmul.f32 %v986, %v997
        %v1003 = vmul.f32 %v987, %v993
        %1007 = vst [vmem:[#allocation1] ss:$2 sm:$0xff] %v1001
        %s1008 = scalar_lea.vmem [#allocation1], 16
        %1009 = vst [vmem:[%s1008] ss:$2 sm:$0xff] %v1002
        %s1010 = scalar_lea.vmem [#allocation1], 32
        %1011 = vst [vmem:[%s1010] ss:$2 sm:$0xff] %v1003
        %v1012 = vld.sshfl [vmem:[#allocation1] sm:$0xff pattern:$0x75316420]
        %v1013 = vld.sshfl [vmem:[#allocation1 + $0x8] sm:$0xff pattern:$0x75316420]
        %v1014 = vld.sshfl [vmem:[#allocation1 + $0x10] sm:$0xff pattern:$0x75316420]
        %v1015 = vld.sshfl [vmem:[#allocation1 + $0x18] sm:$0xff pattern:$0x75316420]
        %v1016 = vld.sshfl [vmem:[#allocation1 + $0x20] sm:$0xff pattern:$0x75316420]
        %v1022 = vpack.c.bf16 %v1013, %v1012
        %v1023 = vpack.c.bf16 %v1015, %v1014
        %v1024 = vpack.c.bf16 %v1016, %v1016
        %v1028 = vrot.slane %v1022, 6
        %v1029 = vrot.slane %v1023, 6
        %v1030 = vrot.slane %v1024, 6
        %1031 = vrot.lane.b32.xlu0 %v1028, 7
        %v1032 = vpop.permute.xlu0 %1031
        %1033 = vrot.lane.b32.xlu0 %v1029, 7
        %v1034 = vpop.permute.xlu0 %1033
        %1035 = vrot.lane.b32.xlu0 %v1030, 7
        %v1036 = vpop.permute.xlu0 %1035
        %v1037 = vrot.slane %v1032, 4
        %v1038 = vrot.slane %v1034, 4
        %v1039 = vrot.slane %v1036, 4
        %v1040 = vsel %vm294, %v1037, %v1038
        %vm1041 = vcmask 56320
        %v1042 = vsel %vm1041, %v1032, %v1040
        %v1043 = vsel %vm294, %v1038, %v1039
        %v1044 = vsel %vm1041, %v1034, %v1043
        %1047 = vst [vmem:[#allocation4 + $0x50] sm:$0xcc] %v1042
        %1048 = vst [vmem:[#allocation4 + $0x58] sm:$0xcc] %v1044
        %v1049 = vld [vmem:[#allocation2] sm:$0xff]
        %v1050 = vld [vmem:[#allocation2 + $0x8] sm:$0x3]
        %v1051 = vunpack.c.l.bf16 %v1049
        %v1052 = vunpack.c.h.bf16 %v1049
        %v1053 = vunpack.c.l.bf16 %v1050
        %1054 = vrot.lane.b32.xlu0 %v464, 127
        %v1055 = vpop.permute.xlu0 %1054
        %1056 = vrot.lane.b32.xlu0 %v465, 127
        %v1057 = vpop.permute.xlu0 %1056
        %v1058 = vrot.slane %v1055, 4
        %v1059 = vrot.slane %v1057, 4
        %vm1060 = vcmask 1039360
        %v1061 = vsel %vm1060, %v1058, %v1055
        %v1062 = vsel %vm242, %v1058, %v1059
        %v1063 = vsel %vm1060, %v1062, %v1057
        %v1067 = vmul.f32 %v1051, %v1061
        %v1068 = vmul.f32 %v1052, %v1063
        %v1069 = vmul.f32 %v1053, %v1059
        %1073 = vst [vmem:[#allocation1] ss:$2 sm:$0xff] %v1067
        %s1074 = scalar_lea.vmem [#allocation1], 16
        %1075 = vst [vmem:[%s1074] ss:$2 sm:$0xff] %v1068
        %s1076 = scalar_lea.vmem [#allocation1], 32
        %1077 = vst [vmem:[%s1076] ss:$2 sm:$0xff] %v1069
        %v1078 = vld.sshfl [vmem:[#allocation1] sm:$0xff pattern:$0x75316420]
        %v1079 = vld.sshfl [vmem:[#allocation1 + $0x8] sm:$0xff pattern:$0x75316420]
        %v1080 = vld.sshfl [vmem:[#allocation1 + $0x10] sm:$0xff pattern:$0x75316420]
        %v1081 = vld.sshfl [vmem:[#allocation1 + $0x18] sm:$0xff pattern:$0x75316420]
        %v1082 = vld.sshfl [vmem:[#allocation1 + $0x20] sm:$0xff pattern:$0x75316420]
        %v1088 = vpack.c.bf16 %v1079, %v1078
        %v1089 = vpack.c.bf16 %v1081, %v1080
        %v1090 = vpack.c.bf16 %v1082, %v1082
        %1094 = vrot.lane.b32.xlu0 %v1088, 1
        %v1095 = vpop.permute.xlu0 %1094
        %1096 = vrot.lane.b32.xlu0 %v1089, 1
        %v1097 = vpop.permute.xlu0 %1096
        %1098 = vrot.lane.b32.xlu0 %v1090, 1
        %v1099 = vpop.permute.xlu0 %1098
        %v1100 = vrot.slane %v1095, 4
        %v1101 = vrot.slane %v1097, 4
        %v1102 = vrot.slane %v1099, 4
        %v1103 = vsel %vm294, %v1100, %v1101
        %vm1104 = vcmask 7168
        %v1105 = vsel %vm1104, %v1095, %v1103
        %v1106 = vsel %vm294, %v1101, %v1102
        %v1107 = vsel %vm1104, %v1097, %v1106
        %1110 = vst [vmem:[#allocation4 + $0x60] sm:$0x33] %v1105
        %1111 = vst [vmem:[#allocation4 + $0x68] sm:$0x33] %v1107
        %v1112 = vld [vmem:[#allocation2 + $0x2] sm:$0xff]
        %s1114 = scalar_lea.vmem [#allocation1], 1
        %1115 = vst [vmem:[%s1114] ss:$2 sm:$0xff] %v1112
        %v1116 = vld.sshfl [vmem:[#allocation1] sm:$0xff pattern:$0x75643120]
        %v1117 = vld.sshfl [vmem:[#allocation1 + $0x8] sm:$0xff pattern:$0x75643120]
        %1120 = vst [vmem:[#allocation4 + $0x60] sm:$0xcc] %v1116
        %1121 = vst [vmem:[#allocation4 + $0x68] sm:$0xcc] %v1117
        %v1122 = vld [vmem:[#allocation2 + $0x2] sm:$0xff]
        %v1123 = vld [vmem:[#allocation2 + $0xa] sm:$0x3]
        %v1124 = vunpack.c.l.bf16 %v1122
        %v1125 = vunpack.c.h.bf16 %v1122
        %v1126 = vunpack.c.l.bf16 %v1123
        %1127 = vrot.lane.b32.xlu0 %v570, 1
        %v1128 = vpop.permute.xlu0 %1127
        %1129 = vrot.lane.b32.xlu0 %v571, 1
        %v1130 = vpop.permute.xlu0 %1129
        %v1131 = vrot.slane %v1128, 4
        %v1132 = vrot.slane %v1130, 4
        %vm1133 = vcmask 7168
        %v1134 = vsel %vm1133, %v1131, %v1128
        %v1135 = vsel %vm242, %v1131, %v1132
        %v1136 = vsel %vm1133, %v1135, %v1130
        %v1140 = vmul.f32 %v1124, %v1134
        %v1141 = vmul.f32 %v1125, %v1136
        %v1142 = vmul.f32 %v1126, %v1132
        %1146 = vst [vmem:[#allocation1] ss:$2 sm:$0xff] %v1140
        %s1147 = scalar_lea.vmem [#allocation1], 16
        %1148 = vst [vmem:[%s1147] ss:$2 sm:$0xff] %v1141
        %s1149 = scalar_lea.vmem [#allocation1], 32
        %1150 = vst [vmem:[%s1149] ss:$2 sm:$0xff] %v1142
        %v1151 = vld.sshfl [vmem:[#allocation1] sm:$0xff pattern:$0x75316420]
        %v1152 = vld.sshfl [vmem:[#allocation1 + $0x8] sm:$0xff pattern:$0x75316420]
        %v1153 = vld.sshfl [vmem:[#allocation1 + $0x10] sm:$0xff pattern:$0x75316420]
        %v1154 = vld.sshfl [vmem:[#allocation1 + $0x18] sm:$0xff pattern:$0x75316420]
        %v1155 = vld.sshfl [vmem:[#allocation1 + $0x20] sm:$0xff pattern:$0x75316420]
        %v1161 = vpack.c.bf16 %v1152, %v1151
        %v1162 = vpack.c.bf16 %v1154, %v1153
        %v1163 = vpack.c.bf16 %v1155, %v1155
        %1167 = vrot.lane.b32.xlu0 %v1161, 127
        %v1168 = vpop.permute.xlu0 %1167
        %1169 = vrot.lane.b32.xlu0 %v1162, 127
        %v1170 = vpop.permute.xlu0 %1169
        %1171 = vrot.lane.b32.xlu0 %v1163, 127
        %v1172 = vpop.permute.xlu0 %1171
        %v1173 = vrot.slane %v1168, 4
        %v1174 = vrot.slane %v1170, 4
        %v1175 = vrot.slane %v1172, 4
        %v1176 = vsel %vm294, %v1173, %v1174
        %vm1177 = vcmask 1039360
        %v1178 = vsel %vm1177, %v1168, %v1176
        %v1179 = vsel %vm294, %v1174, %v1175
        %v1180 = vsel %vm1177, %v1170, %v1179
        %1183 = vst [vmem:[#allocation4 + $0x70] sm:$0x33] %v1178
        %1184 = vst [vmem:[#allocation4 + $0x78] sm:$0x33] %v1180
        %v1185 = vld [vmem:[#allocation2 + $0x2] sm:$0xff]
        %v1186 = vld [vmem:[#allocation2 + $0xa] sm:$0x3]
        %v1187 = vunpack.c.l.bf16 %v1185
        %v1188 = vunpack.c.h.bf16 %v1185
        %v1189 = vunpack.c.l.bf16 %v1186
        %1190 = vrot.lane.b32.xlu0 %v646, 7
        %v1191 = vpop.permute.xlu0 %1190
        %1192 = vrot.lane.b32.xlu0 %v647, 7
        %v1193 = vpop.permute.xlu0 %1192
        %v1194 = vrot.slane %v1191, 4
        %v1195 = vrot.slane %v1193, 4
        %vm1196 = vcmask 56320
        %v1197 = vsel %vm1196, %v1194, %v1191
        %v1198 = vsel %vm242, %v1194, %v1195
        %v1199 = vsel %vm1196, %v1198, %v1193
        %v1203 = vmul.f32 %v1187, %v1197
        %v1204 = vmul.f32 %v1188, %v1199
        %v1205 = vmul.f32 %v1189, %v1195
        %1209 = vst [vmem:[#allocation1] ss:$2 sm:$0xff] %v1203
        %s1210 = scalar_lea.vmem [#allocation1], 16
        %1211 = vst [vmem:[%s1210] ss:$2 sm:$0xff] %v1204
        %s1212 = scalar_lea.vmem [#allocation1], 32
        %1213 = vst [vmem:[%s1212] ss:$2 sm:$0xff] %v1205
        %v1214 = vld.sshfl [vmem:[#allocation1] sm:$0xff pattern:$0x75316420]
        %v1215 = vld.sshfl [vmem:[#allocation1 + $0x8] sm:$0xff pattern:$0x75316420]
        %v1216 = vld.sshfl [vmem:[#allocation1 + $0x10] sm:$0xff pattern:$0x75316420]
        %v1217 = vld.sshfl [vmem:[#allocation1 + $0x18] sm:$0xff pattern:$0x75316420]
        %v1218 = vld.sshfl [vmem:[#allocation1 + $0x20] sm:$0xff pattern:$0x75316420]
        %v1224 = vpack.c.bf16 %v1215, %v1214
        %v1225 = vpack.c.bf16 %v1217, %v1216
        %v1226 = vpack.c.bf16 %v1218, %v1218
        %v1230 = vrot.slane %v1224, 6
        %v1231 = vrot.slane %v1225, 6
        %v1232 = vrot.slane %v1226, 6
        %1233 = vrot.lane.b32.xlu0 %v1230, 121
        %v1234 = vpop.permute.xlu0 %1233
        %1235 = vrot.lane.b32.xlu0 %v1231, 121
        %v1236 = vpop.permute.xlu0 %1235
        %1237 = vrot.lane.b32.xlu0 %v1232, 121
        %v1238 = vpop.permute.xlu0 %1237
        %v1239 = vrot.slane %v1234, 4
        %v1240 = vrot.slane %v1236, 4
        %v1241 = vrot.slane %v1238, 4
        %v1242 = vsel %vm294, %v1239, %v1240
        %vm1243 = vcmask 990208
        %v1244 = vsel %vm1243, %v1234, %v1242
        %v1245 = vsel %vm294, %v1240, %v1241
        %v1246 = vsel %vm1243, %v1236, %v1245
        %1249 = vst [vmem:[#allocation4 + $0x70] sm:$0xcc] %v1244
        %1250 = vst [vmem:[#allocation4 + $0x78] sm:$0xcc] %v1246
        %v1251 = vld [vmem:[#allocation2 + $0x2] sm:$0xff]
        %v1252 = vld [vmem:[#allocation2 + $0xa] sm:$0x3]
        %v1253 = vunpack.c.l.bf16 %v1251
        %v1254 = vunpack.c.h.bf16 %v1251
        %v1255 = vunpack.c.l.bf16 %v1252
        %1256 = vrot.lane.b32.xlu0 %v718, 8
        %v1257 = vpop.permute.xlu0 %1256
        %1258 = vrot.lane.b32.xlu0 %v719, 8
        %v1259 = vpop.permute.xlu0 %1258
        %v1260 = vrot.slane %v1257, 4
        %v1261 = vrot.slane %v1259, 4
        %vm1262 = vcmask 64512
        %v1263 = vsel %vm1262, %v1260, %v1257
        %v1264 = vsel %vm242, %v1260, %v1261
        %v1265 = vsel %vm1262, %v1264, %v1259
        %v1269 = vmul.f32 %v1253, %v1263
        %v1270 = vmul.f32 %v1254, %v1265
        %v1271 = vmul.f32 %v1255, %v1261
        %1275 = vst [vmem:[#allocation1] ss:$2 sm:$0xff] %v1269
        %s1276 = scalar_lea.vmem [#allocation1], 16
        %1277 = vst [vmem:[%s1276] ss:$2 sm:$0xff] %v1270
        %s1278 = scalar_lea.vmem [#allocation1], 32
        %1279 = vst [vmem:[%s1278] ss:$2 sm:$0xff] %v1271
        %v1280 = vld.sshfl [vmem:[#allocation1] sm:$0xff pattern:$0x75316420]
        %v1281 = vld.sshfl [vmem:[#allocation1 + $0x8] sm:$0xff pattern:$0x75316420]
        %v1282 = vld.sshfl [vmem:[#allocation1 + $0x10] sm:$0xff pattern:$0x75316420]
        %v1283 = vld.sshfl [vmem:[#allocation1 + $0x18] sm:$0xff pattern:$0x75316420]
        %v1284 = vld.sshfl [vmem:[#allocation1 + $0x20] sm:$0xff pattern:$0x75316420]
        %v1290 = vpack.c.bf16 %v1281, %v1280
        %v1291 = vpack.c.bf16 %v1283, %v1282
        %v1292 = vpack.c.bf16 %v1284, %v1284
        %1296 = vrot.lane.b32.xlu0 %v1290, 120
        %v1297 = vpop.permute.xlu0 %1296
        %1298 = vrot.lane.b32.xlu0 %v1291, 120
        %v1299 = vpop.permute.xlu0 %1298
        %1300 = vrot.lane.b32.xlu0 %v1292, 120
        %v1301 = vpop.permute.xlu0 %1300
        %v1302 = vrot.slane %v1297, 4
        %v1303 = vrot.slane %v1299, 4
        %v1304 = vrot.slane %v1301, 4
        %v1305 = vsel %vm294, %v1302, %v1303
        %vm1306 = vcmask 982016
        %v1307 = vsel %vm1306, %v1297, %v1305
        %v1308 = vsel %vm294, %v1303, %v1304
        %v1309 = vsel %vm1306, %v1299, %v1308
        %1312 = vst [vmem:[#allocation4 + $0x80] sm:$0x33] %v1307
        %1313 = vst [vmem:[#allocation4 + $0x88] sm:$0x33] %v1309
        %v1314 = vld [vmem:[#allocation2 + $0x2] sm:$0xff]
        %v1315 = vld [vmem:[#allocation2 + $0xa] sm:$0x3]
        %v1316 = vunpack.c.l.bf16 %v1314
        %v1317 = vunpack.c.h.bf16 %v1314
        %v1318 = vunpack.c.l.bf16 %v1315
        %1319 = vrot.lane.b32.xlu0 %v794, 9
        %v1320 = vpop.permute.xlu0 %1319
        %1321 = vrot.lane.b32.xlu0 %v795, 9
        %v1322 = vpop.permute.xlu0 %1321
        %v1323 = vrot.slane %v1320, 4
        %v1324 = vrot.slane %v1322, 4
        %vm1325 = vcmask 72704
        %v1326 = vsel %vm1325, %v1323, %v1320
        %v1327 = vsel %vm242, %v1323, %v1324
        %v1328 = vsel %vm1325, %v1327, %v1322
        %v1332 = vmul.f32 %v1316, %v1326
        %v1333 = vmul.f32 %v1317, %v1328
        %v1334 = vmul.f32 %v1318, %v1324
        %1338 = vst [vmem:[#allocation1] ss:$2 sm:$0xff] %v1332
        %s1339 = scalar_lea.vmem [#allocation1], 16
        %1340 = vst [vmem:[%s1339] ss:$2 sm:$0xff] %v1333
        %s1341 = scalar_lea.vmem [#allocation1], 32
        %1342 = vst [vmem:[%s1341] ss:$2 sm:$0xff] %v1334
        %v1343 = vld.sshfl [vmem:[#allocation1] sm:$0xff pattern:$0x75316420]
        %v1344 = vld.sshfl [vmem:[#allocation1 + $0x8] sm:$0xff pattern:$0x75316420]
        %v1345 = vld.sshfl [vmem:[#allocation1 + $0x10] sm:$0xff pattern:$0x75316420]
        %v1346 = vld.sshfl [vmem:[#allocation1 + $0x18] sm:$0xff pattern:$0x75316420]
        %v1347 = vld.sshfl [vmem:[#allocation1 + $0x20] sm:$0xff pattern:$0x75316420]
        %v1353 = vpack.c.bf16 %v1344, %v1343
        %v1354 = vpack.c.bf16 %v1346, %v1345
        %v1355 = vpack.c.bf16 %v1347, %v1347
        %v1359 = vrot.slane %v1353, 6
        %v1360 = vrot.slane %v1354, 6
        %v1361 = vrot.slane %v1355, 6
        %1362 = vrot.lane.b32.xlu0 %v1359, 119
        %v1363 = vpop.permute.xlu0 %1362
        %1364 = vrot.lane.b32.xlu0 %v1360, 119
        %v1365 = vpop.permute.xlu0 %1364
        %1366 = vrot.lane.b32.xlu0 %v1361, 119
        %v1367 = vpop.permute.xlu0 %1366
        %v1368 = vrot.slane %v1363, 4
        %v1369 = vrot.slane %v1365, 4
        %v1370 = vrot.slane %v1367, 4
        %v1371 = vsel %vm294, %v1368, %v1369
        %vm1372 = vcmask 973824
        %v1373 = vsel %vm1372, %v1363, %v1371
        %v1374 = vsel %vm294, %v1369, %v1370
        %v1375 = vsel %vm1372, %v1365, %v1374
        %1378 = vst [vmem:[#allocation4 + $0x80] sm:$0xcc] %v1373
        %1379 = vst [vmem:[#allocation4 + $0x88] sm:$0xcc] %v1375
        %v1380 = vld [vmem:[#allocation2 + $0x2] sm:$0xff]
        %v1381 = vld [vmem:[#allocation2 + $0xa] sm:$0x3]
        %v1382 = vunpack.c.l.bf16 %v1380
        %v1383 = vunpack.c.h.bf16 %v1380
        %v1384 = vunpack.c.l.bf16 %v1381
        %v1385 = vmul.f32 %v1382, %v252
        %v1386 = vmul.f32 %v1383, %v254
        %v1387 = vmul.f32 %v1384, %v250
        %1391 = vst [vmem:[#allocation1] ss:$2 sm:$0xff] %v1385
        %s1392 = scalar_lea.vmem [#allocation1], 16
        %1393 = vst [vmem:[%s1392] ss:$2 sm:$0xff] %v1386
        %s1394 = scalar_lea.vmem [#allocation1], 32
        %1395 = vst [vmem:[%s1394] ss:$2 sm:$0xff] %v1387
        %v1396 = vld.sshfl [vmem:[#allocation1] sm:$0xff pattern:$0x75316420]
        %v1397 = vld.sshfl [vmem:[#allocation1 + $0x8] sm:$0xff pattern:$0x75316420]
        %v1398 = vld.sshfl [vmem:[#allocation1 + $0x10] sm:$0xff pattern:$0x75316420]
        %v1399 = vld.sshfl [vmem:[#allocation1 + $0x18] sm:$0xff pattern:$0x75316420]
        %v1400 = vld.sshfl [vmem:[#allocation1 + $0x20] sm:$0xff pattern:$0x75316420]
        %v1406 = vpack.c.bf16 %v1397, %v1396
        %v1407 = vpack.c.bf16 %v1399, %v1398
        %v1408 = vpack.c.bf16 %v1400, %v1400
        %1412 = vrot.lane.b32.xlu0 %v1406, 73
        %v1413 = vpop.permute.xlu0 %1412
        %1414 = vrot.lane.b32.xlu0 %v1407, 73
        %v1415 = vpop.permute.xlu0 %1414
        %1416 = vrot.lane.b32.xlu0 %v1408, 73
        %v1417 = vpop.permute.xlu0 %1416
        %v1418 = vrot.slane %v1413, 4
        %v1419 = vrot.slane %v1415, 4
        %v1420 = vrot.slane %v1417, 4
        %v1421 = vsel %vm294, %v1418, %v1419
        %v1422 = vsel %vm296, %v1413, %v1421
        %v1423 = vsel %vm294, %v1419, %v1420
        %v1424 = vsel %vm296, %v1415, %v1423
        %1427 = vst [vmem:[#allocation4 + $0x90] sm:$0x33] %v1422
        %1428 = vst [vmem:[#allocation4 + $0x98] sm:$0x33] %v1424
        %v1429 = vld [vmem:[#allocation2 + $0x2] sm:$0xff]
        %v1430 = vld [vmem:[#allocation2 + $0xa] sm:$0x3]
        %v1431 = vunpack.c.l.bf16 %v1429
        %v1432 = vunpack.c.h.bf16 %v1429
        %v1433 = vunpack.c.l.bf16 %v1430
        %v1434 = vmul.f32 %v1431, %v325
        %v1435 = vmul.f32 %v1432, %v327
        %v1436 = vmul.f32 %v1433, %v323
        %1440 = vst [vmem:[#allocation1] ss:$2 sm:$0xff] %v1434
        %s1441 = scalar_lea.vmem [#allocation1], 16
        %1442 = vst [vmem:[%s1441] ss:$2 sm:$0xff] %v1435
        %s1443 = scalar_lea.vmem [#allocation1], 32
        %1444 = vst [vmem:[%s1443] ss:$2 sm:$0xff] %v1436
        %v1445 = vld.sshfl [vmem:[#allocation1] sm:$0xff pattern:$0x75316420]
        %v1446 = vld.sshfl [vmem:[#allocation1 + $0x8] sm:$0xff pattern:$0x75316420]
        %v1447 = vld.sshfl [vmem:[#allocation1 + $0x10] sm:$0xff pattern:$0x75316420]
        %v1448 = vld.sshfl [vmem:[#allocation1 + $0x18] sm:$0xff pattern:$0x75316420]
        %v1449 = vld.sshfl [vmem:[#allocation1 + $0x20] sm:$0xff pattern:$0x75316420]
        %v1455 = vpack.c.bf16 %v1446, %v1445
        %v1456 = vpack.c.bf16 %v1448, %v1447
        %v1457 = vpack.c.bf16 %v1449, %v1449
        %v1461 = vrot.slane %v1455, 6
        %v1462 = vrot.slane %v1456, 6
        %v1463 = vrot.slane %v1457, 6
        %1464 = vrot.lane.b32.xlu0 %v1461, 72
        %v1465 = vpop.permute.xlu0 %1464
        %1466 = vrot.lane.b32.xlu0 %v1462, 72
        %v1467 = vpop.permute.xlu0 %1466
        %1468 = vrot.lane.b32.xlu0 %v1463, 72
        %v1469 = vpop.permute.xlu0 %1468
        %v1470 = vrot.slane %v1465, 4
        %v1471 = vrot.slane %v1467, 4
        %v1472 = vrot.slane %v1469, 4
        %v1473 = vsel %vm294, %v1470, %v1471
        %v1474 = vsel %vm371, %v1465, %v1473
        %v1475 = vsel %vm294, %v1471, %v1472
        %v1476 = vsel %vm371, %v1467, %v1475
        %1479 = vst [vmem:[#allocation4 + $0x90] sm:$0xcc] %v1474
        %1480 = vst [vmem:[#allocation4 + $0x98] sm:$0xcc] %v1476
        %v1481 = vld [vmem:[#allocation2 + $0x2] sm:$0xff]
        %v1482 = vld [vmem:[#allocation2 + $0xa] sm:$0x3]
        %v1483 = vunpack.c.l.bf16 %v1481
        %v1484 = vunpack.c.h.bf16 %v1481
        %v1485 = vunpack.c.l.bf16 %v1482
        %v1486 = vmul.f32 %v1483, %v401
        %v1487 = vmul.f32 %v1484, %v403
        %v1488 = vmul.f32 %v1485, %v399
        %1492 = vst [vmem:[#allocation1] ss:$2 sm:$0xff] %v1486
        %s1493 = scalar_lea.vmem [#allocation1], 16
        %1494 = vst [vmem:[%s1493] ss:$2 sm:$0xff] %v1487
        %s1495 = scalar_lea.vmem [#allocation1], 32
        %1496 = vst [vmem:[%s1495] ss:$2 sm:$0xff] %v1488
        %v1497 = vld.sshfl [vmem:[#allocation1] sm:$0xff pattern:$0x75316420]
        %v1498 = vld.sshfl [vmem:[#allocation1 + $0x8] sm:$0xff pattern:$0x75316420]
        %v1499 = vld.sshfl [vmem:[#allocation1 + $0x10] sm:$0xff pattern:$0x75316420]
        %v1500 = vld.sshfl [vmem:[#allocation1 + $0x18] sm:$0xff pattern:$0x75316420]
        %v1501 = vld.sshfl [vmem:[#allocation1 + $0x20] sm:$0xff pattern:$0x75316420]
        %v1507 = vpack.c.bf16 %v1498, %v1497
        %v1508 = vpack.c.bf16 %v1500, %v1499
        %v1509 = vpack.c.bf16 %v1501, %v1501
        %1513 = vrot.lane.b32.xlu0 %v1507, 71
        %v1514 = vpop.permute.xlu0 %1513
        %1515 = vrot.lane.b32.xlu0 %v1508, 71
        %v1516 = vpop.permute.xlu0 %1515
        %1517 = vrot.lane.b32.xlu0 %v1509, 71
        %v1518 = vpop.permute.xlu0 %1517
        %v1519 = vrot.slane %v1514, 4
        %v1520 = vrot.slane %v1516, 4
        %v1521 = vrot.slane %v1518, 4
        %v1522 = vsel %vm294, %v1519, %v1520
        %v1523 = vsel %vm444, %v1514, %v1522
        %v1524 = vsel %vm294, %v1520, %v1521
        %v1525 = vsel %vm444, %v1516, %v1524
        %1528 = vst [vmem:[#allocation4 + $0xa0] sm:$0x33] %v1523
        %1529 = vst [vmem:[#allocation4 + $0xa8] sm:$0x33] %v1525
        %v1530 = vld [vmem:[#allocation2 + $0x2] sm:$0xff]
        %v1531 = vld [vmem:[#allocation2 + $0xa] sm:$0x3]
        %v1532 = vunpack.c.l.bf16 %v1530
        %v1533 = vunpack.c.h.bf16 %v1530
        %v1534 = vunpack.c.l.bf16 %v1531
        %v1535 = vmul.f32 %v1532, %v473
        %v1536 = vmul.f32 %v1533, %v475
        %v1537 = vmul.f32 %v1534, %v471
        %1541 = vst [vmem:[#allocation1] ss:$2 sm:$0xff] %v1535
        %s1542 = scalar_lea.vmem [#allocation1], 16
        %1543 = vst [vmem:[%s1542] ss:$2 sm:$0xff] %v1536
        %s1544 = scalar_lea.vmem [#allocation1], 32
        %1545 = vst [vmem:[%s1544] ss:$2 sm:$0xff] %v1537
        %v1546 = vld.sshfl [vmem:[#allocation1] sm:$0xff pattern:$0x75316420]
        %v1547 = vld.sshfl [vmem:[#allocation1 + $0x8] sm:$0xff pattern:$0x75316420]
        %v1548 = vld.sshfl [vmem:[#allocation1 + $0x10] sm:$0xff pattern:$0x75316420]
        %v1549 = vld.sshfl [vmem:[#allocation1 + $0x18] sm:$0xff pattern:$0x75316420]
        %v1550 = vld.sshfl [vmem:[#allocation1 + $0x20] sm:$0xff pattern:$0x75316420]
        %v1556 = vpack.c.bf16 %v1547, %v1546
        %v1557 = vpack.c.bf16 %v1549, %v1548
        %v1558 = vpack.c.bf16 %v1550, %v1550
        %v1562 = vrot.slane %v1556, 6
        %v1563 = vrot.slane %v1557, 6
        %v1564 = vrot.slane %v1558, 6
        %1565 = vrot.lane.b32.xlu0 %v1562, 65
        %v1566 = vpop.permute.xlu0 %1565
        %1567 = vrot.lane.b32.xlu0 %v1563, 65
        %v1568 = vpop.permute.xlu0 %1567
        %1569 = vrot.lane.b32.xlu0 %v1564, 65
        %v1570 = vpop.permute.xlu0 %1569
        %v1571 = vrot.slane %v1566, 4
        %v1572 = vrot.slane %v1568, 4
        %v1573 = vrot.slane %v1570, 4
        %v1574 = vsel %vm294, %v1571, %v1572
        %v1575 = vsel %vm519, %v1566, %v1574
        %v1576 = vsel %vm294, %v1572, %v1573
        %v1577 = vsel %vm519, %v1568, %v1576
        %1580 = vst [vmem:[#allocation4 + $0xa0] sm:$0xcc] %v1575
        %1581 = vst [vmem:[#allocation4 + $0xa8] sm:$0xcc] %v1577
        %v1582 = vld [vmem:[#allocation2 + $0x2] sm:$0xff]
        %v1583 = vld [vmem:[#allocation2 + $0xa] sm:$0x3]
        %1585 = vst [vmem:[#allocation1] ss:$2 sm:$0xff] %v1582
        %s1587 = scalar_lea.vmem [#allocation1], 16
        %1588 = vst [vmem:[%s1587] ss:$2 sm:$0xff] %v1583
        %v1589 = vld.sshfl [vmem:[#allocation1] sm:$0xff pattern:$0x75643120]
        %v1591 = vld.sshfl [vmem:[#allocation1 + $0x8] sm:$0xff pattern:$0x75643120]
        %v1593 = vld.sshfl [vmem:[#allocation1 + $0x10] sm:$0xff pattern:$0x75643120]
        %1595 = vrot.lane.b32.xlu0 %v1589, 64
        %v1596 = vpop.permute.xlu0 %1595
        %1597 = vrot.lane.b32.xlu0 %v1591, 64
        %v1598 = vpop.permute.xlu0 %1597
        %1599 = vrot.lane.b32.xlu0 %v1593, 64
        %v1600 = vpop.permute.xlu0 %1599
        %v1601 = vrot.slane %v1596, 4
        %v1602 = vrot.slane %v1598, 4
        %v1603 = vrot.slane %v1600, 4
        %v1604 = vsel %vm294, %v1601, %v1602
        %v1605 = vsel %vm550, %v1596, %v1604
        %v1606 = vsel %vm294, %v1602, %v1603
        %v1607 = vsel %vm550, %v1598, %v1606
        %1610 = vst [vmem:[#allocation4 + $0xb0] sm:$0x33] %v1605
        %1611 = vst [vmem:[#allocation4 + $0xb8] sm:$0x33] %v1607
        %v1612 = vld [vmem:[#allocation2 + $0x2] sm:$0xff]
        %v1613 = vld [vmem:[#allocation2 + $0xa] sm:$0x3]
        %v1614 = vunpack.c.l.bf16 %v1612
        %v1615 = vunpack.c.h.bf16 %v1612
        %v1616 = vunpack.c.l.bf16 %v1613
        %v1617 = vmul.f32 %v1614, %v579
        %v1618 = vmul.f32 %v1615, %v581
        %v1619 = vmul.f32 %v1616, %v577
        %1623 = vst [vmem:[#allocation1] ss:$2 sm:$0xff] %v1617
        %s1624 = scalar_lea.vmem [#allocation1], 16
        %1625 = vst [vmem:[%s1624] ss:$2 sm:$0xff] %v1618
        %s1626 = scalar_lea.vmem [#allocation1], 32
        %1627 = vst [vmem:[%s1626] ss:$2 sm:$0xff] %v1619
        %v1628 = vld.sshfl [vmem:[#allocation1] sm:$0xff pattern:$0x75316420]
        %v1629 = vld.sshfl [vmem:[#allocation1 + $0x8] sm:$0xff pattern:$0x75316420]
        %v1630 = vld.sshfl [vmem:[#allocation1 + $0x10] sm:$0xff pattern:$0x75316420]
        %v1631 = vld.sshfl [vmem:[#allocation1 + $0x18] sm:$0xff pattern:$0x75316420]
        %v1632 = vld.sshfl [vmem:[#allocation1 + $0x20] sm:$0xff pattern:$0x75316420]
        %v1638 = vpack.c.bf16 %v1629, %v1628
        %v1639 = vpack.c.bf16 %v1631, %v1630
        %v1640 = vpack.c.bf16 %v1632, %v1632
        %v1644 = vrot.slane %v1638, 6
        %v1645 = vrot.slane %v1639, 6
        %v1646 = vrot.slane %v1640, 6
        %1647 = vrot.lane.b32.xlu0 %v1644, 63
        %v1648 = vpop.permute.xlu0 %1647
        %1649 = vrot.lane.b32.xlu0 %v1645, 63
        %v1650 = vpop.permute.xlu0 %1649
        %1651 = vrot.lane.b32.xlu0 %v1646, 63
        %v1652 = vpop.permute.xlu0 %1651
        %v1653 = vrot.slane %v1648, 4
        %v1654 = vrot.slane %v1650, 4
        %v1655 = vrot.slane %v1652, 4
        %v1656 = vsel %vm294, %v1653, %v1654
        %v1657 = vsel %vm625, %v1648, %v1656
        %v1658 = vsel %vm294, %v1654, %v1655
        %v1659 = vsel %vm625, %v1650, %v1658
        %1662 = vst [vmem:[#allocation4 + $0xb0] sm:$0xcc] %v1657
        %1663 = vst [vmem:[#allocation4 + $0xb8] sm:$0xcc] %v1659
        %v1664 = vld [vmem:[#allocation2 + $0x2] sm:$0xff]
        %v1665 = vld [vmem:[#allocation2 + $0xa] sm:$0x3]
        %v1666 = vunpack.c.l.bf16 %v1664
        %v1667 = vunpack.c.h.bf16 %v1664
        %v1668 = vunpack.c.l.bf16 %v1665
        %v1669 = vmul.f32 %v1666, %v655
        %v1670 = vmul.f32 %v1667, %v657
        %v1671 = vmul.f32 %v1668, %v653
        %1675 = vst [vmem:[#allocation1] ss:$2 sm:$0xff] %v1669
        %s1676 = scalar_lea.vmem [#allocation1], 16
        %1677 = vst [vmem:[%s1676] ss:$2 sm:$0xff] %v1670
        %s1678 = scalar_lea.vmem [#allocation1], 32
        %1679 = vst [vmem:[%s1678] ss:$2 sm:$0xff] %v1671
        %v1680 = vld.sshfl [vmem:[#allocation1] sm:$0xff pattern:$0x75316420]
        %v1681 = vld.sshfl [vmem:[#allocation1 + $0x8] sm:$0xff pattern:$0x75316420]
        %v1682 = vld.sshfl [vmem:[#allocation1 + $0x10] sm:$0xff pattern:$0x75316420]
        %v1683 = vld.sshfl [vmem:[#allocation1 + $0x18] sm:$0xff pattern:$0x75316420]
        %v1684 = vld.sshfl [vmem:[#allocation1 + $0x20] sm:$0xff pattern:$0x75316420]
        %v1690 = vpack.c.bf16 %v1681, %v1680
        %v1691 = vpack.c.bf16 %v1683, %v1682
        %v1692 = vpack.c.bf16 %v1684, %v1684
        %1696 = vrot.lane.b32.xlu0 %v1690, 57
        %v1697 = vpop.permute.xlu0 %1696
        %1698 = vrot.lane.b32.xlu0 %v1691, 57
        %v1699 = vpop.permute.xlu0 %1698
        %1700 = vrot.lane.b32.xlu0 %v1692, 57
        %v1701 = vpop.permute.xlu0 %1700
        %v1702 = vrot.slane %v1697, 4
        %v1703 = vrot.slane %v1699, 4
        %v1704 = vrot.slane %v1701, 4
        %v1705 = vsel %vm294, %v1702, %v1703
        %v1706 = vsel %vm698, %v1697, %v1705
        %v1707 = vsel %vm294, %v1703, %v1704
        %v1708 = vsel %vm698, %v1699, %v1707
        %1711 = vst [vmem:[#allocation4 + $0xc0] sm:$0x33] %v1706
        %1712 = vst [vmem:[#allocation4 + $0xc8] sm:$0x33] %v1708
        %v1713 = vld [vmem:[#allocation2 + $0x2] sm:$0xff]
        %v1714 = vld [vmem:[#allocation2 + $0xa] sm:$0x3]
        %v1715 = vunpack.c.l.bf16 %v1713
        %v1716 = vunpack.c.h.bf16 %v1713
        %v1717 = vunpack.c.l.bf16 %v1714
        %v1718 = vmul.f32 %v1715, %v727
        %v1719 = vmul.f32 %v1716, %v729
        %v1720 = vmul.f32 %v1717, %v725
        %1724 = vst [vmem:[#allocation1] ss:$2 sm:$0xff] %v1718
        %s1725 = scalar_lea.vmem [#allocation1], 16
        %1726 = vst [vmem:[%s1725] ss:$2 sm:$0xff] %v1719
        %s1727 = scalar_lea.vmem [#allocation1], 32
        %1728 = vst [vmem:[%s1727] ss:$2 sm:$0xff] %v1720
        %v1729 = vld.sshfl [vmem:[#allocation1] sm:$0xff pattern:$0x75316420]
        %v1730 = vld.sshfl [vmem:[#allocation1 + $0x8] sm:$0xff pattern:$0x75316420]
        %v1731 = vld.sshfl [vmem:[#allocation1 + $0x10] sm:$0xff pattern:$0x75316420]
        %v1732 = vld.sshfl [vmem:[#allocation1 + $0x18] sm:$0xff pattern:$0x75316420]
        %v1733 = vld.sshfl [vmem:[#allocation1 + $0x20] sm:$0xff pattern:$0x75316420]
        %v1739 = vpack.c.bf16 %v1730, %v1729
        %v1740 = vpack.c.bf16 %v1732, %v1731
        %v1741 = vpack.c.bf16 %v1733, %v1733
        %v1745 = vrot.slane %v1739, 6
        %v1746 = vrot.slane %v1740, 6
        %v1747 = vrot.slane %v1741, 6
        %1748 = vrot.lane.b32.xlu0 %v1745, 56
        %v1749 = vpop.permute.xlu0 %1748
        %1750 = vrot.lane.b32.xlu0 %v1746, 56
        %v1751 = vpop.permute.xlu0 %1750
        %1752 = vrot.lane.b32.xlu0 %v1747, 56
        %v1753 = vpop.permute.xlu0 %1752
        %v1754 = vrot.slane %v1749, 4
        %v1755 = vrot.slane %v1751, 4
        %v1756 = vrot.slane %v1753, 4
        %v1757 = vsel %vm294, %v1754, %v1755
        %v1758 = vsel %vm773, %v1749, %v1757
        %v1759 = vsel %vm294, %v1755, %v1756
        %v1760 = vsel %vm773, %v1751, %v1759
        %1763 = vst [vmem:[#allocation4 + $0xc0] sm:$0xcc] %v1758
        %1764 = vst [vmem:[#allocation4 + $0xc8] sm:$0xcc] %v1760
        %v1765 = vld [vmem:[#allocation2 + $0x2] sm:$0xff]
        %v1766 = vld [vmem:[#allocation2 + $0xa] sm:$0x3]
        %v1767 = vunpack.c.l.bf16 %v1765
        %v1768 = vunpack.c.h.bf16 %v1765
        %v1769 = vunpack.c.l.bf16 %v1766
        %v1770 = vmul.f32 %v1767, %v803
        %v1771 = vmul.f32 %v1768, %v805
        %v1772 = vmul.f32 %v1769, %v801
        %1776 = vst [vmem:[#allocation1] ss:$2 sm:$0xff] %v1770
        %s1777 = scalar_lea.vmem [#allocation1], 16
        %1778 = vst [vmem:[%s1777] ss:$2 sm:$0xff] %v1771
        %s1779 = scalar_lea.vmem [#allocation1], 32
        %1780 = vst [vmem:[%s1779] ss:$2 sm:$0xff] %v1772
        %v1781 = vld.sshfl [vmem:[#allocation1] sm:$0xff pattern:$0x75316420]
        %v1782 = vld.sshfl [vmem:[#allocation1 + $0x8] sm:$0xff pattern:$0x75316420]
        %v1783 = vld.sshfl [vmem:[#allocation1 + $0x10] sm:$0xff pattern:$0x75316420]
        %v1784 = vld.sshfl [vmem:[#allocation1 + $0x18] sm:$0xff pattern:$0x75316420]
        %v1785 = vld.sshfl [vmem:[#allocation1 + $0x20] sm:$0xff pattern:$0x75316420]
        %v1791 = vpack.c.bf16 %v1782, %v1781
        %v1792 = vpack.c.bf16 %v1784, %v1783
        %v1793 = vpack.c.bf16 %v1785, %v1785
        %1797 = vrot.lane.b32.xlu0 %v1791, 55
        %v1798 = vpop.permute.xlu0 %1797
        %1799 = vrot.lane.b32.xlu0 %v1792, 55
        %v1800 = vpop.permute.xlu0 %1799
        %1801 = vrot.lane.b32.xlu0 %v1793, 55
        %v1802 = vpop.permute.xlu0 %1801
        %v1803 = vrot.slane %v1798, 4
        %v1804 = vrot.slane %v1800, 4
        %v1805 = vrot.slane %v1802, 4
        %v1806 = vsel %vm294, %v1803, %v1804
        %v1807 = vsel %vm846, %v1798, %v1806
        %v1808 = vsel %vm294, %v1804, %v1805
        %v1809 = vsel %vm846, %v1800, %v1808
        %1812 = vst [vmem:[#allocation4 + $0xd0] sm:$0x33] %v1807
        %1813 = vst [vmem:[#allocation4 + $0xd8] sm:$0x33] %v1809
        %v1814 = vld [vmem:[#allocation9] sm:$0xf]
        %v1815 = vld [vmem:[#allocation4] sm:$0xff]
        %v1816 = vld [vmem:[#allocation4 + $0x8] sm:$0xff]
        %v1817 = vld [vmem:[#allocation4 + $0x10] sm:$0xff]
        %v1818 = vld [vmem:[#allocation4 + $0x18] sm:$0xff]
        %v1819 = vld [vmem:[#allocation4 + $0x20] sm:$0xff]
        %v1820 = vld [vmem:[#allocation4 + $0x28] sm:$0xff]
        %v1821 = vld [vmem:[#allocation4 + $0x30] sm:$0xff]
        %v1822 = vld [vmem:[#allocation4 + $0x38] sm:$0xff]
        %v1823 = vld [vmem:[#allocation4 + $0x40] sm:$0xff]
        %v1824 = vld [vmem:[#allocation4 + $0x48] sm:$0xff]
        %v1825 = vld [vmem:[#allocation4 + $0x50] sm:$0xff]
        %v1826 = vld [vmem:[#allocation4 + $0x58] sm:$0xff]
        %v1827 = vld [vmem:[#allocation4 + $0x60] sm:$0xff]
        %v1828 = vld [vmem:[#allocation4 + $0x68] sm:$0xff]
        %v1829 = vld [vmem:[#allocation4 + $0x70] sm:$0xff]
        %v1830 = vld [vmem:[#allocation4 + $0x78] sm:$0xff]
        %v1831 = vld [vmem:[#allocation4 + $0x80] sm:$0xff]
        %v1832 = vld [vmem:[#allocation4 + $0x88] sm:$0xff]
        %v1833 = vld [vmem:[#allocation4 + $0x90] sm:$0xff]
        %v1834 = vld [vmem:[#allocation4 + $0x98] sm:$0xff]
        %v1835 = vld [vmem:[#allocation4 + $0xa0] sm:$0xff]
        %v1836 = vld [vmem:[#allocation4 + $0xa8] sm:$0xff]
        %v1837 = vld [vmem:[#allocation4 + $0xb0] sm:$0xff]
        %v1838 = vld [vmem:[#allocation4 + $0xb8] sm:$0xff]
        %v1839 = vld [vmem:[#allocation4 + $0xc0] sm:$0xff]
        %v1840 = vld [vmem:[#allocation4 + $0xc8] sm:$0xff]
        %v1841 = vld [vmem:[#allocation4 + $0xd0] sm:$0x33]
        %v1842 = vld [vmem:[#allocation4 + $0xd8] sm:$0x33]
        %v1871 = vunpack.c.l.b16 %v1815
        %v1872 = vunpack.c.h.b16 %v1815
        %v1873 = vunpack.c.l.b16 %v1816
        %v1874 = vunpack.c.h.b16 %v1816
        %v1875 = vunpack.c.l.b16 %v1817
        %v1876 = vunpack.c.h.b16 %v1817
        %v1877 = vunpack.c.l.b16 %v1818
        %v1878 = vunpack.c.h.b16 %v1818
        %v1879 = vunpack.c.l.b16 %v1819
        %v1880 = vunpack.c.h.b16 %v1819
        %v1881 = vunpack.c.l.b16 %v1820
        %v1882 = vunpack.c.h.b16 %v1820
        %v1883 = vunpack.c.l.b16 %v1821
        %v1884 = vunpack.c.h.b16 %v1821
        %v1885 = vunpack.c.l.b16 %v1822
        %v1886 = vunpack.c.h.b16 %v1822
        %v1887 = vunpack.c.l.b16 %v1823
        %v1888 = vunpack.c.h.b16 %v1823
        %v1889 = vunpack.c.l.b16 %v1824
        %v1890 = vunpack.c.h.b16 %v1824
        %v1891 = vunpack.c.l.b16 %v1825
        %v1892 = vunpack.c.h.b16 %v1825
        %v1893 = vunpack.c.l.b16 %v1826
        %v1894 = vunpack.c.h.b16 %v1826
        %v1895 = vunpack.c.l.b16 %v1827
        %v1896 = vunpack.c.h.b16 %v1827
        %v1897 = vunpack.c.l.b16 %v1828
        %v1898 = vunpack.c.h.b16 %v1828
        %v1899 = vunpack.c.l.b16 %v1829
        %v1900 = vunpack.c.h.b16 %v1829
        %v1901 = vunpack.c.l.b16 %v1830
        %v1902 = vunpack.c.h.b16 %v1830
        %v1903 = vunpack.c.l.b16 %v1831
        %v1904 = vunpack.c.h.b16 %v1831
        %v1905 = vunpack.c.l.b16 %v1832
        %v1906 = vunpack.c.h.b16 %v1832
        %v1907 = vunpack.c.l.b16 %v1833
        %v1908 = vunpack.c.h.b16 %v1833
        %v1909 = vunpack.c.l.b16 %v1834
        %v1910 = vunpack.c.h.b16 %v1834
        %v1911 = vunpack.c.l.b16 %v1835
        %v1912 = vunpack.c.h.b16 %v1835
        %v1913 = vunpack.c.l.b16 %v1836
        %v1914 = vunpack.c.h.b16 %v1836
        %v1915 = vunpack.c.l.b16 %v1837
        %v1916 = vunpack.c.h.b16 %v1837
        %v1917 = vunpack.c.l.b16 %v1838
        %v1918 = vunpack.c.h.b16 %v1838
        %v1919 = vunpack.c.l.b16 %v1839
        %v1920 = vunpack.c.h.b16 %v1839
        %v1921 = vunpack.c.l.b16 %v1840
        %v1922 = vunpack.c.h.b16 %v1840
        %v1923 = vunpack.c.l.b16 %v1841
        %v1924 = vunpack.c.h.b16 %v1841
        %v1925 = vunpack.c.l.b16 %v1842
        %v1926 = vunpack.c.h.b16 %v1842
        %v1927 = vpack.c.b16 %v1875, %v1871
        %v1928 = vpack.c.b16 %v1876, %v1872
        %v1929 = vpack.c.b16 %v1877, %v1873
        %v1930 = vpack.c.b16 %v1878, %v1874
        %v1931 = vpack.c.b16 %v1883, %v1879
        %v1932 = vpack.c.b16 %v1884, %v1880
        %v1933 = vpack.c.b16 %v1885, %v1881
        %v1934 = vpack.c.b16 %v1886, %v1882
        %v1935 = vpack.c.b16 %v1891, %v1887
        %v1936 = vpack.c.b16 %v1892, %v1888
        %v1937 = vpack.c.b16 %v1893, %v1889
        %v1938 = vpack.c.b16 %v1894, %v1890
        %v1939 = vpack.c.b16 %v1899, %v1895
        %v1940 = vpack.c.b16 %v1900, %v1896
        %v1941 = vpack.c.b16 %v1901, %v1897
        %v1942 = vpack.c.b16 %v1902, %v1898
        %v1943 = vpack.c.b16 %v1907, %v1903
        %v1944 = vpack.c.b16 %v1908, %v1904
        %v1945 = vpack.c.b16 %v1909, %v1905
        %v1946 = vpack.c.b16 %v1910, %v1906
        %v1947 = vpack.c.b16 %v1915, %v1911
        %v1948 = vpack.c.b16 %v1916, %v1912
        %v1949 = vpack.c.b16 %v1917, %v1913
        %v1950 = vpack.c.b16 %v1918, %v1914
        %v1951 = vpack.c.b16 %v1923, %v1919
        %v1952 = vpack.c.b16 %v1924, %v1920
        %v1953 = vpack.c.b16 %v1925, %v1921
        %v1954 = vpack.c.b16 %v1926, %v1922
        %vm1979 = vcmask 883712
        %v1981 = vsel %vm1979, %v1814, 0
        %vm1983 = vcmask 1045504
        %v1985 = vsel %vm1983, %v1951, 0
        %v1988 = vsel %vm1983, %v1952, 0
        %v1991 = vsel %vm1983, %v1953, 0
        %v1994 = vsel %vm1983, %v1954, 0
        %1996 = vmatpush.bf16.msra.mxu0 0
        %1997 = vmatpush.bf16.msra.mxu0 %v1985
        %1998 = vmatpush.bf16.msra.mxu0 %v1947
        %1999 = vmatpush.bf16.msra.mxu0 %v1943
        %2000 = vmatpush.bf16.msra.mxu0 %v1939
        %2001 = vmatpush.bf16.msra.mxu0 %v1935
        %2002 = vmatpush.bf16.msra.mxu0 %v1931
        %2003 = vmatpush.bf16.msra.mxu0 %v1927
        %2004 = vmatmul.bf16.gmra.mxu0 %v1981
        %v2005 = vpop.f32.mrf.mxu0
        %v2006 = vadd.f32 0.0, %v2005
        %v2007 = vpop.f32.mrf.mxu0
        %2008 = vdwg.mxu0
        %2009 = vmatpush.bf16.msra.mxu0 0
        %2010 = vmatpush.bf16.msra.mxu0 %v1988
        %2011 = vmatpush.bf16.msra.mxu0 %v1948
        %2012 = vmatpush.bf16.msra.mxu0 %v1944
        %2013 = vmatpush.bf16.msra.mxu0 %v1940
        %2014 = vmatpush.bf16.msra.mxu0 %v1936
        %2015 = vmatpush.bf16.msra.mxu0 %v1932
        %2016 = vmatpush.bf16.msra.mxu0 %v1928
        %2017 = vmatmul.bf16.gmra.mxu0 %v1981
        %v2018 = vpop.f32.mrf.mxu0
        %v2019 = vadd.f32 0.0, %v2018
        %v2020 = vpop.f32.mrf.mxu0
        %2021 = vdwg.mxu0
        %2022 = vmatpush.bf16.msra.mxu0 0
        %2023 = vmatpush.bf16.msra.mxu0 %v1991
        %2024 = vmatpush.bf16.msra.mxu0 %v1949
        %2025 = vmatpush.bf16.msra.mxu0 %v1945
        %2026 = vmatpush.bf16.msra.mxu0 %v1941
        %2027 = vmatpush.bf16.msra.mxu0 %v1937
        %2028 = vmatpush.bf16.msra.mxu0 %v1933
        %2029 = vmatpush.bf16.msra.mxu0 %v1929
        %2030 = vmatmul.bf16.gmra.mxu0 %v1981
        %v2031 = vpop.f32.mrf.mxu0
        %v2032 = vadd.f32 0.0, %v2031
        %v2033 = vpop.f32.mrf.mxu0
        %2034 = vdwg.mxu0
        %2035 = vmatpush.bf16.msra.mxu0 0
        %2036 = vmatpush.bf16.msra.mxu0 %v1994
        %2037 = vmatpush.bf16.msra.mxu0 %v1950
        %2038 = vmatpush.bf16.msra.mxu0 %v1946
        %2039 = vmatpush.bf16.msra.mxu0 %v1942
        %2040 = vmatpush.bf16.msra.mxu0 %v1938
        %2041 = vmatpush.bf16.msra.mxu0 %v1934
        %2042 = vmatpush.bf16.msra.mxu0 %v1930
        %2043 = vmatmul.bf16.gmra.mxu0 %v1981
        %v2044 = vpop.f32.mrf.mxu0
        %v2045 = vadd.f32 0.0, %v2044
        %v2046 = vpop.f32.mrf.mxu0
        %2047 = vdwg.mxu0
        %2049 = vset.pattern.permute.xlu0 0
        %2050 = vperm.xlu0 %2049, %v2006
        %v2051 = vpop.permute.xlu0 %2050
        %v2053 = vsub.f32 %v2006, %v2051
        %v2054 = vsub.f32 %v2019, %v2051
        %v2055 = vsub.f32 %v2032, %v2051
        %v2056 = vsub.f32 %v2045, %v2051
        %v2058 = vperm.slane %v224, 0
        %v2059 = vperm.slane %v224, 1
        %v2060 = vperm.slane %v224, 2
        %v2061 = vperm.slane %v224, 3
        %v2066 = vmul.f32 %v2053, %v2058
        %v2067 = vmul.f32 %v2054, %v2059
        %v2068 = vmul.f32 %v2055, %v2060
        %v2069 = vmul.f32 %v2056, %v2061
        %v2070 = vadd.f32 %v2066, %v2067
        %v2071 = vadd.f32 %v2070, %v2068
        %v2072 = vadd.f32 %v2071, %v2069
        %2073 = vadd.xlane.f32.xlu0 %v2072
        %v2074 = vpop.xlane.xlu0 %2073
        %v2075 = vmul.f32 %v2074, 0.001953125
        %v2076 = vmul.f32 %v2066, %v2066
        %v2077 = vmul.f32 %v2067, %v2067
        %v2078 = vmul.f32 %v2068, %v2068
        %v2079 = vmul.f32 %v2069, %v2069
        %v2080 = vadd.f32 %v2076, %v2077
        %v2081 = vadd.f32 %v2080, %v2078
        %v2082 = vadd.f32 %v2081, %v2079
        %2083 = vadd.xlane.f32.xlu0 %v2082
        %v2084 = vpop.xlane.xlu0 %2083
        %v2085 = vmul.f32 %v2084, 0.001953125
        %v2086 = vadd.f32 %v2006, %v2075
        %v2087 = vmul.f32 %v2075, %v2075
        %v2088 = vsub.f32 %v2085, %v2087
        %2090 = vset.pattern.permute.xlu0 0
        %2091 = vperm.xlu0 %2090, %v2086
        %v2092 = vpop.permute.xlu0 %2091
        %v2094 = vsub.f32 %v2006, %v2092
        %v2095 = vsub.f32 %v2019, %v2092
        %v2096 = vsub.f32 %v2032, %v2092
        %v2097 = vsub.f32 %v2045, %v2092
        %v2098 = vadd.f32 %v2088, 1e-05
        %v2099 = vrsqrt.pop %v2098
        %v2100 = vmul.f32 %v2099, %v2098
        %v2101 = vmul.f32 %v2100, %v2099
        %v2102 = vmul.f32 0.5, %v2101
        %v2103 = vsub.f32 1.5, %v2102
        %v2104 = vmul.f32 %v2099, %v2103
        %vm2105 = vweird.f32 %v2098
        %vm2106 = vweird.f32 %v2099
        %vm2107 = vmor %vm2105, %vm2106
        %v2108 = vsel %vm2107, %v2099, %v2104
        %v2109 = vmul.f32 %v2094, %v2108
        %v2110 = vmul.f32 %v2095, %v2108
        %v2111 = vmul.f32 %v2096, %v2108
        %v2112 = vmul.f32 %v2097, %v2108
        %vm2113 = vcmp.gt.f32.partialorder %v2109, 0.0
        %vm2114 = vcmp.gt.f32.partialorder %v2110, 0.0
        %vm2115 = vcmp.gt.f32.partialorder %v2111, 0.0
        %vm2116 = vcmp.gt.f32.partialorder %v2112, 0.0
        %v2117 = vmul.f32 %v2109, 0.01
        %v2118 = vmul.f32 %v2110, 0.01
        %v2119 = vmul.f32 %v2111, 0.01
        %v2120 = vmul.f32 %v2112, 0.01
        %v2121 = vsel %vm2113, %v2109, %v2117
        %v2122 = vsel %vm2114, %v2110, %v2118
        %v2123 = vsel %vm2115, %v2111, %v2119
        %v2124 = vsel %vm2116, %v2112, %v2120
        %v2125 = vmul.f32 %v2121, %v2058
        %v2126 = vmul.f32 %v2122, %v2059
        %v2127 = vmul.f32 %v2123, %v2060
        %v2128 = vmul.f32 %v2124, %v2061
        %v2129 = vpack.c.bf16 %v2126, %v2125
        %v2130 = vpack.c.bf16 %v2128, %v2127
        %2131 = vst [vmem:[#allocation3 + $0x4] sm:$0xff] %v2129
        %2132 = vst [vmem:[#allocation3 + $0xc] sm:$0xff] %v2130
        %v2133 = vld [vmem:[#allocation3] sm:$0xff]
        %v2134 = vld [vmem:[#allocation3 + $0x8] sm:$0xff]
        %v2135 = vld [vmem:[#allocation3 + $0x10] sm:$0xf]
        %v2136 = vunpack.c.l.bf16 %v2133
        %v2137 = vunpack.c.h.bf16 %v2133
        %v2138 = vunpack.c.l.bf16 %v2134
        %v2139 = vunpack.c.h.bf16 %v2134
        %v2140 = vunpack.c.l.bf16 %v2135
        %2141 = vrot.lane.b32.xlu0 %v236, 55
        %v2142 = vpop.permute.xlu0 %2141
        %2143 = vrot.lane.b32.xlu0 %v237, 55
        %v2144 = vpop.permute.xlu0 %2143
        %2145 = vrot.lane.b32.xlu0 %v238, 55
        %v2146 = vpop.permute.xlu0 %2145
        %2147 = vrot.lane.b32.xlu0 %v239, 55
        %v2148 = vpop.permute.xlu0 %2147
        %v2149 = vsel %vm251, %v2142, %v2144
        %v2150 = vsel %vm251, %v2144, %v2146
        %v2151 = vsel %vm251, %v2146, %v2148
        %v2157 = vmul.f32 %v2136, %v2142
        %v2158 = vmul.f32 %v2137, %v2149
        %v2159 = vmul.f32 %v2138, %v2150
        %v2160 = vmul.f32 %v2139, %v2151
        %v2161 = vmul.f32 %v2140, %v2148
        %v2162 = vpack.c.bf16 %v2158, %v2157
        %v2163 = vpack.c.bf16 %v2160, %v2159
        %v2164 = vpack.c.bf16 %v2161, %v2161
        %2168 = vrot.lane.b32.xlu0 %v2162, 73
        %v2169 = vpop.permute.xlu0 %2168
        %2170 = vrot.lane.b32.xlu0 %v2163, 73
        %v2171 = vpop.permute.xlu0 %2170
        %2172 = vrot.lane.b32.xlu0 %v2164, 73
        %v2173 = vpop.permute.xlu0 %2172
        %v2174 = vrot.slane %v2169, 4
        %v2175 = vrot.slane %v2171, 4
        %v2176 = vrot.slane %v2173, 4
        %v2177 = vsel %vm294, %v2174, %v2175
        %v2178 = vsel %vm296, %v2169, %v2177
        %v2179 = vsel %vm294, %v2175, %v2176
        %v2180 = vsel %vm296, %v2171, %v2179
        %2183 = vst [vmem:[#allocation4] sm:$0xff] %v2178
        %2184 = vst [vmem:[#allocation4 + $0x8] sm:$0xff] %v2180
        %v2185 = vld [vmem:[#allocation3] sm:$0xff]
        %v2186 = vld [vmem:[#allocation3 + $0x8] sm:$0xff]
        %v2187 = vld [vmem:[#allocation3 + $0x10] sm:$0xf]
        %v2188 = vunpack.c.l.bf16 %v2185
        %v2189 = vunpack.c.h.bf16 %v2185
        %v2190 = vunpack.c.l.bf16 %v2186
        %v2191 = vunpack.c.h.bf16 %v2186
        %v2192 = vunpack.c.l.bf16 %v2187
        %2193 = vrot.lane.b32.xlu0 %v310, 56
        %v2194 = vpop.permute.xlu0 %2193
        %2195 = vrot.lane.b32.xlu0 %v311, 56
        %v2196 = vpop.permute.xlu0 %2195
        %2197 = vrot.lane.b32.xlu0 %v312, 56
        %v2198 = vpop.permute.xlu0 %2197
        %2199 = vrot.lane.b32.xlu0 %v313, 56
        %v2200 = vpop.permute.xlu0 %2199
        %v2201 = vsel %vm324, %v2194, %v2196
        %v2202 = vsel %vm324, %v2196, %v2198
        %v2203 = vsel %vm324, %v2198, %v2200
        %v2209 = vmul.f32 %v2188, %v2194
        %v2210 = vmul.f32 %v2189, %v2201
        %v2211 = vmul.f32 %v2190, %v2202
        %v2212 = vmul.f32 %v2191, %v2203
        %v2213 = vmul.f32 %v2192, %v2200
        %v2214 = vpack.c.bf16 %v2210, %v2209
        %v2215 = vpack.c.bf16 %v2212, %v2211
        %v2216 = vpack.c.bf16 %v2213, %v2213
        %2220 = vrot.lane.b32.xlu0 %v2214, 72
        %v2221 = vpop.permute.xlu0 %2220
        %2222 = vrot.lane.b32.xlu0 %v2215, 72
        %v2223 = vpop.permute.xlu0 %2222
        %2224 = vrot.lane.b32.xlu0 %v2216, 72
        %v2225 = vpop.permute.xlu0 %2224
        %v2226 = vrot.slane %v2221, 4
        %v2227 = vrot.slane %v2223, 4
        %v2228 = vrot.slane %v2225, 4
        %v2229 = vsel %vm294, %v2226, %v2227
        %v2230 = vsel %vm371, %v2221, %v2229
        %v2231 = vsel %vm294, %v2227, %v2228
        %v2232 = vsel %vm371, %v2223, %v2231
        %2235 = vst [vmem:[#allocation4 + $0x10] sm:$0xff] %v2230
        %2236 = vst [vmem:[#allocation4 + $0x18] sm:$0xff] %v2232
        %v2237 = vld [vmem:[#allocation3] sm:$0xff]
        %v2238 = vld [vmem:[#allocation3 + $0x8] sm:$0xff]
        %v2239 = vld [vmem:[#allocation3 + $0x10] sm:$0xf]
        %v2240 = vunpack.c.l.bf16 %v2237
        %v2241 = vunpack.c.h.bf16 %v2237
        %v2242 = vunpack.c.l.bf16 %v2238
        %v2243 = vunpack.c.h.bf16 %v2238
        %v2244 = vunpack.c.l.bf16 %v2239
        %2245 = vrot.lane.b32.xlu0 %v386, 57
        %v2246 = vpop.permute.xlu0 %2245
        %2247 = vrot.lane.b32.xlu0 %v387, 57
        %v2248 = vpop.permute.xlu0 %2247
        %2249 = vrot.lane.b32.xlu0 %v388, 57
        %v2250 = vpop.permute.xlu0 %2249
        %2251 = vrot.lane.b32.xlu0 %v389, 57
        %v2252 = vpop.permute.xlu0 %2251
        %v2253 = vsel %vm400, %v2246, %v2248
        %v2254 = vsel %vm400, %v2248, %v2250
        %v2255 = vsel %vm400, %v2250, %v2252
        %v2261 = vmul.f32 %v2240, %v2246
        %v2262 = vmul.f32 %v2241, %v2253
        %v2263 = vmul.f32 %v2242, %v2254
        %v2264 = vmul.f32 %v2243, %v2255
        %v2265 = vmul.f32 %v2244, %v2252
        %v2266 = vpack.c.bf16 %v2262, %v2261
        %v2267 = vpack.c.bf16 %v2264, %v2263
        %v2268 = vpack.c.bf16 %v2265, %v2265
        %2272 = vrot.lane.b32.xlu0 %v2266, 71
        %v2273 = vpop.permute.xlu0 %2272
        %2274 = vrot.lane.b32.xlu0 %v2267, 71
        %v2275 = vpop.permute.xlu0 %2274
        %2276 = vrot.lane.b32.xlu0 %v2268, 71
        %v2277 = vpop.permute.xlu0 %2276
        %v2278 = vrot.slane %v2273, 4
        %v2279 = vrot.slane %v2275, 4
        %v2280 = vrot.slane %v2277, 4
        %v2281 = vsel %vm294, %v2278, %v2279
        %v2282 = vsel %vm444, %v2273, %v2281
        %v2283 = vsel %vm294, %v2279, %v2280
        %v2284 = vsel %vm444, %v2275, %v2283
        %2287 = vst [vmem:[#allocation4 + $0x20] sm:$0xff] %v2282
        %2288 = vst [vmem:[#allocation4 + $0x28] sm:$0xff] %v2284
        %v2289 = vld [vmem:[#allocation3] sm:$0xff]
        %v2290 = vld [vmem:[#allocation3 + $0x8] sm:$0xff]
        %v2291 = vld [vmem:[#allocation3 + $0x10] sm:$0xf]
        %v2292 = vunpack.c.l.bf16 %v2289
        %v2293 = vunpack.c.h.bf16 %v2289
        %v2294 = vunpack.c.l.bf16 %v2290
        %v2295 = vunpack.c.h.bf16 %v2290
        %v2296 = vunpack.c.l.bf16 %v2291
        %2297 = vrot.lane.b32.xlu0 %v458, 63
        %v2298 = vpop.permute.xlu0 %2297
        %2299 = vrot.lane.b32.xlu0 %v459, 63
        %v2300 = vpop.permute.xlu0 %2299
        %2301 = vrot.lane.b32.xlu0 %v460, 63
        %v2302 = vpop.permute.xlu0 %2301
        %2303 = vrot.lane.b32.xlu0 %v461, 63
        %v2304 = vpop.permute.xlu0 %2303
        %v2305 = vsel %vm472, %v2298, %v2300
        %v2306 = vsel %vm472, %v2300, %v2302
        %v2307 = vsel %vm472, %v2302, %v2304
        %v2313 = vmul.f32 %v2292, %v2298
        %v2314 = vmul.f32 %v2293, %v2305
        %v2315 = vmul.f32 %v2294, %v2306
        %v2316 = vmul.f32 %v2295, %v2307
        %v2317 = vmul.f32 %v2296, %v2304
        %v2318 = vpack.c.bf16 %v2314, %v2313
        %v2319 = vpack.c.bf16 %v2316, %v2315
        %v2320 = vpack.c.bf16 %v2317, %v2317
        %2324 = vrot.lane.b32.xlu0 %v2318, 65
        %v2325 = vpop.permute.xlu0 %2324
        %2326 = vrot.lane.b32.xlu0 %v2319, 65
        %v2327 = vpop.permute.xlu0 %2326
        %2328 = vrot.lane.b32.xlu0 %v2320, 65
        %v2329 = vpop.permute.xlu0 %2328
        %v2330 = vrot.slane %v2325, 4
        %v2331 = vrot.slane %v2327, 4
        %v2332 = vrot.slane %v2329, 4
        %v2333 = vsel %vm294, %v2330, %v2331
        %v2334 = vsel %vm519, %v2325, %v2333
        %v2335 = vsel %vm294, %v2331, %v2332
        %v2336 = vsel %vm519, %v2327, %v2335
        %2339 = vst [vmem:[#allocation4 + $0x30] sm:$0xff] %v2334
        %2340 = vst [vmem:[#allocation4 + $0x38] sm:$0xff] %v2336
        %v2341 = vld [vmem:[#allocation3] sm:$0xff]
        %v2342 = vld [vmem:[#allocation3 + $0x8] sm:$0xff]
        %v2343 = vld [vmem:[#allocation3 + $0x10] sm:$0xf]
        %2347 = vrot.lane.b32.xlu0 %v2341, 64
        %v2348 = vpop.permute.xlu0 %2347
        %2349 = vrot.lane.b32.xlu0 %v2342, 64
        %v2350 = vpop.permute.xlu0 %2349
        %2351 = vrot.lane.b32.xlu0 %v2343, 64
        %v2352 = vpop.permute.xlu0 %2351
        %v2353 = vrot.slane %v2348, 4
        %v2354 = vrot.slane %v2350, 4
        %v2355 = vrot.slane %v2352, 4
        %v2356 = vsel %vm294, %v2353, %v2354
        %v2357 = vsel %vm550, %v2348, %v2356
        %v2358 = vsel %vm294, %v2354, %v2355
        %v2359 = vsel %vm550, %v2350, %v2358
        %2362 = vst [vmem:[#allocation4 + $0x40] sm:$0xff] %v2357
        %2363 = vst [vmem:[#allocation4 + $0x48] sm:$0xff] %v2359
        %v2364 = vld [vmem:[#allocation3] sm:$0xff]
        %v2365 = vld [vmem:[#allocation3 + $0x8] sm:$0xff]
        %v2366 = vld [vmem:[#allocation3 + $0x10] sm:$0xf]
        %v2367 = vunpack.c.l.bf16 %v2364
        %v2368 = vunpack.c.h.bf16 %v2364
        %v2369 = vunpack.c.l.bf16 %v2365
        %v2370 = vunpack.c.h.bf16 %v2365
        %v2371 = vunpack.c.l.bf16 %v2366
        %2372 = vrot.lane.b32.xlu0 %v564, 65
        %v2373 = vpop.permute.xlu0 %2372
        %2374 = vrot.lane.b32.xlu0 %v565, 65
        %v2375 = vpop.permute.xlu0 %2374
        %2376 = vrot.lane.b32.xlu0 %v566, 65
        %v2377 = vpop.permute.xlu0 %2376
        %2378 = vrot.lane.b32.xlu0 %v567, 65
        %v2379 = vpop.permute.xlu0 %2378
        %v2380 = vsel %vm578, %v2373, %v2375
        %v2381 = vsel %vm578, %v2375, %v2377
        %v2382 = vsel %vm578, %v2377, %v2379
        %v2388 = vmul.f32 %v2367, %v2373
        %v2389 = vmul.f32 %v2368, %v2380
        %v2390 = vmul.f32 %v2369, %v2381
        %v2391 = vmul.f32 %v2370, %v2382
        %v2392 = vmul.f32 %v2371, %v2379
        %v2393 = vpack.c.bf16 %v2389, %v2388
        %v2394 = vpack.c.bf16 %v2391, %v2390
        %v2395 = vpack.c.bf16 %v2392, %v2392
        %2399 = vrot.lane.b32.xlu0 %v2393, 63
        %v2400 = vpop.permute.xlu0 %2399
        %2401 = vrot.lane.b32.xlu0 %v2394, 63
        %v2402 = vpop.permute.xlu0 %2401
        %2403 = vrot.lane.b32.xlu0 %v2395, 63
        %v2404 = vpop.permute.xlu0 %2403
        %v2405 = vrot.slane %v2400, 4
        %v2406 = vrot.slane %v2402, 4
        %v2407 = vrot.slane %v2404, 4
        %v2408 = vsel %vm294, %v2405, %v2406
        %v2409 = vsel %vm625, %v2400, %v2408
        %v2410 = vsel %vm294, %v2406, %v2407
        %v2411 = vsel %vm625, %v2402, %v2410
        %2414 = vst [vmem:[#allocation4 + $0x50] sm:$0xff] %v2409
        %2415 = vst [vmem:[#allocation4 + $0x58] sm:$0xff] %v2411
        %v2416 = vld [vmem:[#allocation3] sm:$0xff]
        %v2417 = vld [vmem:[#allocation3 + $0x8] sm:$0xff]
        %v2418 = vld [vmem:[#allocation3 + $0x10] sm:$0xf]
        %v2419 = vunpack.c.l.bf16 %v2416
        %v2420 = vunpack.c.h.bf16 %v2416
        %v2421 = vunpack.c.l.bf16 %v2417
        %v2422 = vunpack.c.h.bf16 %v2417
        %v2423 = vunpack.c.l.bf16 %v2418
        %2424 = vrot.lane.b32.xlu0 %v640, 71
        %v2425 = vpop.permute.xlu0 %2424
        %2426 = vrot.lane.b32.xlu0 %v641, 71
        %v2427 = vpop.permute.xlu0 %2426
        %2428 = vrot.lane.b32.xlu0 %v642, 71
        %v2429 = vpop.permute.xlu0 %2428
        %2430 = vrot.lane.b32.xlu0 %v643, 71
        %v2431 = vpop.permute.xlu0 %2430
        %v2432 = vsel %vm654, %v2425, %v2427
        %v2433 = vsel %vm654, %v2427, %v2429
        %v2434 = vsel %vm654, %v2429, %v2431
        %v2440 = vmul.f32 %v2419, %v2425
        %v2441 = vmul.f32 %v2420, %v2432
        %v2442 = vmul.f32 %v2421, %v2433
        %v2443 = vmul.f32 %v2422, %v2434
        %v2444 = vmul.f32 %v2423, %v2431
        %v2445 = vpack.c.bf16 %v2441, %v2440
        %v2446 = vpack.c.bf16 %v2443, %v2442
        %v2447 = vpack.c.bf16 %v2444, %v2444
        %2451 = vrot.lane.b32.xlu0 %v2445, 57
        %v2452 = vpop.permute.xlu0 %2451
        %2453 = vrot.lane.b32.xlu0 %v2446, 57
        %v2454 = vpop.permute.xlu0 %2453
        %2455 = vrot.lane.b32.xlu0 %v2447, 57
        %v2456 = vpop.permute.xlu0 %2455
        %v2457 = vrot.slane %v2452, 4
        %v2458 = vrot.slane %v2454, 4
        %v2459 = vrot.slane %v2456, 4
        %v2460 = vsel %vm294, %v2457, %v2458
        %v2461 = vsel %vm698, %v2452, %v2460
        %v2462 = vsel %vm294, %v2458, %v2459
        %v2463 = vsel %vm698, %v2454, %v2462
        %2466 = vst [vmem:[#allocation4 + $0x60] sm:$0xff] %v2461
        %2467 = vst [vmem:[#allocation4 + $0x68] sm:$0xff] %v2463
        %v2468 = vld [vmem:[#allocation3] sm:$0xff]
        %v2469 = vld [vmem:[#allocation3 + $0x8] sm:$0xff]
        %v2470 = vld [vmem:[#allocation3 + $0x10] sm:$0xf]
        %v2471 = vunpack.c.l.bf16 %v2468
        %v2472 = vunpack.c.h.bf16 %v2468
        %v2473 = vunpack.c.l.bf16 %v2469
        %v2474 = vunpack.c.h.bf16 %v2469
        %v2475 = vunpack.c.l.bf16 %v2470
        %2476 = vrot.lane.b32.xlu0 %v712, 72
        %v2477 = vpop.permute.xlu0 %2476
        %2478 = vrot.lane.b32.xlu0 %v713, 72
        %v2479 = vpop.permute.xlu0 %2478
        %2480 = vrot.lane.b32.xlu0 %v714, 72
        %v2481 = vpop.permute.xlu0 %2480
        %2482 = vrot.lane.b32.xlu0 %v715, 72
        %v2483 = vpop.permute.xlu0 %2482
        %v2484 = vsel %vm726, %v2477, %v2479
        %v2485 = vsel %vm726, %v2479, %v2481
        %v2486 = vsel %vm726, %v2481, %v2483
        %v2492 = vmul.f32 %v2471, %v2477
        %v2493 = vmul.f32 %v2472, %v2484
        %v2494 = vmul.f32 %v2473, %v2485
        %v2495 = vmul.f32 %v2474, %v2486
        %v2496 = vmul.f32 %v2475, %v2483
        %v2497 = vpack.c.bf16 %v2493, %v2492
        %v2498 = vpack.c.bf16 %v2495, %v2494
        %v2499 = vpack.c.bf16 %v2496, %v2496
        %2503 = vrot.lane.b32.xlu0 %v2497, 56
        %v2504 = vpop.permute.xlu0 %2503
        %2505 = vrot.lane.b32.xlu0 %v2498, 56
        %v2506 = vpop.permute.xlu0 %2505
        %2507 = vrot.lane.b32.xlu0 %v2499, 56
        %v2508 = vpop.permute.xlu0 %2507
        %v2509 = vrot.slane %v2504, 4
        %v2510 = vrot.slane %v2506, 4
        %v2511 = vrot.slane %v2508, 4
        %v2512 = vsel %vm294, %v2509, %v2510
        %v2513 = vsel %vm773, %v2504, %v2512
        %v2514 = vsel %vm294, %v2510, %v2511
        %v2515 = vsel %vm773, %v2506, %v2514
        %2518 = vst [vmem:[#allocation4 + $0x70] sm:$0xff] %v2513
        %2519 = vst [vmem:[#allocation4 + $0x78] sm:$0xff] %v2515
        %v2520 = vld [vmem:[#allocation3] sm:$0xff]
        %v2521 = vld [vmem:[#allocation3 + $0x8] sm:$0xff]
        %v2522 = vld [vmem:[#allocation3 + $0x10] sm:$0xf]
        %v2523 = vunpack.c.l.bf16 %v2520
        %v2524 = vunpack.c.h.bf16 %v2520
        %v2525 = vunpack.c.l.bf16 %v2521
        %v2526 = vunpack.c.h.bf16 %v2521
        %v2527 = vunpack.c.l.bf16 %v2522
        %2528 = vrot.lane.b32.xlu0 %v788, 73
        %v2529 = vpop.permute.xlu0 %2528
        %2530 = vrot.lane.b32.xlu0 %v789, 73
        %v2531 = vpop.permute.xlu0 %2530
        %2532 = vrot.lane.b32.xlu0 %v790, 73
        %v2533 = vpop.permute.xlu0 %2532
        %2534 = vrot.lane.b32.xlu0 %v791, 73
        %v2535 = vpop.permute.xlu0 %2534
        %v2536 = vsel %vm802, %v2529, %v2531
        %v2537 = vsel %vm802, %v2531, %v2533
        %v2538 = vsel %vm802, %v2533, %v2535
        %v2544 = vmul.f32 %v2523, %v2529
        %v2545 = vmul.f32 %v2524, %v2536
        %v2546 = vmul.f32 %v2525, %v2537
        %v2547 = vmul.f32 %v2526, %v2538
        %v2548 = vmul.f32 %v2527, %v2535
        %v2549 = vpack.c.bf16 %v2545, %v2544
        %v2550 = vpack.c.bf16 %v2547, %v2546
        %v2551 = vpack.c.bf16 %v2548, %v2548
        %2555 = vrot.lane.b32.xlu0 %v2549, 55
        %v2556 = vpop.permute.xlu0 %2555
        %2557 = vrot.lane.b32.xlu0 %v2550, 55
        %v2558 = vpop.permute.xlu0 %2557
        %2559 = vrot.lane.b32.xlu0 %v2551, 55
        %v2560 = vpop.permute.xlu0 %2559
        %v2561 = vrot.slane %v2556, 4
        %v2562 = vrot.slane %v2558, 4
        %v2563 = vrot.slane %v2560, 4
        %v2564 = vsel %vm294, %v2561, %v2562
        %v2565 = vsel %vm846, %v2556, %v2564
        %v2566 = vsel %vm294, %v2562, %v2563
        %v2567 = vsel %vm846, %v2558, %v2566
        %2570 = vst [vmem:[#allocation4 + $0x80] sm:$0xff] %v2565
        %2571 = vst [vmem:[#allocation4 + $0x88] sm:$0xff] %v2567
        %v2572 = vld [vmem:[#allocation3] sm:$0xff]
        %v2573 = vld [vmem:[#allocation3 + $0x8] sm:$0xff]
        %v2574 = vld [vmem:[#allocation3 + $0x10] sm:$0xf]
        %v2575 = vunpack.c.l.bf16 %v2572
        %v2576 = vunpack.c.h.bf16 %v2572
        %v2577 = vunpack.c.l.bf16 %v2573
        %v2578 = vunpack.c.h.bf16 %v2573
        %v2579 = vunpack.c.l.bf16 %v2574
        %2580 = vrot.lane.b32.xlu0 %v236, 119
        %v2581 = vpop.permute.xlu0 %2580
        %2582 = vrot.lane.b32.xlu0 %v237, 119
        %v2583 = vpop.permute.xlu0 %2582
        %2584 = vrot.lane.b32.xlu0 %v238, 119
        %v2585 = vpop.permute.xlu0 %2584
        %2586 = vrot.lane.b32.xlu0 %v239, 119
        %v2587 = vpop.permute.xlu0 %2586
        %v2588 = vsel %vm865, %v2581, %v2583
        %v2589 = vsel %vm865, %v2583, %v2585
        %v2590 = vsel %vm865, %v2585, %v2587
        %v2596 = vmul.f32 %v2575, %v2581
        %v2597 = vmul.f32 %v2576, %v2588
        %v2598 = vmul.f32 %v2577, %v2589
        %v2599 = vmul.f32 %v2578, %v2590
        %v2600 = vmul.f32 %v2579, %v2587
        %v2601 = vpack.c.bf16 %v2597, %v2596
        %v2602 = vpack.c.bf16 %v2599, %v2598
        %v2603 = vpack.c.bf16 %v2600, %v2600
        %2607 = vrot.lane.b32.xlu0 %v2601, 9
        %v2608 = vpop.permute.xlu0 %2607
        %2609 = vrot.lane.b32.xlu0 %v2602, 9
        %v2610 = vpop.permute.xlu0 %2609
        %2611 = vrot.lane.b32.xlu0 %v2603, 9
        %v2612 = vpop.permute.xlu0 %2611
        %v2613 = vrot.slane %v2608, 4
        %v2614 = vrot.slane %v2610, 4
        %v2615 = vrot.slane %v2612, 4
        %v2616 = vsel %vm294, %v2613, %v2614
        %v2617 = vsel %vm912, %v2608, %v2616
        %v2618 = vsel %vm294, %v2614, %v2615
        %v2619 = vsel %vm912, %v2610, %v2618
        %2622 = vst [vmem:[#allocation4 + $0x90] sm:$0xff] %v2617
        %2623 = vst [vmem:[#allocation4 + $0x98] sm:$0xff] %v2619
        %v2624 = vld [vmem:[#allocation3] sm:$0xff]
        %v2625 = vld [vmem:[#allocation3 + $0x8] sm:$0xff]
        %v2626 = vld [vmem:[#allocation3 + $0x10] sm:$0xf]
        %v2627 = vunpack.c.l.bf16 %v2624
        %v2628 = vunpack.c.h.bf16 %v2624
        %v2629 = vunpack.c.l.bf16 %v2625
        %v2630 = vunpack.c.h.bf16 %v2625
        %v2631 = vunpack.c.l.bf16 %v2626
        %2632 = vrot.lane.b32.xlu0 %v310, 120
        %v2633 = vpop.permute.xlu0 %2632
        %2634 = vrot.lane.b32.xlu0 %v311, 120
        %v2635 = vpop.permute.xlu0 %2634
        %2636 = vrot.lane.b32.xlu0 %v312, 120
        %v2637 = vpop.permute.xlu0 %2636
        %2638 = vrot.lane.b32.xlu0 %v313, 120
        %v2639 = vpop.permute.xlu0 %2638
        %v2640 = vsel %vm931, %v2633, %v2635
        %v2641 = vsel %vm931, %v2635, %v2637
        %v2642 = vsel %vm931, %v2637, %v2639
        %v2648 = vmul.f32 %v2627, %v2633
        %v2649 = vmul.f32 %v2628, %v2640
        %v2650 = vmul.f32 %v2629, %v2641
        %v2651 = vmul.f32 %v2630, %v2642
        %v2652 = vmul.f32 %v2631, %v2639
        %v2653 = vpack.c.bf16 %v2649, %v2648
        %v2654 = vpack.c.bf16 %v2651, %v2650
        %v2655 = vpack.c.bf16 %v2652, %v2652
        %2659 = vrot.lane.b32.xlu0 %v2653, 8
        %v2660 = vpop.permute.xlu0 %2659
        %2661 = vrot.lane.b32.xlu0 %v2654, 8
        %v2662 = vpop.permute.xlu0 %2661
        %2663 = vrot.lane.b32.xlu0 %v2655, 8
        %v2664 = vpop.permute.xlu0 %2663
        %v2665 = vrot.slane %v2660, 4
        %v2666 = vrot.slane %v2662, 4
        %v2667 = vrot.slane %v2664, 4
        %v2668 = vsel %vm294, %v2665, %v2666
        %v2669 = vsel %vm975, %v2660, %v2668
        %v2670 = vsel %vm294, %v2666, %v2667
        %v2671 = vsel %vm975, %v2662, %v2670
        %2674 = vst [vmem:[#allocation4 + $0xa0] sm:$0xff] %v2669
        %2675 = vst [vmem:[#allocation4 + $0xa8] sm:$0xff] %v2671
        %v2676 = vld [vmem:[#allocation3] sm:$0xff]
        %v2677 = vld [vmem:[#allocation3 + $0x8] sm:$0xff]
        %v2678 = vld [vmem:[#allocation3 + $0x10] sm:$0xf]
        %v2679 = vunpack.c.l.bf16 %v2676
        %v2680 = vunpack.c.h.bf16 %v2676
        %v2681 = vunpack.c.l.bf16 %v2677
        %v2682 = vunpack.c.h.bf16 %v2677
        %v2683 = vunpack.c.l.bf16 %v2678
        %2684 = vrot.lane.b32.xlu0 %v386, 121
        %v2685 = vpop.permute.xlu0 %2684
        %2686 = vrot.lane.b32.xlu0 %v387, 121
        %v2687 = vpop.permute.xlu0 %2686
        %2688 = vrot.lane.b32.xlu0 %v388, 121
        %v2689 = vpop.permute.xlu0 %2688
        %2690 = vrot.lane.b32.xlu0 %v389, 121
        %v2691 = vpop.permute.xlu0 %2690
        %v2692 = vsel %vm994, %v2685, %v2687
        %v2693 = vsel %vm994, %v2687, %v2689
        %v2694 = vsel %vm994, %v2689, %v2691
        %v2700 = vmul.f32 %v2679, %v2685
        %v2701 = vmul.f32 %v2680, %v2692
        %v2702 = vmul.f32 %v2681, %v2693
        %v2703 = vmul.f32 %v2682, %v2694
        %v2704 = vmul.f32 %v2683, %v2691
        %v2705 = vpack.c.bf16 %v2701, %v2700
        %v2706 = vpack.c.bf16 %v2703, %v2702
        %v2707 = vpack.c.bf16 %v2704, %v2704
        %2711 = vrot.lane.b32.xlu0 %v2705, 7
        %v2712 = vpop.permute.xlu0 %2711
        %2713 = vrot.lane.b32.xlu0 %v2706, 7
        %v2714 = vpop.permute.xlu0 %2713
        %2715 = vrot.lane.b32.xlu0 %v2707, 7
        %v2716 = vpop.permute.xlu0 %2715
        %v2717 = vrot.slane %v2712, 4
        %v2718 = vrot.slane %v2714, 4
        %v2719 = vrot.slane %v2716, 4
        %v2720 = vsel %vm294, %v2717, %v2718
        %v2721 = vsel %vm1041, %v2712, %v2720
        %v2722 = vsel %vm294, %v2718, %v2719
        %v2723 = vsel %vm1041, %v2714, %v2722
        %2726 = vst [vmem:[#allocation4 + $0xb0] sm:$0xff] %v2721
        %2727 = vst [vmem:[#allocation4 + $0xb8] sm:$0xff] %v2723
        %v2728 = vld [vmem:[#allocation3] sm:$0xff]
        %v2729 = vld [vmem:[#allocation3 + $0x8] sm:$0xff]
        %v2730 = vld [vmem:[#allocation3 + $0x10] sm:$0xf]
        %v2731 = vunpack.c.l.bf16 %v2728
        %v2732 = vunpack.c.h.bf16 %v2728
        %v2733 = vunpack.c.l.bf16 %v2729
        %v2734 = vunpack.c.h.bf16 %v2729
        %v2735 = vunpack.c.l.bf16 %v2730
        %2736 = vrot.lane.b32.xlu0 %v458, 127
        %v2737 = vpop.permute.xlu0 %2736
        %2738 = vrot.lane.b32.xlu0 %v459, 127
        %v2739 = vpop.permute.xlu0 %2738
        %2740 = vrot.lane.b32.xlu0 %v460, 127
        %v2741 = vpop.permute.xlu0 %2740
        %2742 = vrot.lane.b32.xlu0 %v461, 127
        %v2743 = vpop.permute.xlu0 %2742
        %v2744 = vsel %vm1060, %v2737, %v2739
        %v2745 = vsel %vm1060, %v2739, %v2741
        %v2746 = vsel %vm1060, %v2741, %v2743
        %v2752 = vmul.f32 %v2731, %v2737
        %v2753 = vmul.f32 %v2732, %v2744
        %v2754 = vmul.f32 %v2733, %v2745
        %v2755 = vmul.f32 %v2734, %v2746
        %v2756 = vmul.f32 %v2735, %v2743
        %v2757 = vpack.c.bf16 %v2753, %v2752
        %v2758 = vpack.c.bf16 %v2755, %v2754
        %v2759 = vpack.c.bf16 %v2756, %v2756
        %2763 = vrot.lane.b32.xlu0 %v2757, 1
        %v2764 = vpop.permute.xlu0 %2763
        %2765 = vrot.lane.b32.xlu0 %v2758, 1
        %v2766 = vpop.permute.xlu0 %2765
        %2767 = vrot.lane.b32.xlu0 %v2759, 1
        %v2768 = vpop.permute.xlu0 %2767
        %v2769 = vrot.slane %v2764, 4
        %v2770 = vrot.slane %v2766, 4
        %v2771 = vrot.slane %v2768, 4
        %v2772 = vsel %vm294, %v2769, %v2770
        %v2773 = vsel %vm1104, %v2764, %v2772
        %v2774 = vsel %vm294, %v2770, %v2771
        %v2775 = vsel %vm1104, %v2766, %v2774
        %2778 = vst [vmem:[#allocation4 + $0xc0] sm:$0xff] %v2773
        %2779 = vst [vmem:[#allocation4 + $0xc8] sm:$0xff] %v2775
        %v2780 = vld [vmem:[#allocation3 + $0x4] sm:$0xff]
        %v2781 = vld [vmem:[#allocation3 + $0xc] sm:$0xff]
        %2782 = vst [vmem:[#allocation4 + $0xd0] sm:$0xff] %v2780
        %2783 = vst [vmem:[#allocation4 + $0xd8] sm:$0xff] %v2781
        %v2784 = vld [vmem:[#allocation3 + $0x4] sm:$0xff]
        %v2785 = vld [vmem:[#allocation3 + $0xc] sm:$0xff]
        %v2786 = vld [vmem:[#allocation3 + $0x14] sm:$0xf]
        %v2787 = vunpack.c.l.bf16 %v2784
        %v2788 = vunpack.c.h.bf16 %v2784
        %v2789 = vunpack.c.l.bf16 %v2785
        %v2790 = vunpack.c.h.bf16 %v2785
        %v2791 = vunpack.c.l.bf16 %v2786
        %2792 = vrot.lane.b32.xlu0 %v564, 1
        %v2793 = vpop.permute.xlu0 %2792
        %2794 = vrot.lane.b32.xlu0 %v565, 1
        %v2795 = vpop.permute.xlu0 %2794
        %2796 = vrot.lane.b32.xlu0 %v566, 1
        %v2797 = vpop.permute.xlu0 %2796
        %2798 = vrot.lane.b32.xlu0 %v567, 1
        %v2799 = vpop.permute.xlu0 %2798
        %v2800 = vsel %vm1133, %v2793, %v2795
        %v2801 = vsel %vm1133, %v2795, %v2797
        %v2802 = vsel %vm1133, %v2797, %v2799
        %v2808 = vmul.f32 %v2787, %v2793
        %v2809 = vmul.f32 %v2788, %v2800
        %v2810 = vmul.f32 %v2789, %v2801
        %v2811 = vmul.f32 %v2790, %v2802
        %v2812 = vmul.f32 %v2791, %v2799
        %v2813 = vpack.c.bf16 %v2809, %v2808
        %v2814 = vpack.c.bf16 %v2811, %v2810
        %v2815 = vpack.c.bf16 %v2812, %v2812
        %2819 = vrot.lane.b32.xlu0 %v2813, 127
        %v2820 = vpop.permute.xlu0 %2819
        %2821 = vrot.lane.b32.xlu0 %v2814, 127
        %v2822 = vpop.permute.xlu0 %2821
        %2823 = vrot.lane.b32.xlu0 %v2815, 127
        %v2824 = vpop.permute.xlu0 %2823
        %v2825 = vrot.slane %v2820, 4
        %v2826 = vrot.slane %v2822, 4
        %v2827 = vrot.slane %v2824, 4
        %v2828 = vsel %vm294, %v2825, %v2826
        %v2829 = vsel %vm1177, %v2820, %v2828
        %v2830 = vsel %vm294, %v2826, %v2827
        %v2831 = vsel %vm1177, %v2822, %v2830
        %2834 = vst [vmem:[#allocation4 + $0xe0] sm:$0xff] %v2829
        %2835 = vst [vmem:[#allocation4 + $0xe8] sm:$0xff] %v2831
        %v2836 = vld [vmem:[#allocation3 + $0x4] sm:$0xff]
        %v2837 = vld [vmem:[#allocation3 + $0xc] sm:$0xff]
        %v2838 = vld [vmem:[#allocation3 + $0x14] sm:$0xf]
        %v2839 = vunpack.c.l.bf16 %v2836
        %v2840 = vunpack.c.h.bf16 %v2836
        %v2841 = vunpack.c.l.bf16 %v2837
        %v2842 = vunpack.c.h.bf16 %v2837
        %v2843 = vunpack.c.l.bf16 %v2838
        %2844 = vrot.lane.b32.xlu0 %v640, 7
        %v2845 = vpop.permute.xlu0 %2844
        %2846 = vrot.lane.b32.xlu0 %v641, 7
        %v2847 = vpop.permute.xlu0 %2846
        %2848 = vrot.lane.b32.xlu0 %v642, 7
        %v2849 = vpop.permute.xlu0 %2848
        %2850 = vrot.lane.b32.xlu0 %v643, 7
        %v2851 = vpop.permute.xlu0 %2850
        %v2852 = vsel %vm1196, %v2845, %v2847
        %v2853 = vsel %vm1196, %v2847, %v2849
        %v2854 = vsel %vm1196, %v2849, %v2851
        %v2860 = vmul.f32 %v2839, %v2845
        %v2861 = vmul.f32 %v2840, %v2852
        %v2862 = vmul.f32 %v2841, %v2853
        %v2863 = vmul.f32 %v2842, %v2854
        %v2864 = vmul.f32 %v2843, %v2851
        %v2865 = vpack.c.bf16 %v2861, %v2860
        %v2866 = vpack.c.bf16 %v2863, %v2862
        %v2867 = vpack.c.bf16 %v2864, %v2864
        %2871 = vrot.lane.b32.xlu0 %v2865, 121
        %v2872 = vpop.permute.xlu0 %2871
        %2873 = vrot.lane.b32.xlu0 %v2866, 121
        %v2874 = vpop.permute.xlu0 %2873
        %2875 = vrot.lane.b32.xlu0 %v2867, 121
        %v2876 = vpop.permute.xlu0 %2875
        %v2877 = vrot.slane %v2872, 4
        %v2878 = vrot.slane %v2874, 4
        %v2879 = vrot.slane %v2876, 4
        %v2880 = vsel %vm294, %v2877, %v2878
        %v2881 = vsel %vm1243, %v2872, %v2880
        %v2882 = vsel %vm294, %v2878, %v2879
        %v2883 = vsel %vm1243, %v2874, %v2882
        %2886 = vst [vmem:[#allocation4 + $0xf0] sm:$0xff] %v2881
        %2887 = vst [vmem:[#allocation4 + $0xf8] sm:$0xff] %v2883
        %v2888 = vld [vmem:[#allocation3 + $0x4] sm:$0xff]
        %v2889 = vld [vmem:[#allocation3 + $0xc] sm:$0xff]
        %v2890 = vld [vmem:[#allocation3 + $0x14] sm:$0xf]
        %v2891 = vunpack.c.l.bf16 %v2888
        %v2892 = vunpack.c.h.bf16 %v2888
        %v2893 = vunpack.c.l.bf16 %v2889
        %v2894 = vunpack.c.h.bf16 %v2889
        %v2895 = vunpack.c.l.bf16 %v2890
        %2896 = vrot.lane.b32.xlu0 %v712, 8
        %v2897 = vpop.permute.xlu0 %2896
        %2898 = vrot.lane.b32.xlu0 %v713, 8
        %v2899 = vpop.permute.xlu0 %2898
        %2900 = vrot.lane.b32.xlu0 %v714, 8
        %v2901 = vpop.permute.xlu0 %2900
        %2902 = vrot.lane.b32.xlu0 %v715, 8
        %v2903 = vpop.permute.xlu0 %2902
        %v2904 = vsel %vm1262, %v2897, %v2899
        %v2905 = vsel %vm1262, %v2899, %v2901
        %v2906 = vsel %vm1262, %v2901, %v2903
        %v2912 = vmul.f32 %v2891, %v2897
        %v2913 = vmul.f32 %v2892, %v2904
        %v2914 = vmul.f32 %v2893, %v2905
        %v2915 = vmul.f32 %v2894, %v2906
        %v2916 = vmul.f32 %v2895, %v2903
        %v2917 = vpack.c.bf16 %v2913, %v2912
        %v2918 = vpack.c.bf16 %v2915, %v2914
        %v2919 = vpack.c.bf16 %v2916, %v2916
        %2923 = vrot.lane.b32.xlu0 %v2917, 120
        %v2924 = vpop.permute.xlu0 %2923
        %2925 = vrot.lane.b32.xlu0 %v2918, 120
        %v2926 = vpop.permute.xlu0 %2925
        %2927 = vrot.lane.b32.xlu0 %v2919, 120
        %v2928 = vpop.permute.xlu0 %2927
        %v2929 = vrot.slane %v2924, 4
        %v2930 = vrot.slane %v2926, 4
        %v2931 = vrot.slane %v2928, 4
        %v2932 = vsel %vm294, %v2929, %v2930
        %v2933 = vsel %vm1306, %v2924, %v2932
        %v2934 = vsel %vm294, %v2930, %v2931
        %v2935 = vsel %vm1306, %v2926, %v2934
        %2938 = vst [vmem:[#allocation4 + $0x100] sm:$0xff] %v2933
        %2939 = vst [vmem:[#allocation4 + $0x108] sm:$0xff] %v2935
        %v2940 = vld [vmem:[#allocation3 + $0x4] sm:$0xff]
        %v2941 = vld [vmem:[#allocation3 + $0xc] sm:$0xff]
        %v2942 = vld [vmem:[#allocation3 + $0x14] sm:$0xf]
        %v2943 = vunpack.c.l.bf16 %v2940
        %v2944 = vunpack.c.h.bf16 %v2940
        %v2945 = vunpack.c.l.bf16 %v2941
        %v2946 = vunpack.c.h.bf16 %v2941
        %v2947 = vunpack.c.l.bf16 %v2942
        %2948 = vrot.lane.b32.xlu0 %v788, 9
        %v2949 = vpop.permute.xlu0 %2948
        %2950 = vrot.lane.b32.xlu0 %v789, 9
        %v2951 = vpop.permute.xlu0 %2950
        %2952 = vrot.lane.b32.xlu0 %v790, 9
        %v2953 = vpop.permute.xlu0 %2952
        %2954 = vrot.lane.b32.xlu0 %v791, 9
        %v2955 = vpop.permute.xlu0 %2954
        %v2956 = vsel %vm1325, %v2949, %v2951
        %v2957 = vsel %vm1325, %v2951, %v2953
        %v2958 = vsel %vm1325, %v2953, %v2955
        %v2964 = vmul.f32 %v2943, %v2949
        %v2965 = vmul.f32 %v2944, %v2956
        %v2966 = vmul.f32 %v2945, %v2957
        %v2967 = vmul.f32 %v2946, %v2958
        %v2968 = vmul.f32 %v2947, %v2955
        %v2969 = vpack.c.bf16 %v2965, %v2964
        %v2970 = vpack.c.bf16 %v2967, %v2966
        %v2971 = vpack.c.bf16 %v2968, %v2968
        %2975 = vrot.lane.b32.xlu0 %v2969, 119
        %v2976 = vpop.permute.xlu0 %2975
        %2977 = vrot.lane.b32.xlu0 %v2970, 119
        %v2978 = vpop.permute.xlu0 %2977
        %2979 = vrot.lane.b32.xlu0 %v2971, 119
        %v2980 = vpop.permute.xlu0 %2979
        %v2981 = vrot.slane %v2976, 4
        %v2982 = vrot.slane %v2978, 4
        %v2983 = vrot.slane %v2980, 4
        %v2984 = vsel %vm294, %v2981, %v2982
        %v2985 = vsel %vm1372, %v2976, %v2984
        %v2986 = vsel %vm294, %v2982, %v2983
        %v2987 = vsel %vm1372, %v2978, %v2986
        %2990 = vst [vmem:[#allocation4 + $0x110] sm:$0xff] %v2985
        %2991 = vst [vmem:[#allocation4 + $0x118] sm:$0xff] %v2987
        %v2992 = vld [vmem:[#allocation3 + $0x4] sm:$0xff]
        %v2993 = vld [vmem:[#allocation3 + $0xc] sm:$0xff]
        %v2994 = vld [vmem:[#allocation3 + $0x14] sm:$0xf]
        %v2995 = vunpack.c.l.bf16 %v2992
        %v2996 = vunpack.c.h.bf16 %v2992
        %v2997 = vunpack.c.l.bf16 %v2993
        %v2998 = vunpack.c.h.bf16 %v2993
        %v2999 = vunpack.c.l.bf16 %v2994
        %v3000 = vmul.f32 %v2995, %v2142
        %v3001 = vmul.f32 %v2996, %v2149
        %v3002 = vmul.f32 %v2997, %v2150
        %v3003 = vmul.f32 %v2998, %v2151
        %v3004 = vmul.f32 %v2999, %v2148
        %v3005 = vpack.c.bf16 %v3001, %v3000
        %v3006 = vpack.c.bf16 %v3003, %v3002
        %v3007 = vpack.c.bf16 %v3004, %v3004
        %3011 = vrot.lane.b32.xlu0 %v3005, 73
        %v3012 = vpop.permute.xlu0 %3011
        %3013 = vrot.lane.b32.xlu0 %v3006, 73
        %v3014 = vpop.permute.xlu0 %3013
        %3015 = vrot.lane.b32.xlu0 %v3007, 73
        %v3016 = vpop.permute.xlu0 %3015
        %v3017 = vrot.slane %v3012, 4
        %v3018 = vrot.slane %v3014, 4
        %v3019 = vrot.slane %v3016, 4
        %v3020 = vsel %vm294, %v3017, %v3018
        %v3021 = vsel %vm296, %v3012, %v3020
        %v3022 = vsel %vm294, %v3018, %v3019
        %v3023 = vsel %vm296, %v3014, %v3022
        %3026 = vst [vmem:[#allocation4 + $0x120] sm:$0xff] %v3021
        %3027 = vst [vmem:[#allocation4 + $0x128] sm:$0xff] %v3023
        %v3028 = vld [vmem:[#allocation3 + $0x4] sm:$0xff]
        %v3029 = vld [vmem:[#allocation3 + $0xc] sm:$0xff]
        %v3030 = vld [vmem:[#allocation3 + $0x14] sm:$0xf]
        %v3031 = vunpack.c.l.bf16 %v3028
        %v3032 = vunpack.c.h.bf16 %v3028
        %v3033 = vunpack.c.l.bf16 %v3029
        %v3034 = vunpack.c.h.bf16 %v3029
        %v3035 = vunpack.c.l.bf16 %v3030
        %v3036 = vmul.f32 %v3031, %v2194
        %v3037 = vmul.f32 %v3032, %v2201
        %v3038 = vmul.f32 %v3033, %v2202
        %v3039 = vmul.f32 %v3034, %v2203
        %v3040 = vmul.f32 %v3035, %v2200
        %v3041 = vpack.c.bf16 %v3037, %v3036
        %v3042 = vpack.c.bf16 %v3039, %v3038
        %v3043 = vpack.c.bf16 %v3040, %v3040
        %3047 = vrot.lane.b32.xlu0 %v3041, 72
        %v3048 = vpop.permute.xlu0 %3047
        %3049 = vrot.lane.b32.xlu0 %v3042, 72
        %v3050 = vpop.permute.xlu0 %3049
        %3051 = vrot.lane.b32.xlu0 %v3043, 72
        %v3052 = vpop.permute.xlu0 %3051
        %v3053 = vrot.slane %v3048, 4
        %v3054 = vrot.slane %v3050, 4
        %v3055 = vrot.slane %v3052, 4
        %v3056 = vsel %vm294, %v3053, %v3054
        %v3057 = vsel %vm371, %v3048, %v3056
        %v3058 = vsel %vm294, %v3054, %v3055
        %v3059 = vsel %vm371, %v3050, %v3058
        %3062 = vst [vmem:[#allocation4 + $0x130] sm:$0xff] %v3057
        %3063 = vst [vmem:[#allocation4 + $0x138] sm:$0xff] %v3059
        %v3064 = vld [vmem:[#allocation3 + $0x4] sm:$0xff]
        %v3065 = vld [vmem:[#allocation3 + $0xc] sm:$0xff]
        %v3066 = vld [vmem:[#allocation3 + $0x14] sm:$0xf]
        %v3067 = vunpack.c.l.bf16 %v3064
        %v3068 = vunpack.c.h.bf16 %v3064
        %v3069 = vunpack.c.l.bf16 %v3065
        %v3070 = vunpack.c.h.bf16 %v3065
        %v3071 = vunpack.c.l.bf16 %v3066
        %v3072 = vmul.f32 %v3067, %v2246
        %v3073 = vmul.f32 %v3068, %v2253
        %v3074 = vmul.f32 %v3069, %v2254
        %v3075 = vmul.f32 %v3070, %v2255
        %v3076 = vmul.f32 %v3071, %v2252
        %v3077 = vpack.c.bf16 %v3073, %v3072
        %v3078 = vpack.c.bf16 %v3075, %v3074
        %v3079 = vpack.c.bf16 %v3076, %v3076
        %3083 = vrot.lane.b32.xlu0 %v3077, 71
        %v3084 = vpop.permute.xlu0 %3083
        %3085 = vrot.lane.b32.xlu0 %v3078, 71
        %v3086 = vpop.permute.xlu0 %3085
        %3087 = vrot.lane.b32.xlu0 %v3079, 71
        %v3088 = vpop.permute.xlu0 %3087
        %v3089 = vrot.slane %v3084, 4
        %v3090 = vrot.slane %v3086, 4
        %v3091 = vrot.slane %v3088, 4
        %v3092 = vsel %vm294, %v3089, %v3090
        %v3093 = vsel %vm444, %v3084, %v3092
        %v3094 = vsel %vm294, %v3090, %v3091
        %v3095 = vsel %vm444, %v3086, %v3094
        %3098 = vst [vmem:[#allocation4 + $0x140] sm:$0xff] %v3093
        %3099 = vst [vmem:[#allocation4 + $0x148] sm:$0xff] %v3095
        %v3100 = vld [vmem:[#allocation3 + $0x4] sm:$0xff]
        %v3101 = vld [vmem:[#allocation3 + $0xc] sm:$0xff]
        %v3102 = vld [vmem:[#allocation3 + $0x14] sm:$0xf]
        %v3103 = vunpack.c.l.bf16 %v3100
        %v3104 = vunpack.c.h.bf16 %v3100
        %v3105 = vunpack.c.l.bf16 %v3101
        %v3106 = vunpack.c.h.bf16 %v3101
        %v3107 = vunpack.c.l.bf16 %v3102
        %v3108 = vmul.f32 %v3103, %v2298
        %v3109 = vmul.f32 %v3104, %v2305
        %v3110 = vmul.f32 %v3105, %v2306
        %v3111 = vmul.f32 %v3106, %v2307
        %v3112 = vmul.f32 %v3107, %v2304
        %v3113 = vpack.c.bf16 %v3109, %v3108
        %v3114 = vpack.c.bf16 %v3111, %v3110
        %v3115 = vpack.c.bf16 %v3112, %v3112
        %3119 = vrot.lane.b32.xlu0 %v3113, 65
        %v3120 = vpop.permute.xlu0 %3119
        %3121 = vrot.lane.b32.xlu0 %v3114, 65
        %v3122 = vpop.permute.xlu0 %3121
        %3123 = vrot.lane.b32.xlu0 %v3115, 65
        %v3124 = vpop.permute.xlu0 %3123
        %v3125 = vrot.slane %v3120, 4
        %v3126 = vrot.slane %v3122, 4
        %v3127 = vrot.slane %v3124, 4
        %v3128 = vsel %vm294, %v3125, %v3126
        %v3129 = vsel %vm519, %v3120, %v3128
        %v3130 = vsel %vm294, %v3126, %v3127
        %v3131 = vsel %vm519, %v3122, %v3130
        %3134 = vst [vmem:[#allocation4 + $0x150] sm:$0xff] %v3129
        %3135 = vst [vmem:[#allocation4 + $0x158] sm:$0xff] %v3131
        %v3136 = vld [vmem:[#allocation3 + $0x4] sm:$0xff]
        %v3137 = vld [vmem:[#allocation3 + $0xc] sm:$0xff]
        %v3138 = vld [vmem:[#allocation3 + $0x14] sm:$0xf]
        %3142 = vrot.lane.b32.xlu0 %v3136, 64
        %v3143 = vpop.permute.xlu0 %3142
        %3144 = vrot.lane.b32.xlu0 %v3137, 64
        %v3145 = vpop.permute.xlu0 %3144
        %3146 = vrot.lane.b32.xlu0 %v3138, 64
        %v3147 = vpop.permute.xlu0 %3146
        %v3148 = vrot.slane %v3143, 4
        %v3149 = vrot.slane %v3145, 4
        %v3150 = vrot.slane %v3147, 4
        %v3151 = vsel %vm294, %v3148, %v3149
        %v3152 = vsel %vm550, %v3143, %v3151
        %v3153 = vsel %vm294, %v3149, %v3150
        %v3154 = vsel %vm550, %v3145, %v3153
        %3157 = vst [vmem:[#allocation4 + $0x160] sm:$0xff] %v3152
        %3158 = vst [vmem:[#allocation4 + $0x168] sm:$0xff] %v3154
        %v3159 = vld [vmem:[#allocation3 + $0x4] sm:$0xff]
        %v3160 = vld [vmem:[#allocation3 + $0xc] sm:$0xff]
        %v3161 = vld [vmem:[#allocation3 + $0x14] sm:$0xf]
        %v3162 = vunpack.c.l.bf16 %v3159
        %v3163 = vunpack.c.h.bf16 %v3159
        %v3164 = vunpack.c.l.bf16 %v3160
        %v3165 = vunpack.c.h.bf16 %v3160
        %v3166 = vunpack.c.l.bf16 %v3161
        %v3167 = vmul.f32 %v3162, %v2373
        %v3168 = vmul.f32 %v3163, %v2380
        %v3169 = vmul.f32 %v3164, %v2381
        %v3170 = vmul.f32 %v3165, %v2382
        %v3171 = vmul.f32 %v3166, %v2379
        %v3172 = vpack.c.bf16 %v3168, %v3167
        %v3173 = vpack.c.bf16 %v3170, %v3169
        %v3174 = vpack.c.bf16 %v3171, %v3171
        %3178 = vrot.lane.b32.xlu0 %v3172, 63
        %v3179 = vpop.permute.xlu0 %3178
        %3180 = vrot.lane.b32.xlu0 %v3173, 63
        %v3181 = vpop.permute.xlu0 %3180
        %3182 = vrot.lane.b32.xlu0 %v3174, 63
        %v3183 = vpop.permute.xlu0 %3182
        %v3184 = vrot.slane %v3179, 4
        %v3185 = vrot.slane %v3181, 4
        %v3186 = vrot.slane %v3183, 4
        %v3187 = vsel %vm294, %v3184, %v3185
        %v3188 = vsel %vm625, %v3179, %v3187
        %v3189 = vsel %vm294, %v3185, %v3186
        %v3190 = vsel %vm625, %v3181, %v3189
        %3193 = vst [vmem:[#allocation4 + $0x170] sm:$0xff] %v3188
        %3194 = vst [vmem:[#allocation4 + $0x178] sm:$0xff] %v3190
        %v3195 = vld [vmem:[#allocation3 + $0x4] sm:$0xff]
        %v3196 = vld [vmem:[#allocation3 + $0xc] sm:$0xff]
        %v3197 = vld [vmem:[#allocation3 + $0x14] sm:$0xf]
        %v3198 = vunpack.c.l.bf16 %v3195
        %v3199 = vunpack.c.h.bf16 %v3195
        %v3200 = vunpack.c.l.bf16 %v3196
        %v3201 = vunpack.c.h.bf16 %v3196
        %v3202 = vunpack.c.l.bf16 %v3197
        %v3203 = vmul.f32 %v3198, %v2425
        %v3204 = vmul.f32 %v3199, %v2432
        %v3205 = vmul.f32 %v3200, %v2433
        %v3206 = vmul.f32 %v3201, %v2434
        %v3207 = vmul.f32 %v3202, %v2431
        %v3208 = vpack.c.bf16 %v3204, %v3203
        %v3209 = vpack.c.bf16 %v3206, %v3205
        %v3210 = vpack.c.bf16 %v3207, %v3207
        %3214 = vrot.lane.b32.xlu0 %v3208, 57
        %v3215 = vpop.permute.xlu0 %3214
        %3216 = vrot.lane.b32.xlu0 %v3209, 57
        %v3217 = vpop.permute.xlu0 %3216
        %3218 = vrot.lane.b32.xlu0 %v3210, 57
        %v3219 = vpop.permute.xlu0 %3218
        %v3220 = vrot.slane %v3215, 4
        %v3221 = vrot.slane %v3217, 4
        %v3222 = vrot.slane %v3219, 4
        %v3223 = vsel %vm294, %v3220, %v3221
        %v3224 = vsel %vm698, %v3215, %v3223
        %v3225 = vsel %vm294, %v3221, %v3222
        %v3226 = vsel %vm698, %v3217, %v3225
        %3229 = vst [vmem:[#allocation4 + $0x180] sm:$0xff] %v3224
        %3230 = vst [vmem:[#allocation4 + $0x188] sm:$0xff] %v3226
        %v3231 = vld [vmem:[#allocation3 + $0x4] sm:$0xff]
        %v3232 = vld [vmem:[#allocation3 + $0xc] sm:$0xff]
        %v3233 = vld [vmem:[#allocation3 + $0x14] sm:$0xf]
        %v3234 = vunpack.c.l.bf16 %v3231
        %v3235 = vunpack.c.h.bf16 %v3231
        %v3236 = vunpack.c.l.bf16 %v3232
        %v3237 = vunpack.c.h.bf16 %v3232
        %v3238 = vunpack.c.l.bf16 %v3233
        %v3239 = vmul.f32 %v3234, %v2477
        %v3240 = vmul.f32 %v3235, %v2484
        %v3241 = vmul.f32 %v3236, %v2485
        %v3242 = vmul.f32 %v3237, %v2486
        %v3243 = vmul.f32 %v3238, %v2483
        %v3244 = vpack.c.bf16 %v3240, %v3239
        %v3245 = vpack.c.bf16 %v3242, %v3241
        %v3246 = vpack.c.bf16 %v3243, %v3243
        %3250 = vrot.lane.b32.xlu0 %v3244, 56
        %v3251 = vpop.permute.xlu0 %3250
        %3252 = vrot.lane.b32.xlu0 %v3245, 56
        %v3253 = vpop.permute.xlu0 %3252
        %3254 = vrot.lane.b32.xlu0 %v3246, 56
        %v3255 = vpop.permute.xlu0 %3254
        %v3256 = vrot.slane %v3251, 4
        %v3257 = vrot.slane %v3253, 4
        %v3258 = vrot.slane %v3255, 4
        %v3259 = vsel %vm294, %v3256, %v3257
        %v3260 = vsel %vm773, %v3251, %v3259
        %v3261 = vsel %vm294, %v3257, %v3258
        %v3262 = vsel %vm773, %v3253, %v3261
        %3265 = vst [vmem:[#allocation4 + $0x190] sm:$0xff] %v3260
        %3266 = vst [vmem:[#allocation4 + $0x198] sm:$0xff] %v3262
        %v3267 = vld [vmem:[#allocation3 + $0x4] sm:$0xff]
        %v3268 = vld [vmem:[#allocation3 + $0xc] sm:$0xff]
        %v3269 = vld [vmem:[#allocation3 + $0x14] sm:$0xf]
        %v3270 = vunpack.c.l.bf16 %v3267
        %v3271 = vunpack.c.h.bf16 %v3267
        %v3272 = vunpack.c.l.bf16 %v3268
        %v3273 = vunpack.c.h.bf16 %v3268
        %v3274 = vunpack.c.l.bf16 %v3269
        %v3275 = vmul.f32 %v3270, %v2529
        %v3276 = vmul.f32 %v3271, %v2536
        %v3277 = vmul.f32 %v3272, %v2537
        %v3278 = vmul.f32 %v3273, %v2538
        %v3279 = vmul.f32 %v3274, %v2535
        %v3280 = vpack.c.bf16 %v3276, %v3275
        %v3281 = vpack.c.bf16 %v3278, %v3277
        %v3282 = vpack.c.bf16 %v3279, %v3279
        %3286 = vrot.lane.b32.xlu0 %v3280, 55
        %v3287 = vpop.permute.xlu0 %3286
        %3288 = vrot.lane.b32.xlu0 %v3281, 55
        %v3289 = vpop.permute.xlu0 %3288
        %3290 = vrot.lane.b32.xlu0 %v3282, 55
        %v3291 = vpop.permute.xlu0 %3290
        %v3292 = vrot.slane %v3287, 4
        %v3293 = vrot.slane %v3289, 4
        %v3294 = vrot.slane %v3291, 4
        %v3295 = vsel %vm294, %v3292, %v3293
        %v3296 = vsel %vm846, %v3287, %v3295
        %v3297 = vsel %vm294, %v3293, %v3294
        %v3298 = vsel %vm846, %v3289, %v3297
        %3301 = vst [vmem:[#allocation4 + $0x1a0] sm:$0xff] %v3296
        %3302 = vst [vmem:[#allocation4 + $0x1a8] sm:$0xff] %v3298
        %v3303 = vld [vmem:[#allocation11] sm:$0xff]
        %v3304 = vld [vmem:[#allocation4] sm:$0xff]
        %v3305 = vld [vmem:[#allocation4 + $0x8] sm:$0xff]
        %v3306 = vld [vmem:[#allocation4 + $0x10] sm:$0xff]
        %v3307 = vld [vmem:[#allocation4 + $0x18] sm:$0xff]
        %v3308 = vld [vmem:[#allocation4 + $0x20] sm:$0xff]
        %v3309 = vld [vmem:[#allocation4 + $0x28] sm:$0xff]
        %v3310 = vld [vmem:[#allocation4 + $0x30] sm:$0xff]
        %v3311 = vld [vmem:[#allocation4 + $0x38] sm:$0xff]
        %v3312 = vld [vmem:[#allocation4 + $0x40] sm:$0xff]
        %v3313 = vld [vmem:[#allocation4 + $0x48] sm:$0xff]
        %v3314 = vld [vmem:[#allocation4 + $0x50] sm:$0xff]
        %v3315 = vld [vmem:[#allocation4 + $0x58] sm:$0xff]
        %v3316 = vld [vmem:[#allocation4 + $0x60] sm:$0xff]
        %v3317 = vld [vmem:[#allocation4 + $0x68] sm:$0xff]
        %v3318 = vld [vmem:[#allocation4 + $0x70] sm:$0xff]
        %v3319 = vld [vmem:[#allocation4 + $0x78] sm:$0xff]
        %v3320 = vld [vmem:[#allocation4 + $0x80] sm:$0xff]
        %v3321 = vld [vmem:[#allocation4 + $0x88] sm:$0xff]
        %v3322 = vld [vmem:[#allocation4 + $0x90] sm:$0xff]
        %v3323 = vld [vmem:[#allocation4 + $0x98] sm:$0xff]
        %v3324 = vld [vmem:[#allocation4 + $0xa0] sm:$0xff]
        %v3325 = vld [vmem:[#allocation4 + $0xa8] sm:$0xff]
        %v3326 = vld [vmem:[#allocation4 + $0xb0] sm:$0xff]
        %v3327 = vld [vmem:[#allocation4 + $0xb8] sm:$0xff]
        %v3328 = vld [vmem:[#allocation4 + $0xc0] sm:$0xff]
        %v3329 = vld [vmem:[#allocation4 + $0xc8] sm:$0xff]
        %v3330 = vld [vmem:[#allocation4 + $0xd0] sm:$0xff]
        %v3331 = vld [vmem:[#allocation4 + $0xd8] sm:$0xff]
        %v3332 = vld [vmem:[#allocation4 + $0xe0] sm:$0xff]
        %v3333 = vld [vmem:[#allocation4 + $0xe8] sm:$0xff]
        %v3334 = vld [vmem:[#allocation4 + $0xf0] sm:$0xff]
        %v3335 = vld [vmem:[#allocation4 + $0xf8] sm:$0xff]
        %v3336 = vld [vmem:[#allocation4 + $0x100] sm:$0xff]
        %v3337 = vld [vmem:[#allocation4 + $0x108] sm:$0xff]
        %v3338 = vld [vmem:[#allocation4 + $0x110] sm:$0xff]
        %v3339 = vld [vmem:[#allocation4 + $0x118] sm:$0xff]
        %v3340 = vld [vmem:[#allocation4 + $0x120] sm:$0xff]
        %v3341 = vld [vmem:[#allocation4 + $0x128] sm:$0xff]
        %v3342 = vld [vmem:[#allocation4 + $0x130] sm:$0xff]
        %v3343 = vld [vmem:[#allocation4 + $0x138] sm:$0xff]
        %v3344 = vld [vmem:[#allocation4 + $0x140] sm:$0xff]
        %v3345 = vld [vmem:[#allocation4 + $0x148] sm:$0xff]
        %v3346 = vld [vmem:[#allocation4 + $0x150] sm:$0xff]
        %v3347 = vld [vmem:[#allocation4 + $0x158] sm:$0xff]
        %v3348 = vld [vmem:[#allocation4 + $0x160] sm:$0xff]
        %v3349 = vld [vmem:[#allocation4 + $0x168] sm:$0xff]
        %v3350 = vld [vmem:[#allocation4 + $0x170] sm:$0xff]
        %v3351 = vld [vmem:[#allocation4 + $0x178] sm:$0xff]
        %v3352 = vld [vmem:[#allocation4 + $0x180] sm:$0xff]
        %v3353 = vld [vmem:[#allocation4 + $0x188] sm:$0xff]
        %v3354 = vld [vmem:[#allocation4 + $0x190] sm:$0xff]
        %v3355 = vld [vmem:[#allocation4 + $0x198] sm:$0xff]
        %v3356 = vld [vmem:[#allocation4 + $0x1a0] sm:$0xff]
        %v3357 = vld [vmem:[#allocation4 + $0x1a8] sm:$0xff]
        %v3359 = vunpack.c.l.b16 %v3303
        %v3360 = vunpack.c.h.b16 %v3303
        %v3361 = vpack.c.b16 %v3359, %v3359
        %v3362 = vpack.c.b16 %v3360, %v3360
        %v3418 = vunpack.c.l.b16 %v3304
        %v3419 = vunpack.c.h.b16 %v3304
        %v3420 = vunpack.c.l.b16 %v3305
        %v3421 = vunpack.c.h.b16 %v3305
        %v3422 = vunpack.c.l.b16 %v3306
        %v3423 = vunpack.c.h.b16 %v3306
        %v3424 = vunpack.c.l.b16 %v3307
        %v3425 = vunpack.c.h.b16 %v3307
        %v3426 = vunpack.c.l.b16 %v3308
        %v3427 = vunpack.c.h.b16 %v3308
        %v3428 = vunpack.c.l.b16 %v3309
        %v3429 = vunpack.c.h.b16 %v3309
        %v3430 = vunpack.c.l.b16 %v3310
        %v3431 = vunpack.c.h.b16 %v3310
        %v3432 = vunpack.c.l.b16 %v3311
        %v3433 = vunpack.c.h.b16 %v3311
        %v3434 = vunpack.c.l.b16 %v3312
        %v3435 = vunpack.c.h.b16 %v3312
        %v3436 = vunpack.c.l.b16 %v3313
        %v3437 = vunpack.c.h.b16 %v3313
        %v3438 = vunpack.c.l.b16 %v3314
        %v3439 = vunpack.c.h.b16 %v3314
        %v3440 = vunpack.c.l.b16 %v3315
        %v3441 = vunpack.c.h.b16 %v3315
        %v3442 = vunpack.c.l.b16 %v3316
        %v3443 = vunpack.c.h.b16 %v3316
        %v3444 = vunpack.c.l.b16 %v3317
        %v3445 = vunpack.c.h.b16 %v3317
        %v3446 = vunpack.c.l.b16 %v3318
        %v3447 = vunpack.c.h.b16 %v3318
        %v3448 = vunpack.c.l.b16 %v3319
        %v3449 = vunpack.c.h.b16 %v3319
        %v3450 = vunpack.c.l.b16 %v3320
        %v3451 = vunpack.c.h.b16 %v3320
        %v3452 = vunpack.c.l.b16 %v3321
        %v3453 = vunpack.c.h.b16 %v3321
        %v3454 = vunpack.c.l.b16 %v3322
        %v3455 = vunpack.c.h.b16 %v3322
        %v3456 = vunpack.c.l.b16 %v3323
        %v3457 = vunpack.c.h.b16 %v3323
        %v3458 = vunpack.c.l.b16 %v3324
        %v3459 = vunpack.c.h.b16 %v3324
        %v3460 = vunpack.c.l.b16 %v3325
        %v3461 = vunpack.c.h.b16 %v3325
        %v3462 = vunpack.c.l.b16 %v3326
        %v3463 = vunpack.c.h.b16 %v3326
        %v3464 = vunpack.c.l.b16 %v3327
        %v3465 = vunpack.c.h.b16 %v3327
        %v3466 = vunpack.c.l.b16 %v3328
        %v3467 = vunpack.c.h.b16 %v3328
        %v3468 = vunpack.c.l.b16 %v3329
        %v3469 = vunpack.c.h.b16 %v3329
        %v3470 = vunpack.c.l.b16 %v3330
        %v3471 = vunpack.c.h.b16 %v3330
        %v3472 = vunpack.c.l.b16 %v3331
        %v3473 = vunpack.c.h.b16 %v3331
        %v3474 = vunpack.c.l.b16 %v3332
        %v3475 = vunpack.c.h.b16 %v3332
        %v3476 = vunpack.c.l.b16 %v3333
        %v3477 = vunpack.c.h.b16 %v3333
        %v3478 = vunpack.c.l.b16 %v3334
        %v3479 = vunpack.c.h.b16 %v3334
        %v3480 = vunpack.c.l.b16 %v3335
        %v3481 = vunpack.c.h.b16 %v3335
        %v3482 = vunpack.c.l.b16 %v3336
        %v3483 = vunpack.c.h.b16 %v3336
        %v3484 = vunpack.c.l.b16 %v3337
        %v3485 = vunpack.c.h.b16 %v3337
        %v3486 = vunpack.c.l.b16 %v3338
        %v3487 = vunpack.c.h.b16 %v3338
        %v3488 = vunpack.c.l.b16 %v3339
        %v3489 = vunpack.c.h.b16 %v3339
        %v3490 = vunpack.c.l.b16 %v3340
        %v3491 = vunpack.c.h.b16 %v3340
        %v3492 = vunpack.c.l.b16 %v3341
        %v3493 = vunpack.c.h.b16 %v3341
        %v3494 = vunpack.c.l.b16 %v3342
        %v3495 = vunpack.c.h.b16 %v3342
        %v3496 = vunpack.c.l.b16 %v3343
        %v3497 = vunpack.c.h.b16 %v3343
        %v3498 = vunpack.c.l.b16 %v3344
        %v3499 = vunpack.c.h.b16 %v3344
        %v3500 = vunpack.c.l.b16 %v3345
        %v3501 = vunpack.c.h.b16 %v3345
        %v3502 = vunpack.c.l.b16 %v3346
        %v3503 = vunpack.c.h.b16 %v3346
        %v3504 = vunpack.c.l.b16 %v3347
        %v3505 = vunpack.c.h.b16 %v3347
        %v3506 = vunpack.c.l.b16 %v3348
        %v3507 = vunpack.c.h.b16 %v3348
        %v3508 = vunpack.c.l.b16 %v3349
        %v3509 = vunpack.c.h.b16 %v3349
        %v3510 = vunpack.c.l.b16 %v3350
        %v3511 = vunpack.c.h.b16 %v3350
        %v3512 = vunpack.c.l.b16 %v3351
        %v3513 = vunpack.c.h.b16 %v3351
        %v3514 = vunpack.c.l.b16 %v3352
        %v3515 = vunpack.c.h.b16 %v3352
        %v3516 = vunpack.c.l.b16 %v3353
        %v3517 = vunpack.c.h.b16 %v3353
        %v3518 = vunpack.c.l.b16 %v3354
        %v3519 = vunpack.c.h.b16 %v3354
        %v3520 = vunpack.c.l.b16 %v3355
        %v3521 = vunpack.c.h.b16 %v3355
        %v3522 = vunpack.c.l.b16 %v3356
        %v3523 = vunpack.c.h.b16 %v3356
        %v3524 = vunpack.c.l.b16 %v3357
        %v3525 = vunpack.c.h.b16 %v3357
        %v3526 = vpack.c.b16 %v3422, %v3418
        %v3527 = vpack.c.b16 %v3423, %v3419
        %v3528 = vpack.c.b16 %v3424, %v3420
        %v3529 = vpack.c.b16 %v3425, %v3421
        %v3530 = vpack.c.b16 %v3430, %v3426
        %v3531 = vpack.c.b16 %v3431, %v3427
        %v3532 = vpack.c.b16 %v3432, %v3428
        %v3533 = vpack.c.b16 %v3433, %v3429
        %v3534 = vpack.c.b16 %v3438, %v3434
        %v3535 = vpack.c.b16 %v3439, %v3435
        %v3536 = vpack.c.b16 %v3440, %v3436
        %v3537 = vpack.c.b16 %v3441, %v3437
        %v3538 = vpack.c.b16 %v3446, %v3442
        %v3539 = vpack.c.b16 %v3447, %v3443
        %v3540 = vpack.c.b16 %v3448, %v3444
        %v3541 = vpack.c.b16 %v3449, %v3445
        %v3542 = vpack.c.b16 %v3454, %v3450
        %v3543 = vpack.c.b16 %v3455, %v3451
        %v3544 = vpack.c.b16 %v3456, %v3452
        %v3545 = vpack.c.b16 %v3457, %v3453
        %v3546 = vpack.c.b16 %v3462, %v3458
        %v3547 = vpack.c.b16 %v3463, %v3459
        %v3548 = vpack.c.b16 %v3464, %v3460
        %v3549 = vpack.c.b16 %v3465, %v3461
        %v3550 = vpack.c.b16 %v3470, %v3466
        %v3551 = vpack.c.b16 %v3471, %v3467
        %v3552 = vpack.c.b16 %v3472, %v3468
        %v3553 = vpack.c.b16 %v3473, %v3469
        %v3554 = vpack.c.b16 %v3478, %v3474
        %v3555 = vpack.c.b16 %v3479, %v3475
        %v3556 = vpack.c.b16 %v3480, %v3476
        %v3557 = vpack.c.b16 %v3481, %v3477
        %v3558 = vpack.c.b16 %v3486, %v3482
        %v3559 = vpack.c.b16 %v3487, %v3483
        %v3560 = vpack.c.b16 %v3488, %v3484
        %v3561 = vpack.c.b16 %v3489, %v3485
        %v3562 = vpack.c.b16 %v3494, %v3490
        %v3563 = vpack.c.b16 %v3495, %v3491
        %v3564 = vpack.c.b16 %v3496, %v3492
        %v3565 = vpack.c.b16 %v3497, %v3493
        %v3566 = vpack.c.b16 %v3502, %v3498
        %v3567 = vpack.c.b16 %v3503, %v3499
        %v3568 = vpack.c.b16 %v3504, %v3500
        %v3569 = vpack.c.b16 %v3505, %v3501
        %v3570 = vpack.c.b16 %v3510, %v3506
        %v3571 = vpack.c.b16 %v3511, %v3507
        %v3572 = vpack.c.b16 %v3512, %v3508
        %v3573 = vpack.c.b16 %v3513, %v3509
        %v3574 = vpack.c.b16 %v3518, %v3514
        %v3575 = vpack.c.b16 %v3519, %v3515
        %v3576 = vpack.c.b16 %v3520, %v3516
        %v3577 = vpack.c.b16 %v3521, %v3517
        %v3578 = vpack.c.b16 %v3522, %v3522
        %v3579 = vpack.c.b16 %v3523, %v3523
        %v3580 = vpack.c.b16 %v3524, %v3524
        %v3581 = vpack.c.b16 %v3525, %v3525
        %vm3634 = vcmask 719872
        %v3636 = vsel %vm3634, %v3362, 0
        %v3639 = vsel %vm242, %v3578, 0
        %v3642 = vsel %vm242, %v3579, 0
        %v3645 = vsel %vm242, %v3580, 0
        %v3648 = vsel %vm242, %v3581, 0
        %3650 = vmatpush.bf16.msra.mxu0 %v3554
        %3651 = vmatpush.bf16.msra.mxu0 %v3550
        %3652 = vmatpush.bf16.msra.mxu0 %v3546
        %3653 = vmatpush.bf16.msra.mxu0 %v3542
        %3654 = vmatpush.bf16.msra.mxu0 %v3538
        %3655 = vmatpush.bf16.msra.mxu0 %v3534
        %3656 = vmatpush.bf16.msra.mxu0 %v3530
        %3657 = vmatpush.bf16.msra.mxu0 %v3526
        %3658 = vmatmul.bf16.gmra.mxu0 %v3361
        %v3659 = vpop.f32.mrf.mxu0
        %v3660 = vadd.f32 0.0, %v3659
        %v3661 = vpop.f32.mrf.mxu0
        %3662 = vdwg.mxu0
        %3663 = vmatpush.bf16.msra.mxu0 0
        %3664 = vmatpush.bf16.msra.mxu0 0
        %3665 = vmatpush.bf16.msra.mxu0 %v3639
        %3666 = vmatpush.bf16.msra.mxu0 %v3574
        %3667 = vmatpush.bf16.msra.mxu0 %v3570
        %3668 = vmatpush.bf16.msra.mxu0 %v3566
        %3669 = vmatpush.bf16.msra.mxu0 %v3562
        %3670 = vmatpush.bf16.msra.mxu0 %v3558
        %3671 = vmatmul.bf16.gmra.mxu0 %v3636
        %v3672 = vpop.f32.mrf.mxu0
        %v3673 = vadd.f32 %v3660, %v3672
        %v3674 = vpop.f32.mrf.mxu0
        %3675 = vdwg.mxu0
        %3676 = vmatpush.bf16.msra.mxu0 %v3555
        %3677 = vmatpush.bf16.msra.mxu0 %v3551
        %3678 = vmatpush.bf16.msra.mxu0 %v3547
        %3679 = vmatpush.bf16.msra.mxu0 %v3543
        %3680 = vmatpush.bf16.msra.mxu0 %v3539
        %3681 = vmatpush.bf16.msra.mxu0 %v3535
        %3682 = vmatpush.bf16.msra.mxu0 %v3531
        %3683 = vmatpush.bf16.msra.mxu0 %v3527
        %3684 = vmatmul.bf16.gmra.mxu0 %v3361
        %v3685 = vpop.f32.mrf.mxu0
        %v3686 = vadd.f32 0.0, %v3685
        %v3687 = vpop.f32.mrf.mxu0
        %3688 = vdwg.mxu0
        %3689 = vmatpush.bf16.msra.mxu0 0
        %3690 = vmatpush.bf16.msra.mxu0 0
        %3691 = vmatpush.bf16.msra.mxu0 %v3642
        %3692 = vmatpush.bf16.msra.mxu0 %v3575
        %3693 = vmatpush.bf16.msra.mxu0 %v3571
        %3694 = vmatpush.bf16.msra.mxu0 %v3567
        %3695 = vmatpush.bf16.msra.mxu0 %v3563
        %3696 = vmatpush.bf16.msra.mxu0 %v3559
        %3697 = vmatmul.bf16.gmra.mxu0 %v3636
        %v3698 = vpop.f32.mrf.mxu0
        %v3699 = vadd.f32 %v3686, %v3698
        %v3700 = vpop.f32.mrf.mxu0
        %3701 = vdwg.mxu0
        %3702 = vmatpush.bf16.msra.mxu0 %v3556
        %3703 = vmatpush.bf16.msra.mxu0 %v3552
        %3704 = vmatpush.bf16.msra.mxu0 %v3548
        %3705 = vmatpush.bf16.msra.mxu0 %v3544
        %3706 = vmatpush.bf16.msra.mxu0 %v3540
        %3707 = vmatpush.bf16.msra.mxu0 %v3536
        %3708 = vmatpush.bf16.msra.mxu0 %v3532
        %3709 = vmatpush.bf16.msra.mxu0 %v3528
        %3710 = vmatmul.bf16.gmra.mxu0 %v3361
        %v3711 = vpop.f32.mrf.mxu0
        %v3712 = vadd.f32 0.0, %v3711
        %v3713 = vpop.f32.mrf.mxu0
        %3714 = vdwg.mxu0
        %3715 = vmatpush.bf16.msra.mxu0 0
        %3716 = vmatpush.bf16.msra.mxu0 0
        %3717 = vmatpush.bf16.msra.mxu0 %v3645
        %3718 = vmatpush.bf16.msra.mxu0 %v3576
        %3719 = vmatpush.bf16.msra.mxu0 %v3572
        %3720 = vmatpush.bf16.msra.mxu0 %v3568
        %3721 = vmatpush.bf16.msra.mxu0 %v3564
        %3722 = vmatpush.bf16.msra.mxu0 %v3560
        %3723 = vmatmul.bf16.gmra.mxu0 %v3636
        %v3724 = vpop.f32.mrf.mxu0
        %v3725 = vadd.f32 %v3712, %v3724
        %v3726 = vpop.f32.mrf.mxu0
        %3727 = vdwg.mxu0
        %3728 = vmatpush.bf16.msra.mxu0 %v3557
        %3729 = vmatpush.bf16.msra.mxu0 %v3553
        %3730 = vmatpush.bf16.msra.mxu0 %v3549
        %3731 = vmatpush.bf16.msra.mxu0 %v3545
        %3732 = vmatpush.bf16.msra.mxu0 %v3541
        %3733 = vmatpush.bf16.msra.mxu0 %v3537
        %3734 = vmatpush.bf16.msra.mxu0 %v3533
        %3735 = vmatpush.bf16.msra.mxu0 %v3529
        %3736 = vmatmul.bf16.gmra.mxu0 %v3361
        %v3737 = vpop.f32.mrf.mxu0
        %v3738 = vadd.f32 0.0, %v3737
        %v3739 = vpop.f32.mrf.mxu0
        %3740 = vdwg.mxu0
        %3741 = vmatpush.bf16.msra.mxu0 0
        %3742 = vmatpush.bf16.msra.mxu0 0
        %3743 = vmatpush.bf16.msra.mxu0 %v3648
        %3744 = vmatpush.bf16.msra.mxu0 %v3577
        %3745 = vmatpush.bf16.msra.mxu0 %v3573
        %3746 = vmatpush.bf16.msra.mxu0 %v3569
        %3747 = vmatpush.bf16.msra.mxu0 %v3565
        %3748 = vmatpush.bf16.msra.mxu0 %v3561
        %3749 = vmatmul.bf16.gmra.mxu0 %v3636
        %v3750 = vpop.f32.mrf.mxu0
        %v3751 = vadd.f32 %v3738, %v3750
        %v3752 = vpop.f32.mrf.mxu0
        %3753 = vdwg.mxu0
        %3755 = vset.pattern.permute.xlu0 0
        %3756 = vperm.xlu0 %3755, %v3673
        %v3757 = vpop.permute.xlu0 %3756
        %v3759 = vsub.f32 %v3673, %v3757
        %v3760 = vsub.f32 %v3699, %v3757
        %v3761 = vsub.f32 %v3725, %v3757
        %v3762 = vsub.f32 %v3751, %v3757
        %v3763 = vmul.f32 %v3759, %v2058
        %v3764 = vmul.f32 %v3760, %v2059
        %v3765 = vmul.f32 %v3761, %v2060
        %v3766 = vmul.f32 %v3762, %v2061
        %v3767 = vadd.f32 %v3763, %v3764
        %v3768 = vadd.f32 %v3767, %v3765
        %v3769 = vadd.f32 %v3768, %v3766
        %3770 = vadd.xlane.f32.xlu0 %v3769
        %v3771 = vpop.xlane.xlu0 %3770
        %v3772 = vmul.f32 %v3771, 0.001953125
        %v3773 = vmul.f32 %v3763, %v3763
        %v3774 = vmul.f32 %v3764, %v3764
        %v3775 = vmul.f32 %v3765, %v3765
        %v3776 = vmul.f32 %v3766, %v3766
        %v3777 = vadd.f32 %v3773, %v3774
        %v3778 = vadd.f32 %v3777, %v3775
        %v3779 = vadd.f32 %v3778, %v3776
        %3780 = vadd.xlane.f32.xlu0 %v3779
        %v3781 = vpop.xlane.xlu0 %3780
        %v3782 = vmul.f32 %v3781, 0.001953125
        %v3783 = vadd.f32 %v3673, %v3772
        %v3784 = vmul.f32 %v3772, %v3772
        %v3785 = vsub.f32 %v3782, %v3784
        %3787 = vset.pattern.permute.xlu0 0
        %3788 = vperm.xlu0 %3787, %v3783
        %v3789 = vpop.permute.xlu0 %3788
        %v3791 = vsub.f32 %v3673, %v3789
        %v3792 = vsub.f32 %v3699, %v3789
        %v3793 = vsub.f32 %v3725, %v3789
        %v3794 = vsub.f32 %v3751, %v3789
        %v3795 = vadd.f32 %v3785, 1e-05
        %v3796 = vrsqrt.pop %v3795
        %v3797 = vmul.f32 %v3796, %v3795
        %v3798 = vmul.f32 %v3797, %v3796
        %v3799 = vmul.f32 0.5, %v3798
        %v3800 = vsub.f32 1.5, %v3799
        %v3801 = vmul.f32 %v3796, %v3800
        %vm3802 = vweird.f32 %v3795
        %vm3803 = vweird.f32 %v3796
        %vm3804 = vmor %vm3802, %vm3803
        %v3805 = vsel %vm3804, %v3796, %v3801
        %v3806 = vmul.f32 %v3791, %v3805
        %v3807 = vmul.f32 %v3792, %v3805
        %v3808 = vmul.f32 %v3793, %v3805
        %v3809 = vmul.f32 %v3794, %v3805
        %vm3810 = vcmp.gt.f32.partialorder %v3806, 0.0
        %vm3811 = vcmp.gt.f32.partialorder %v3807, 0.0
        %vm3812 = vcmp.gt.f32.partialorder %v3808, 0.0
        %vm3813 = vcmp.gt.f32.partialorder %v3809, 0.0
        %v3814 = vmul.f32 %v3806, 0.01
        %v3815 = vmul.f32 %v3807, 0.01
        %v3816 = vmul.f32 %v3808, 0.01
        %v3817 = vmul.f32 %v3809, 0.01
        %v3818 = vsel %vm3810, %v3806, %v3814
        %v3819 = vsel %vm3811, %v3807, %v3815
        %v3820 = vsel %vm3812, %v3808, %v3816
        %v3821 = vsel %vm3813, %v3809, %v3817
        %3822 = vst [vmem:[%s193] sm:$0xff] %v3818
        %3823 = vst [vmem:[%s193 + $0x8] sm:$0xff] %v3819
        %3824 = vst [vmem:[%s193 + $0x10] sm:$0xff] %v3820
        %3825 = vst [vmem:[%s193 + $0x18] sm:$0xff] %v3821
        %s3826 = sand.u32 %s91, 1
        %s3827 = scalar_lea.sflag [#allocation8], %s3826
        %s3828 = sand.u32 %s91, 1
        %s3829 = smul.addr %s3828, 32
        %s3830 = scalar_lea.vmem [#allocation12], %s3829
        // Predicated region
        $region49: #{tpu_custom_call.1} parent=31 // pred_check
          %p3831 = pneg %p101
        $region50: #{tpu_custom_call.1} parent=31 // pred_check_branch
          %3833 = sbr.rel (%p3831) target = $region52
        $region51: #{tpu_custom_call.1} parent=31 // pred_region
          %3835 = vsyncadd %s3827, 0
          %s3836 = smul.addr %s20, 4
          %s3837 = smul.addr %s3836, 8
          %s3838 = scalar_lea.hbm %s4, %s3837
          %s3840 = sshll.u32 %s3830, 4
          %s3841 = int_to_ptr.vmem [resolvable:$true] %s3840
          %s3842 = sshll.u32 %s3838, 4
          %s3843 = int_to_ptr.hbm [resolvable:$true] %s3842
          %3845 = dma.vmem_to_hbm [thread:$0]  %s3841, 512, %s3843, %s3827
        $region52: #{tpu_custom_call.1} parent=31 // pred_fallthru
          _
      $region32: #{tpu_custom_call.1} parent=5 // pred_fallthru
        _
      %p3846 = scmp.le.s32.totalorder 2, %s15
      // Predicated region
      $region53: #{tpu_custom_call.1} parent=5 // pred_check
        %p3847 = pneg %p3846
      $region54: #{tpu_custom_call.1} parent=5 // pred_check_branch
        %3849 = sbr.rel (%p3847) target = $region56
      $region55: #{tpu_custom_call.1} parent=5 // pred_region
        %s3850 = ssub.s32 %s15, 2
        // Predicated region
        $region57: #{tpu_custom_call.1} parent=55 // pred_check
          %p3851 = pneg %p107
        $region58: #{tpu_custom_call.1} parent=55 // pred_check_branch
          %3853 = sbr.rel (%p3851) target = $region60
        $region59: #{tpu_custom_call.1} parent=55 // pred_region
          %s3854 = sand.u32 %s92, 1
          %s3855 = scalar_lea.sflag [#allocation8], %s3854
          %s3856 = sand.u32 %s92, 1
          %s3857 = smul.addr %s3856, 32
          %s3858 = scalar_lea.vmem [#allocation12], %s3857
          %3860 = dma.done %s3855, 512
        $region60: #{tpu_custom_call.1} parent=55 // pred_fallthru
          _
      $region56: #{tpu_custom_call.1} parent=5 // pred_fallthru
        _
    $region6: #{tpu_custom_call.1} parent=1 // loop_footer
      %s19 = sadd.s32 1, %s15
    $region7: #{tpu_custom_call.1} parent=1 // loop_footer_branch
      %14 = sbr.rel target = $region3
    $region8: #{tpu_custom_call.1} parent=1 // loop_exit
      _
    %3861 = vsyncpa [#allocation7], 1
    %s3862 = scalar_lea.sflag [#allocation7], 1
    %3863 = vsyncpa %s3862, 1
    %3864 = vsyncpa [#allocation10], 1
    %3865 = vsyncpa [#allocation8], 1
    %s3866 = scalar_lea.sflag [#allocation8], 1
    %3867 = vsyncpa %s3866, 1
  %3868 = vsyncmov [#allocation5]
  %s3869 = vpop.sfrf %3868
  %p3870 = scmp.eq.s32.totalorder %s3869, 0
  %p3871 = pneg %p3870
  %3873 = shalt.err (%p3871)

</llo_original>
